<compile_context>
chip_gen: v7x
topology: tpu7x:2x2x1
jax: 0.10.0
libtpu: 0.0.40
codegen_flags: <defaults>
</compile_context>

<pallas_src>
import functools
import math

import numpy as np
import jax
import jax.numpy as jnp
from jax.experimental import pallas as pl
from jax.experimental.pallas import tpu as pltpu


# ---------------------------------------------------------------------------
# Fused Pallas kernel
# ---------------------------------------------------------------------------
def fused_subsample_kernel(xa_ref, xb_ref, cw_ref, cb_ref, lw_ref, lb_ref,
                           pe_ref, o_ref, ph2_ref, p_ref, h_ref,
                           *, n_freq, idim, f_out, xscale):
    """One (batch, time-tile) grid cell.

    xa_ref : (tile_t, 2*idim) f32  phase-split raw x rows:
                                   [:, :idim] = x[2t'], [:, idim:] = x[2t'+1]
    xb_ref : (1, idim)        f32  phase-0 halo row x[2*(tile_end)]
    cw_ref : (27, odim)       f32  conv weight, rows ordered (kh, c, kw)
    cb_ref : (1, odim)        f32  conv bias
    lw_ref : (f_out*odim, odim) bf16  linear weight, K ordered (f', conv-chan)
    lb_ref : (1, odim)        f32  linear bias
    pe_ref : (tile_t, odim)   f32  positional-encoding tile
    o_ref  : (tile_t, odim)   f32  output tile
    ph2_ref: (tile_t, idim)   f32  scratch: phase-0 rows shifted by one (kh=2)
    p_ref  : (tile_t, 27)     f32  scratch: im2col rows for one output freq
    h_ref  : (tile_t, f_out*odim) bf16  scratch: packed ReLU'd conv activations
    """
    tile_t, odim = o_ref.shape

    # kh = 2 needs phase-0 rows shifted down by one; the last row comes from
    # the tiny halo side input.
    if tile_t > 1:
        ph2_ref[0:tile_t - 1, :] = xa_ref[1:tile_t, 0:idim]
    ph2_ref[tile_t - 1:tile_t, :] = xb_ref[...]

    cw = cw_ref[...]
    cb = cb_ref[...]                      # (1, odim): implicit broadcast add

    # In-kernel im2col + conv-as-matmul + ReLU, one output-freq column at a
    # time.  Patch column order is (kh, c, kw) to match cw.
    for f in range(f_out):
        for c in range(3):
            base = c * n_freq + 2 * f
            k0 = (0 * 3 + c) * 3
            k1 = (1 * 3 + c) * 3
            k2 = (2 * 3 + c) * 3
            p_ref[:, k0:k0 + 3] = xa_ref[:, base:base + 3]               # kh=0
            p_ref[:, k1:k1 + 3] = xa_ref[:, idim + base:idim + base + 3]  # kh=1
            p_ref[:, k2:k2 + 3] = ph2_ref[:, base:base + 3]              # kh=2
        conv_f = jnp.dot(p_ref[...], cw, preferred_element_type=jnp.float32)
        conv_f = jnp.maximum(conv_f + cb, 0.0)
        h_ref[:, f * odim:(f + 1) * odim] = conv_f.astype(h_ref.dtype)

    # Single wide-K linear matmul (K = f_out*odim), then scale + PE.
    acc = jnp.dot(h_ref[...], lw_ref[...], preferred_element_type=jnp.float32)
    o_ref[...] = (acc + lb_ref[...]) * xscale + pe_ref[...]


# ---------------------------------------------------------------------------
# Glue helpers (plain JAX / numpy, one-time ops)
# ---------------------------------------------------------------------------
def sinusoidal_pe(length, d_model):
    """ESPnet-style PositionalEncoding table, shape (length, d_model)."""
    position = np.arange(length, dtype=np.float32)[:, None]
    div_term = np.exp(np.arange(0, d_model, 2, dtype=np.float32)
                      * -(math.log(10000.0) / d_model))
    pe = np.zeros((length, d_model), dtype=np.float32)
    pe[:, 0::2] = np.sin(position * div_term)
    pe[:, 1::2] = np.cos(position * div_term)
    return jnp.asarray(pe)


def _padded_block_bytes(shape, dtype):
    """VMEM footprint of one block (last dim -> 128 lanes, 2nd-to-last ->
    sublane tile for the dtype)."""
    itemsize = jnp.dtype(dtype).itemsize
    sublane = max(8, 32 // itemsize)
    dims = [int(d) for d in shape]
    dims[-1] = -(-dims[-1] // 128) * 128
    if len(dims) >= 2:
        dims[-2] = -(-dims[-2] // sublane) * sublane
    n = 1
    for d in dims:
        n *= d
    return n * itemsize


# ---------------------------------------------------------------------------
# Forward pass (matches the PyTorch module, delta=True, eval mode)
# ---------------------------------------------------------------------------
def conv2d_subsampling_1layer_with_deltas(x, x_mask, params,
                                          compute_dtype=jnp.bfloat16):
    """x: (B, T, idim) float32, idim % 3 == 0.  Returns (y, mask)."""
    b, t, idim = x.shape
    assert idim % 3 == 0
    n_freq = idim // 3
    odim = params["conv_b"].shape[0]
    t_out = (t - 3) // 2 + 1
    f_out = (n_freq - 3) // 2 + 1
    xscale = float(math.sqrt(odim))

    # --- time tiling (sublane-aligned blocks) ------------------------------
    tile_t = min(-(-t_out // 8) * 8, 256)
    n_tt = pl.cdiv(t_out, tile_t)
    t_pad_out = n_tt * tile_t

    # --- glue: phase-split raw x (free reshape; +1 zero row only if T odd) --
    t_even = t + (t & 1)
    x_even = x if t_even == t else jnp.pad(x, ((0, 0), (0, 1), (0, 0)))
    x2 = x_even.reshape(b, t_even // 2, 2 * idim)   # row tt = [x[2tt] | x[2tt+1]]
    # One phase-0 halo row per time tile; only the tile's last output row uses
    # it, and clipped entries only feed rows >= t_out (discarded afterwards).
    halo_rows = np.minimum(2 * tile_t * np.arange(1, n_tt + 1), t_even - 2)
    xb = x_even[:, halo_rows, :idim].reshape(b, n_tt, 1, idim)

    # --- weights: one-time reshapes (no per-step activation transpose) -----
    conv_w = params["conv_w"].astype(jnp.float32)               # (O, C, KH, KW)
    cw = conv_w.transpose(2, 1, 3, 0).reshape(27, odim)         # rows (kh,c,kw)
    cb = params["conv_b"].reshape(1, odim).astype(jnp.float32)
    # torch Linear consumes h[t, c*F' + f] = conv[t, f, c]; permute the K axis
    # to (f, c) order so the kernel's lane-packed activation hits it directly.
    lw = (params["lin_w"].reshape(odim, odim, f_out)            # (o2, c, f)
          .transpose(2, 1, 0)                                   # (f, c, o2)
          .reshape(f_out * odim, odim)
          .astype(compute_dtype))
    lb = params["lin_b"].reshape(1, odim).astype(jnp.float32)
    pe = sinusoidal_pe(t_pad_out, odim)                         # (n_tt*tile_t, odim)

    # --- VMEM budget: hardware-aware cap ------------------------------------
    block_bytes = (
        _padded_block_bytes((tile_t, 2 * idim), jnp.float32)          # xa
        + _padded_block_bytes((1, idim), jnp.float32)                 # xb
        + _padded_block_bytes((27, odim), jnp.float32)                # cw
        + _padded_block_bytes((1, odim), jnp.float32)                 # cb
        + _padded_block_bytes((f_out * odim, odim), compute_dtype)    # lw
        + _padded_block_bytes((1, odim), jnp.float32)                 # lb
        + _padded_block_bytes((tile_t, odim), jnp.float32)            # pe
        + _padded_block_bytes((tile_t, odim), jnp.float32))           # out
    scratch_bytes = (
        _padded_block_bytes((tile_t, idim), jnp.float32)
        + _padded_block_bytes((tile_t, 27), jnp.float32)
        + _padded_block_bytes((tile_t, f_out * odim), compute_dtype))
    try:
        vmem_cap = int(pltpu.get_tpu_info().vmem_capacity_bytes)
    except Exception:
        vmem_cap = 64 << 20                    # conservative (v7x per-TC VMEM)
    vmem_limit = int(min(max(32 << 20,
                             2 * block_bytes + scratch_bytes + (8 << 20)),
                         vmem_cap - (8 << 20)))

    cost = pl.CostEstimate(
        flops=2 * b * t_out * f_out * odim * (27 + odim),
        transcendentals=0,
        bytes_accessed=int(x2.size * 4 + xb.size * 4 + cw.size * 4
                           + lw.size * jnp.dtype(compute_dtype).itemsize
                           + pe.size * 4 + b * t_pad_out * odim * 4))

    kernel = functools.partial(fused_subsample_kernel, n_freq=n_freq,
                               idim=idim, f_out=f_out, xscale=xscale)

    def build(single_buffer_consts):
        def const_spec(shape):
            index_map = lambda i, j, _nd=len(shape): (0,) * _nd
            if single_buffer_consts:
                # Grid-invariant operands: one resident buffer is enough.
                return pl.BlockSpec(shape, index_map,
                                    pipeline_mode=pl.Buffered(1))
            return pl.BlockSpec(shape, index_map)

        return pl.pallas_call(
            kernel,
            out_shape=jax.ShapeDtypeStruct((b, t_pad_out, odim), jnp.float32),
            grid=(b, n_tt),
            in_specs=[
                pl.BlockSpec((None, tile_t, 2 * idim), lambda i, j: (i, j, 0)),
                pl.BlockSpec((None, None, 1, idim), lambda i, j: (i, j, 0, 0)),
                const_spec((27, odim)),
                const_spec((1, odim)),
                const_spec((f_out * odim, odim)),
                const_spec((1, odim)),
                pl.BlockSpec((tile_t, odim), lambda i, j: (j, 0)),
            ],
            out_specs=pl.BlockSpec((None, tile_t, odim), lambda i, j: (i, j, 0)),
            scratch_shapes=[
                pltpu.VMEM((tile_t, idim), jnp.float32),
                pltpu.VMEM((tile_t, 27), jnp.float32),
                pltpu.VMEM((tile_t, f_out * odim), compute_dtype),
            ],
            compiler_params=pltpu.CompilerParams(
                dimension_semantics=("parallel", "parallel"),
                vmem_limit_bytes=vmem_limit),
            cost_estimate=cost,
        )

    try:
        y = build(True)(x2, xb, cw, cb, lw, lb, pe)
    except Exception:
        # pl.Buffered(1) single-buffering not supported on this version ->
        # fall back to default (double-buffered) grid-invariant operands.
        y = build(False)(x2, xb, cw, cb, lw, lb, pe)

    y = y[:, :t_out, :]
    if x_mask is None:
        return y, None
    return y, x_mask[:, :, :-2:2]


# ---------------------------------------------------------------------------
# Pure-JAX f32 reference (mirrors the PyTorch forward) for correctness check
# ---------------------------------------------------------------------------
def reference_forward(x, conv_w, conv_b, lin_w, lin_b, odim):
    b, t, idim = x.shape
    f = idim // 3
    xr = x.reshape(b, t, 3, f).transpose(0, 2, 1, 3)             # (B, 3, T, F)
    y = jax.lax.conv_general_dilated(
        xr, conv_w, window_strides=(2, 2), padding="VALID",
        dimension_numbers=("NCHW", "OIHW", "NCHW"),
    )
    y = y + conv_b[None, :, None, None]
    y = jnp.maximum(y, 0.0)
    b_, c, tp, fp = y.shape
    y = y.transpose(0, 2, 1, 3).reshape(b_, tp, c * fp)
    y = y @ lin_w.T + lin_b
    y = y * math.sqrt(odim) + sinusoidal_pe(tp, odim)[None]
    return y


# ---------------------------------------------------------------------------
if __name__ == "__main__":
    key = jax.random.PRNGKey(0)
    # small but lane-dense config (odim multiple of 128 keeps stores unmasked)
    b, t, idim, odim = 2, 16, 24, 128
    dropout_rate = 0.1  # identity in eval mode

    n_freq = idim // 3
    t_out = (t - 3) // 2 + 1
    f_out = (n_freq - 3) // 2 + 1
    k_lin = odim * ((idim // 3 - 1) // 2)          # as in the module __init__

    k1, k2, k3, k4, k5 = jax.random.split(key, 5)
    x = jax.random.normal(k1, (b, t, idim), dtype=jnp.float32)
    x_mask = jnp.ones((b, 1, t), dtype=bool)

    # deterministic synthetic parameters (torch shapes)
    conv_w = jax.random.normal(k2, (odim, 3, 3, 3), dtype=jnp.float32) * 0.1
    conv_b = jax.random.normal(k3, (odim,), dtype=jnp.float32) * 0.1
    lin_w = jax.random.normal(k4, (odim, k_lin), dtype=jnp.float32) * 0.1
    lin_b = jax.random.normal(k5, (odim,), dtype=jnp.float32) * 0.1
    params = dict(conv_w=conv_w, conv_b=conv_b, lin_w=lin_w, lin_b=lin_b)

    y, y_mask = conv2d_subsampling_1layer_with_deltas(x, x_mask, params)
    y = jax.block_until_ready(y)

    assert y.shape == (b, t_out, odim), y.shape
    assert y_mask.shape == (b, 1, t_out), y_mask.shape

    # bf16 linear weight / packed activations with f32 accumulation.
    y_ref = reference_forward(x, conv_w, conv_b, lin_w, lin_b, odim)
    np.testing.assert_allclose(np.asarray(y), np.asarray(y_ref),
                               rtol=3e-2, atol=2e-1)

    print("KERNEL_OK")
</pallas_src>

<mosaic_0001>
module attributes {stable_mosaic.version = 11 : i64} {
  func.func @fused_subsample_kernel(%arg0: i32, %arg1: i32, %arg2: memref<1x8x48xf32, #tpu.memory_space<vmem>>, %arg3: memref<1x1x1x24xf32, #tpu.memory_space<vmem>>, %arg4: memref<27x128xf32, #tpu.memory_space<vmem>>, %arg5: memref<1x128xf32, #tpu.memory_space<vmem>>, %arg6: memref<384x128xbf16, #tpu.memory_space<vmem>>, %arg7: memref<1x128xf32, #tpu.memory_space<vmem>>, %arg8: memref<8x128xf32, #tpu.memory_space<vmem>>, %arg9: memref<1x8x128xf32, #tpu.memory_space<vmem>>, %arg10: memref<8x24xf32, #tpu.memory_space<vmem>>, %arg11: memref<8x27xf32, #tpu.memory_space<vmem>>, %arg12: memref<8x384xbf16, #tpu.memory_space<vmem>>) attributes {dimension_semantics = [#tpu.dimension_semantics<parallel>, #tpu.dimension_semantics<parallel>], iteration_bounds = array<i64: 2, 1>, scalar_prefetch = 0 : i64, scratch_operands = 3 : i64, tpu.core_type = #tpu.core_type<tc>, window_params = [{transform_indices = @transform_0, window_bounds = array<i64: 1, 8, 48>}, {transform_indices = @transform_1, window_bounds = array<i64: 1, 1, 1, 24>}, {pipeline_mode = #tpu.pipeline_mode<synchronous>, transform_indices = @transform_2, window_bounds = array<i64: 27, 128>}, {pipeline_mode = #tpu.pipeline_mode<synchronous>, transform_indices = @transform_3, window_bounds = array<i64: 1, 128>}, {pipeline_mode = #tpu.pipeline_mode<synchronous>, transform_indices = @transform_4, window_bounds = array<i64: 384, 128>}, {pipeline_mode = #tpu.pipeline_mode<synchronous>, transform_indices = @transform_5, window_bounds = array<i64: 1, 128>}, {transform_indices = @transform_6, window_bounds = array<i64: 8, 128>}, {transform_indices = @transform_7, window_bounds = array<i64: 1, 8, 128>}]} {
    %c0 = arith.constant 0 : index
    %c1 = arith.constant 1 : index
    %c0_0 = arith.constant 0 : index
    %0 = vector.load %arg2[%c0, %c1, %c0_0] : memref<1x8x48xf32, #tpu.memory_space<vmem>>, vector<1x7x24xf32>
    %1 = vector.shape_cast %0 : vector<1x7x24xf32> to vector<7x24xf32>
    %c0_1 = arith.constant 0 : index
    %c0_2 = arith.constant 0 : index
    %2 = vector.load %arg10[%c0_1, %c0_2] : memref<8x24xf32, #tpu.memory_space<vmem>>, vector<7x24xf32>
    tpu.vector_store %arg10[%c0_1, %c0_2], %1 {strides = array<i32>} : memref<8x24xf32, #tpu.memory_space<vmem>>, vector<7x24xf32>,
    %c0_3 = arith.constant 0 : index
    %c0_4 = arith.constant 0 : index
    %c0_5 = arith.constant 0 : index
    %c0_6 = arith.constant 0 : index
    %3 = vector.load %arg3[%c0_3, %c0_4, %c0_5, %c0_6] : memref<1x1x1x24xf32, #tpu.memory_space<vmem>>, vector<1x1x1x24xf32>
    %4 = vector.shape_cast %3 : vector<1x1x1x24xf32> to vector<1x24xf32>
    %c7 = arith.constant 7 : index
    %c0_7 = arith.constant 0 : index
    %5 = vector.load %arg10[%c7, %c0_7] : memref<8x24xf32, #tpu.memory_space<vmem>>, vector<1x24xf32>
    tpu.vector_store %arg10[%c7, %c0_7], %4 {strides = array<i32>} : memref<8x24xf32, #tpu.memory_space<vmem>>, vector<1x24xf32>,
    %c0_8 = arith.constant 0 : index
    %c0_9 = arith.constant 0 : index
    %6 = vector.load %arg4[%c0_8, %c0_9] : memref<27x128xf32, #tpu.memory_space<vmem>>, vector<27x128xf32>
    %c0_10 = arith.constant 0 : index
    %c0_11 = arith.constant 0 : index
    %7 = vector.load %arg5[%c0_10, %c0_11] : memref<1x128xf32, #tpu.memory_space<vmem>>, vector<1x128xf32>
    %c0_12 = arith.constant 0 : index
    %c0_13 = arith.constant 0 : index
    %c0_14 = arith.constant 0 : index
    %8 = vector.load %arg2[%c0_12, %c0_13, %c0_14] : memref<1x8x48xf32, #tpu.memory_space<vmem>>, vector<1x8x3xf32>
    %9 = vector.shape_cast %8 : vector<1x8x3xf32> to vector<8x3xf32>
    %c0_15 = arith.constant 0 : index
    %c0_16 = arith.constant 0 : index
    %10 = vector.load %arg11[%c0_15, %c0_16] : memref<8x27xf32, #tpu.memory_space<vmem>>, vector<8x3xf32>
    tpu.vector_store %arg11[%c0_15, %c0_16], %9 {strides = array<i32>} : memref<8x27xf32, #tpu.memory_space<vmem>>, vector<8x3xf32>,
    %c0_17 = arith.constant 0 : index
    %c0_18 = arith.constant 0 : index
    %c24 = arith.constant 24 : index
    %11 = vector.load %arg2[%c0_17, %c0_18, %c24] : memref<1x8x48xf32, #tpu.memory_space<vmem>>, vector<1x8x3xf32>
    %12 = vector.shape_cast %11 : vector<1x8x3xf32> to vector<8x3xf32>
    %c0_19 = arith.constant 0 : index
    %c9 = arith.constant 9 : index
    %13 = vector.load %arg11[%c0_19, %c9] : memref<8x27xf32, #tpu.memory_space<vmem>>, vector<8x3xf32>
    tpu.vector_store %arg11[%c0_19, %c9], %12 {strides = array<i32>} : memref<8x27xf32, #tpu.memory_space<vmem>>, vector<8x3xf32>,
    %c0_20 = arith.constant 0 : index
    %c0_21 = arith.constant 0 : index
    %14 = vector.load %arg10[%c0_20, %c0_21] : memref<8x24xf32, #tpu.memory_space<vmem>>, vector<8x3xf32>
    %c0_22 = arith.constant 0 : index
    %c18 = arith.constant 18 : index
    %15 = vector.load %arg11[%c0_22, %c18] : memref<8x27xf32, #tpu.memory_space<vmem>>, vector<8x3xf32>
    tpu.vector_store %arg11[%c0_22, %c18], %14 {strides = array<i32>} : memref<8x27xf32, #tpu.memory_space<vmem>>, vector<8x3xf32>,
    %c0_23 = arith.constant 0 : index
    %c0_24 = arith.constant 0 : index
    %c8 = arith.constant 8 : index
    %16 = vector.load %arg2[%c0_23, %c0_24, %c8] : memref<1x8x48xf32, #tpu.memory_space<vmem>>, vector<1x8x3xf32>
    %17 = vector.shape_cast %16 : vector<1x8x3xf32> to vector<8x3xf32>
    %c0_25 = arith.constant 0 : index
    %c3 = arith.constant 3 : index
    %18 = vector.load %arg11[%c0_25, %c3] : memref<8x27xf32, #tpu.memory_space<vmem>>, vector<8x3xf32>
    tpu.vector_store %arg11[%c0_25, %c3], %17 {strides = array<i32>} : memref<8x27xf32, #tpu.memory_space<vmem>>, vector<8x3xf32>,
    %c0_26 = arith.constant 0 : index
    %c0_27 = arith.constant 0 : index
    %c32 = arith.constant 32 : index
    %19 = vector.load %arg2[%c0_26, %c0_27, %c32] : memref<1x8x48xf32, #tpu.memory_space<vmem>>, vector<1x8x3xf32>
    %20 = vector.shape_cast %19 : vector<1x8x3xf32> to vector<8x3xf32>
    %c0_28 = arith.constant 0 : index
    %c12 = arith.constant 12 : index
    %21 = vector.load %arg11[%c0_28, %c12] : memref<8x27xf32, #tpu.memory_space<vmem>>, vector<8x3xf32>
    tpu.vector_store %arg11[%c0_28, %c12], %20 {strides = array<i32>} : memref<8x27xf32, #tpu.memory_space<vmem>>, vector<8x3xf32>,
    %c0_29 = arith.constant 0 : index
    %c8_30 = arith.constant 8 : index
    %22 = vector.load %arg10[%c0_29, %c8_30] : memref<8x24xf32, #tpu.memory_space<vmem>>, vector<8x3xf32>
    %c0_31 = arith.constant 0 : index
    %c21 = arith.constant 21 : index
    %23 = vector.load %arg11[%c0_31, %c21] : memref<8x27xf32, #tpu.memory_space<vmem>>, vector<8x3xf32>
    tpu.vector_store %arg11[%c0_31, %c21], %22 {strides = array<i32>} : memref<8x27xf32, #tpu.memory_space<vmem>>, vector<8x3xf32>,
    %c0_32 = arith.constant 0 : index
    %c0_33 = arith.constant 0 : index
    %c16 = arith.constant 16 : index
    %24 = vector.load %arg2[%c0_32, %c0_33, %c16] : memref<1x8x48xf32, #tpu.memory_space<vmem>>, vector<1x8x3xf32>
    %25 = vector.shape_cast %24 : vector<1x8x3xf32> to vector<8x3xf32>
    %c0_34 = arith.constant 0 : index
    %c6 = arith.constant 6 : index
    %26 = vector.load %arg11[%c0_34, %c6] : memref<8x27xf32, #tpu.memory_space<vmem>>, vector<8x3xf32>
    tpu.vector_store %arg11[%c0_34, %c6], %25 {strides = array<i32>} : memref<8x27xf32, #tpu.memory_space<vmem>>, vector<8x3xf32>,
    %c0_35 = arith.constant 0 : index
    %c0_36 = arith.constant 0 : index
    %c40 = arith.constant 40 : index
    %27 = vector.load %arg2[%c0_35, %c0_36, %c40] : memref<1x8x48xf32, #tpu.memory_space<vmem>>, vector<1x8x3xf32>
    %28 = vector.shape_cast %27 : vector<1x8x3xf32> to vector<8x3xf32>
    %c0_37 = arith.constant 0 : index
    %c15 = arith.constant 15 : index
    %29 = vector.load %arg11[%c0_37, %c15] : memref<8x27xf32, #tpu.memory_space<vmem>>, vector<8x3xf32>
    tpu.vector_store %arg11[%c0_37, %c15], %28 {strides = array<i32>} : memref<8x27xf32, #tpu.memory_space<vmem>>, vector<8x3xf32>,
    %c0_38 = arith.constant 0 : index
    %c16_39 = arith.constant 16 : index
    %30 = vector.load %arg10[%c0_38, %c16_39] : memref<8x24xf32, #tpu.memory_space<vmem>>, vector<8x3xf32>
    %c0_40 = arith.constant 0 : index
    %c24_41 = arith.constant 24 : index
    %31 = vector.load %arg11[%c0_40, %c24_41] : memref<8x27xf32, #tpu.memory_space<vmem>>, vector<8x3xf32>
    tpu.vector_store %arg11[%c0_40, %c24_41], %30 {strides = array<i32>} : memref<8x27xf32, #tpu.memory_space<vmem>>, vector<8x3xf32>,
    %c0_42 = arith.constant 0 : index
    %c0_43 = arith.constant 0 : index
    %32 = vector.load %arg11[%c0_42, %c0_43] : memref<8x27xf32, #tpu.memory_space<vmem>>, vector<8x27xf32>
    %cst = arith.constant dense<0.000000e+00> : vector<8x128xf32>
    %33 = tpu.matmul %32, %6, %cst {dimension_numbers = #tpu.dot_dimension_numbers<[1], [0], [0], [1], [0, 0, 1, 1], [], []>} : vector<8x27xf32>, vector<27x128xf32>, vector<8x128xf32> -> vector<8x128xf32>
    %34 = vector.broadcast %7 : vector<1x128xf32> to vector<8x128xf32>
    %35 = arith.addf %33, %34 : vector<8x128xf32>
    %cst_44 = arith.constant 0.000000e+00 : f32
    %36 = vector.broadcast %cst_44 : f32 to vector<8x128xf32>
    %37 = arith.maximumf %35, %36 : vector<8x128xf32>
    %38 = arith.truncf %37 : vector<8x128xf32> to vector<8x128xbf16>
    %c0_45 = arith.constant 0 : index
    %c0_46 = arith.constant 0 : index
    %39 = vector.load %arg12[%c0_45, %c0_46] : memref<8x384xbf16, #tpu.memory_space<vmem>>, vector<8x128xbf16>
    tpu.vector_store %arg12[%c0_45, %c0_46], %38 {strides = array<i32>} : memref<8x384xbf16, #tpu.memory_space<vmem>>, vector<8x128xbf16>,
    %c0_47 = arith.constant 0 : index
    %c0_48 = arith.constant 0 : index
    %c2 = arith.constant 2 : index
    %40 = vector.load %arg2[%c0_47, %c0_48, %c2] : memref<1x8x48xf32, #tpu.memory_space<vmem>>, vector<1x8x3xf32>
    %41 = vector.shape_cast %40 : vector<1x8x3xf32> to vector<8x3xf32>
    %c0_49 = arith.constant 0 : index
    %c0_50 = arith.constant 0 : index
    %42 = vector.load %arg11[%c0_49, %c0_50] : memref<8x27xf32, #tpu.memory_space<vmem>>, vector<8x3xf32>
    tpu.vector_store %arg11[%c0_49, %c0_50], %41 {strides = array<i32>} : memref<8x27xf32, #tpu.memory_space<vmem>>, vector<8x3xf32>,
    %c0_51 = arith.constant 0 : index
    %c0_52 = arith.constant 0 : index
    %c26 = arith.constant 26 : index
    %43 = vector.load %arg2[%c0_51, %c0_52, %c26] : memref<1x8x48xf32, #tpu.memory_space<vmem>>, vector<1x8x3xf32>
    %44 = vector.shape_cast %43 : vector<1x8x3xf32> to vector<8x3xf32>
    %c0_53 = arith.constant 0 : index
    %c9_54 = arith.constant 9 : index
    %45 = vector.load %arg11[%c0_53, %c9_54] : memref<8x27xf32, #tpu.memory_space<vmem>>, vector<8x3xf32>
    tpu.vector_store %arg11[%c0_53, %c9_54], %44 {strides = array<i32>} : memref<8x27xf32, #tpu.memory_space<vmem>>, vector<8x3xf32>,
    %c0_55 = arith.constant 0 : index
    %c2_56 = arith.constant 2 : index
    %46 = vector.load %arg10[%c0_55, %c2_56] : memref<8x24xf32, #tpu.memory_space<vmem>>, vector<8x3xf32>
    %c0_57 = arith.constant 0 : index
    %c18_58 = arith.constant 18 : index
    %47 = vector.load %arg11[%c0_57, %c18_58] : memref<8x27xf32, #tpu.memory_space<vmem>>, vector<8x3xf32>
    tpu.vector_store %arg11[%c0_57, %c18_58], %46 {strides = array<i32>} : memref<8x27xf32, #tpu.memory_space<vmem>>, vector<8x3xf32>,
    %c0_59 = arith.constant 0 : index
    %c0_60 = arith.constant 0 : index
    %c10 = arith.constant 10 : index
    %48 = vector.load %arg2[%c0_59, %c0_60, %c10] : memref<1x8x48xf32, #tpu.memory_space<vmem>>, vector<1x8x3xf32>
    %49 = vector.shape_cast %48 : vector<1x8x3xf32> to vector<8x3xf32>
    %c0_61 = arith.constant 0 : index
    %c3_62 = arith.constant 3 : index
    %50 = vector.load %arg11[%c0_61, %c3_62] : memref<8x27xf32, #tpu.memory_space<vmem>>, vector<8x3xf32>
    tpu.vector_store %arg11[%c0_61, %c3_62], %49 {strides = array<i32>} : memref<8x27xf32, #tpu.memory_space<vmem>>, vector<8x3xf32>,
    %c0_63 = arith.constant 0 : index
    %c0_64 = arith.constant 0 : index
    %c34 = arith.constant 34 : index
    %51 = vector.load %arg2[%c0_63, %c0_64, %c34] : memref<1x8x48xf32, #tpu.memory_space<vmem>>, vector<1x8x3xf32>
    %52 = vector.shape_cast %51 : vector<1x8x3xf32> to vector<8x3xf32>
    %c0_65 = arith.constant 0 : index
    %c12_66 = arith.constant 12 : index
    %53 = vector.load %arg11[%c0_65, %c12_66] : memref<8x27xf32, #tpu.memory_space<vmem>>, vector<8x3xf32>
    tpu.vector_store %arg11[%c0_65, %c12_66], %52 {strides = array<i32>} : memref<8x27xf32, #tpu.memory_space<vmem>>, vector<8x3xf32>,
    %c0_67 = arith.constant 0 : index
    %c10_68 = arith.constant 10 : index
    %54 = vector.load %arg10[%c0_67, %c10_68] : memref<8x24xf32, #tpu.memory_space<vmem>>, vector<8x3xf32>
    %c0_69 = arith.constant 0 : index
    %c21_70 = arith.constant 21 : index
    %55 = vector.load %arg11[%c0_69, %c21_70] : memref<8x27xf32, #tpu.memory_space<vmem>>, vector<8x3xf32>
    tpu.vector_store %arg11[%c0_69, %c21_70], %54 {strides = array<i32>} : memref<8x27xf32, #tpu.memory_space<vmem>>, vector<8x3xf32>,
    %c0_71 = arith.constant 0 : index
    %c0_72 = arith.constant 0 : index
    %c18_73 = arith.constant 18 : index
    %56 = vector.load %arg2[%c0_71, %c0_72, %c18_73] : memref<1x8x48xf32, #tpu.memory_space<vmem>>, vector<1x8x3xf32>
    %57 = vector.shape_cast %56 : vector<1x8x3xf32> to vector<8x3xf32>
    %c0_74 = arith.constant 0 : index
    %c6_75 = arith.constant 6 : index
    %58 = vector.load %arg11[%c0_74, %c6_75] : memref<8x27xf32, #tpu.memory_space<vmem>>, vector<8x3xf32>
    tpu.vector_store %arg11[%c0_74, %c6_75], %57 {strides = array<i32>} : memref<8x27xf32, #tpu.memory_space<vmem>>, vector<8x3xf32>,
    %c0_76 = arith.constant 0 : index
    %c0_77 = arith.constant 0 : index
    %c42 = arith.constant 42 : index
    %59 = vector.load %arg2[%c0_76, %c0_77, %c42] : memref<1x8x48xf32, #tpu.memory_space<vmem>>, vector<1x8x3xf32>
    %60 = vector.shape_cast %59 : vector<1x8x3xf32> to vector<8x3xf32>
    %c0_78 = arith.constant 0 : index
    %c15_79 = arith.constant 15 : index
    %61 = vector.load %arg11[%c0_78, %c15_79] : memref<8x27xf32, #tpu.memory_space<vmem>>, vector<8x3xf32>
    tpu.vector_store %arg11[%c0_78, %c15_79], %60 {strides = array<i32>} : memref<8x27xf32, #tpu.memory_space<vmem>>, vector<8x3xf32>,
    %c0_80 = arith.constant 0 : index
    %c18_81 = arith.constant 18 : index
    %62 = vector.load %arg10[%c0_80, %c18_81] : memref<8x24xf32, #tpu.memory_space<vmem>>, vector<8x3xf32>
    %c0_82 = arith.constant 0 : index
    %c24_83 = arith.constant 24 : index
    %63 = vector.load %arg11[%c0_82, %c24_83] : memref<8x27xf32, #tpu.memory_space<vmem>>, vector<8x3xf32>
    tpu.vector_store %arg11[%c0_82, %c24_83], %62 {strides = array<i32>} : memref<8x27xf32, #tpu.memory_space<vmem>>, vector<8x3xf32>,
    %c0_84 = arith.constant 0 : index
    %c0_85 = arith.constant 0 : index
    %64 = vector.load %arg11[%c0_84, %c0_85] : memref<8x27xf32, #tpu.memory_space<vmem>>, vector<8x27xf32>
    %cst_86 = arith.constant dense<0.000000e+00> : vector<8x128xf32>
    %65 = tpu.matmul %64, %6, %cst_86 {dimension_numbers = #tpu.dot_dimension_numbers<[1], [0], [0], [1], [0, 0, 1, 1], [], []>} : vector<8x27xf32>, vector<27x128xf32>, vector<8x128xf32> -> vector<8x128xf32>
    %66 = vector.broadcast %7 : vector<1x128xf32> to vector<8x128xf32>
    %67 = arith.addf %65, %66 : vector<8x128xf32>
    %cst_87 = arith.constant 0.000000e+00 : f32
    %68 = vector.broadcast %cst_87 : f32 to vector<8x128xf32>
    %69 = arith.maximumf %67, %68 : vector<8x128xf32>
    %70 = arith.truncf %69 : vector<8x128xf32> to vector<8x128xbf16>
    %c0_88 = arith.constant 0 : index
    %c128 = arith.constant 128 : index
    %71 = vector.load %arg12[%c0_88, %c128] : memref<8x384xbf16, #tpu.memory_space<vmem>>, vector<8x128xbf16>
    tpu.vector_store %arg12[%c0_88, %c128], %70 {strides = array<i32>} : memref<8x384xbf16, #tpu.memory_space<vmem>>, vector<8x128xbf16>,
    %c0_89 = arith.constant 0 : index
    %c0_90 = arith.constant 0 : index
    %c4 = arith.constant 4 : index
    %72 = vector.load %arg2[%c0_89, %c0_90, %c4] : memref<1x8x48xf32, #tpu.memory_space<vmem>>, vector<1x8x3xf32>
    %73 = vector.shape_cast %72 : vector<1x8x3xf32> to vector<8x3xf32>
    %c0_91 = arith.constant 0 : index
    %c0_92 = arith.constant 0 : index
    %74 = vector.load %arg11[%c0_91, %c0_92] : memref<8x27xf32, #tpu.memory_space<vmem>>, vector<8x3xf32>
    tpu.vector_store %arg11[%c0_91, %c0_92], %73 {strides = array<i32>} : memref<8x27xf32, #tpu.memory_space<vmem>>, vector<8x3xf32>,
    %c0_93 = arith.constant 0 : index
    %c0_94 = arith.constant 0 : index
    %c28 = arith.constant 28 : index
    %75 = vector.load %arg2[%c0_93, %c0_94, %c28] : memref<1x8x48xf32, #tpu.memory_space<vmem>>, vector<1x8x3xf32>
    %76 = vector.shape_cast %75 : vector<1x8x3xf32> to vector<8x3xf32>
    %c0_95 = arith.constant 0 : index
    %c9_96 = arith.constant 9 : index
    %77 = vector.load %arg11[%c0_95, %c9_96] : memref<8x27xf32, #tpu.memory_space<vmem>>, vector<8x3xf32>
    tpu.vector_store %arg11[%c0_95, %c9_96], %76 {strides = array<i32>} : memref<8x27xf32, #tpu.memory_space<vmem>>, vector<8x3xf32>,
    %c0_97 = arith.constant 0 : index
    %c4_98 = arith.constant 4 : index
    %78 = vector.load %arg10[%c0_97, %c4_98] : memref<8x24xf32, #tpu.memory_space<vmem>>, vector<8x3xf32>
    %c0_99 = arith.constant 0 : index
    %c18_100 = arith.constant 18 : index
    %79 = vector.load %arg11[%c0_99, %c18_100] : memref<8x27xf32, #tpu.memory_space<vmem>>, vector<8x3xf32>
    tpu.vector_store %arg11[%c0_99, %c18_100], %78 {strides = array<i32>} : memref<8x27xf32, #tpu.memory_space<vmem>>, vector<8x3xf32>,
    %c0_101 = arith.constant 0 : index
    %c0_102 = arith.constant 0 : index
    %c12_103 = arith.constant 12 : index
    %80 = vector.load %arg2[%c0_101, %c0_102, %c12_103] : memref<1x8x48xf32, #tpu.memory_space<vmem>>, vector<1x8x3xf32>
    %81 = vector.shape_cast %80 : vector<1x8x3xf32> to vector<8x3xf32>
    %c0_104 = arith.constant 0 : index
    %c3_105 = arith.constant 3 : index
    %82 = vector.load %arg11[%c0_104, %c3_105] : memref<8x27xf32, #tpu.memory_space<vmem>>, vector<8x3xf32>
    tpu.vector_store %arg11[%c0_104, %c3_105], %81 {strides = array<i32>} : memref<8x27xf32, #tpu.memory_space<vmem>>, vector<8x3xf32>,
    %c0_106 = arith.constant 0 : index
    %c0_107 = arith.constant 0 : index
    %c36 = arith.constant 36 : index
    %83 = vector.load %arg2[%c0_106, %c0_107, %c36] : memref<1x8x48xf32, #tpu.memory_space<vmem>>, vector<1x8x3xf32>
    %84 = vector.shape_cast %83 : vector<1x8x3xf32> to vector<8x3xf32>
    %c0_108 = arith.constant 0 : index
    %c12_109 = arith.constant 12 : index
    %85 = vector.load %arg11[%c0_108, %c12_109] : memref<8x27xf32, #tpu.memory_space<vmem>>, vector<8x3xf32>
    tpu.vector_store %arg11[%c0_108, %c12_109], %84 {strides = array<i32>} : memref<8x27xf32, #tpu.memory_space<vmem>>, vector<8x3xf32>,
    %c0_110 = arith.constant 0 : index
    %c12_111 = arith.constant 12 : index
    %86 = vector.load %arg10[%c0_110, %c12_111] : memref<8x24xf32, #tpu.memory_space<vmem>>, vector<8x3xf32>
    %c0_112 = arith.constant 0 : index
    %c21_113 = arith.constant 21 : index
    %87 = vector.load %arg11[%c0_112, %c21_113] : memref<8x27xf32, #tpu.memory_space<vmem>>, vector<8x3xf32>
    tpu.vector_store %arg11[%c0_112, %c21_113], %86 {strides = array<i32>} : memref<8x27xf32, #tpu.memory_space<vmem>>, vector<8x3xf32>,
    %c0_114 = arith.constant 0 : index
    %c0_115 = arith.constant 0 : index
    %c20 = arith.constant 20 : index
    %88 = vector.load %arg2[%c0_114, %c0_115, %c20] : memref<1x8x48xf32, #tpu.memory_space<vmem>>, vector<1x8x3xf32>
    %89 = vector.shape_cast %88 : vector<1x8x3xf32> to vector<8x3xf32>
    %c0_116 = arith.constant 0 : index
    %c6_117 = arith.constant 6 : index
    %90 = vector.load %arg11[%c0_116, %c6_117] : memref<8x27xf32, #tpu.memory_space<vmem>>, vector<8x3xf32>
    tpu.vector_store %arg11[%c0_116, %c6_117], %89 {strides = array<i32>} : memref<8x27xf32, #tpu.memory_space<vmem>>, vector<8x3xf32>,
    %c0_118 = arith.constant 0 : index
    %c0_119 = arith.constant 0 : index
    %c44 = arith.constant 44 : index
    %91 = vector.load %arg2[%c0_118, %c0_119, %c44] : memref<1x8x48xf32, #tpu.memory_space<vmem>>, vector<1x8x3xf32>
    %92 = vector.shape_cast %91 : vector<1x8x3xf32> to vector<8x3xf32>
    %c0_120 = arith.constant 0 : index
    %c15_121 = arith.constant 15 : index
    %93 = vector.load %arg11[%c0_120, %c15_121] : memref<8x27xf32, #tpu.memory_space<vmem>>, vector<8x3xf32>
    tpu.vector_store %arg11[%c0_120, %c15_121], %92 {strides = array<i32>} : memref<8x27xf32, #tpu.memory_space<vmem>>, vector<8x3xf32>,
    %c0_122 = arith.constant 0 : index
    %c20_123 = arith.constant 20 : index
    %94 = vector.load %arg10[%c0_122, %c20_123] : memref<8x24xf32, #tpu.memory_space<vmem>>, vector<8x3xf32>
    %c0_124 = arith.constant 0 : index
    %c24_125 = arith.constant 24 : index
    %95 = vector.load %arg11[%c0_124, %c24_125] : memref<8x27xf32, #tpu.memory_space<vmem>>, vector<8x3xf32>
    tpu.vector_store %arg11[%c0_124, %c24_125], %94 {strides = array<i32>} : memref<8x27xf32, #tpu.memory_space<vmem>>, vector<8x3xf32>,
    %c0_126 = arith.constant 0 : index
    %c0_127 = arith.constant 0 : index
    %96 = vector.load %arg11[%c0_126, %c0_127] : memref<8x27xf32, #tpu.memory_space<vmem>>, vector<8x27xf32>
    %cst_128 = arith.constant dense<0.000000e+00> : vector<8x128xf32>
    %97 = tpu.matmul %96, %6, %cst_128 {dimension_numbers = #tpu.dot_dimension_numbers<[1], [0], [0], [1], [0, 0, 1, 1], [], []>} : vector<8x27xf32>, vector<27x128xf32>, vector<8x128xf32> -> vector<8x128xf32>
    %98 = vector.broadcast %7 : vector<1x128xf32> to vector<8x128xf32>
    %99 = arith.addf %97, %98 : vector<8x128xf32>
    %cst_129 = arith.constant 0.000000e+00 : f32
    %100 = vector.broadcast %cst_129 : f32 to vector<8x128xf32>
    %101 = arith.maximumf %99, %100 : vector<8x128xf32>
    %102 = arith.truncf %101 : vector<8x128xf32> to vector<8x128xbf16>
    %c0_130 = arith.constant 0 : index
    %c256 = arith.constant 256 : index
    %103 = vector.load %arg12[%c0_130, %c256] : memref<8x384xbf16, #tpu.memory_space<vmem>>, vector<8x128xbf16>
    tpu.vector_store %arg12[%c0_130, %c256], %102 {strides = array<i32>} : memref<8x384xbf16, #tpu.memory_space<vmem>>, vector<8x128xbf16>,
    %c0_131 = arith.constant 0 : index
    %c0_132 = arith.constant 0 : index
    %104 = vector.load %arg12[%c0_131, %c0_132] : memref<8x384xbf16, #tpu.memory_space<vmem>>, vector<8x384xbf16>
    %c0_133 = arith.constant 0 : index
    %c0_134 = arith.constant 0 : index
    %105 = vector.load %arg6[%c0_133, %c0_134] : memref<384x128xbf16, #tpu.memory_space<vmem>>, vector<384x128xbf16>
    %cst_135 = arith.constant dense<0.000000e+00> : vector<8x128xf32>
    %106 = tpu.matmul %104, %105, %cst_135 {dimension_numbers = #tpu.dot_dimension_numbers<[1], [0], [0], [1], [0, 0, 1, 1], [], []>} : vector<8x384xbf16>, vector<384x128xbf16>, vector<8x128xf32> -> vector<8x128xf32>
    %c0_136 = arith.constant 0 : index
    %c0_137 = arith.constant 0 : index
    %107 = vector.load %arg7[%c0_136, %c0_137] : memref<1x128xf32, #tpu.memory_space<vmem>>, vector<1x128xf32>
    %108 = vector.broadcast %107 : vector<1x128xf32> to vector<8x128xf32>
    %109 = arith.addf %106, %108 : vector<8x128xf32>
    %cst_138 = arith.constant 11.3137083 : f32
    %110 = vector.broadcast %cst_138 : f32 to vector<8x128xf32>
    %111 = arith.mulf %109, %110 : vector<8x128xf32>
    %c0_139 = arith.constant 0 : index
    %c0_140 = arith.constant 0 : index
    %112 = vector.load %arg8[%c0_139, %c0_140] : memref<8x128xf32, #tpu.memory_space<vmem>>, vector<8x128xf32>
    %113 = arith.addf %111, %112 : vector<8x128xf32>
    %c0_141 = arith.constant 0 : index
    %c0_142 = arith.constant 0 : index
    %c0_143 = arith.constant 0 : index
    %114 = vector.load %arg9[%c0_141, %c0_142, %c0_143] : memref<1x8x128xf32, #tpu.memory_space<vmem>>, vector<1x8x128xf32>
    %115 = vector.shape_cast %114 : vector<1x8x128xf32> to vector<8x128xf32>
    %116 = vector.shape_cast %113 : vector<8x128xf32> to vector<1x8x128xf32>
    tpu.vector_store %arg9[%c0_141, %c0_142, %c0_143], %116 {strides = array<i32>} : memref<1x8x128xf32, #tpu.memory_space<vmem>>, vector<1x8x128xf32>,
    return
  }
  func.func @transform_0(%arg0: i32, %arg1: i32) -> (i32, i32, i32) {
    %c0_i32 = arith.constant 0 : i32
    %c0_i32_0 = arith.constant 0 : i32
    return %arg0, %arg1, %c0_i32 : i32, i32, i32
  }
  func.func @transform_1(%arg0: i32, %arg1: i32) -> (i32, i32, i32, i32) {
    %c0_i32 = arith.constant 0 : i32
    %c0_i32_0 = arith.constant 0 : i32
    %c0_i32_1 = arith.constant 0 : i32
    return %arg0, %arg1, %c0_i32, %c0_i32_0 : i32, i32, i32, i32
  }
  func.func @transform_2(%arg0: i32, %arg1: i32) -> (i32, i32) {
    %c0_i32 = arith.constant 0 : i32
    %c0_i32_0 = arith.constant 0 : i32
    %c0_i32_1 = arith.constant 0 : i32
    return %c0_i32, %c0_i32_0 : i32, i32
  }
  func.func @transform_3(%arg0: i32, %arg1: i32) -> (i32, i32) {
    %c0_i32 = arith.constant 0 : i32
    %c0_i32_0 = arith.constant 0 : i32
    %c0_i32_1 = arith.constant 0 : i32
    return %c0_i32, %c0_i32_0 : i32, i32
  }
  func.func @transform_4(%arg0: i32, %arg1: i32) -> (i32, i32) {
    %c0_i32 = arith.constant 0 : i32
    %c0_i32_0 = arith.constant 0 : i32
    %c0_i32_1 = arith.constant 0 : i32
    return %c0_i32, %c0_i32_0 : i32, i32
  }
  func.func @transform_5(%arg0: i32, %arg1: i32) -> (i32, i32) {
    %c0_i32 = arith.constant 0 : i32
    %c0_i32_0 = arith.constant 0 : i32
    %c0_i32_1 = arith.constant 0 : i32
    return %c0_i32, %c0_i32_0 : i32, i32
  }
  func.func @transform_6(%arg0: i32, %arg1: i32) -> (i32, i32) {
    %c0_i32 = arith.constant 0 : i32
    %c0_i32_0 = arith.constant 0 : i32
    return %arg1, %c0_i32 : i32, i32
  }
  func.func @transform_7(%arg0: i32, %arg1: i32) -> (i32, i32, i32) {
    %c0_i32 = arith.constant 0 : i32
    %c0_i32_0 = arith.constant 0 : i32
    return %arg0, %arg1, %c0_i32 : i32, i32, i32
  }
}

module attributes {stable_mosaic.version = 11 : i64} {
  func.func @fused_subsample_kernel(%arg0: i32, %arg1: i32, %arg2: memref<1x8x48xf32, #tpu.memory_space<vmem>>, %arg3: memref<1x1x1x24xf32, #tpu.memory_space<vmem>>, %arg4: memref<27x128xf32, #tpu.memory_space<vmem>>, %arg5: memref<1x128xf32, #tpu.memory_space<vmem>>, %arg6: memref<384x128xbf16, #tpu.memory_space<vmem>>, %arg7: memref<1x128xf32, #tpu.memory_space<vmem>>, %arg8: memref<8x128xf32, #tpu.memory_space<vmem>>, %arg9: memref<1x8x128xf32, #tpu.memory_space<vmem>>, %arg10: memref<8x24xf32, #tpu.memory_space<vmem>>, %arg11: memref<8x27xf32, #tpu.memory_space<vmem>>, %arg12: memref<8x384xbf16, #tpu.memory_space<vmem>>) attributes {dimension_semantics = [#tpu.dimension_semantics<parallel>, #tpu.dimension_semantics<parallel>], iteration_bounds = array<i64: 2, 1>, scalar_prefetch = 0 : i64, scratch_operands = 3 : i64, tpu.core_type = #tpu.core_type<tc>, window_params = [{transform_indices = @transform_0, window_bounds = array<i64: 1, 8, 48>}, {transform_indices = @transform_1, window_bounds = array<i64: 1, 1, 1, 24>}, {pipeline_mode = #tpu.pipeline_mode<synchronous>, transform_indices = @transform_2, window_bounds = array<i64: 27, 128>}, {pipeline_mode = #tpu.pipeline_mode<synchronous>, transform_indices = @transform_3, window_bounds = array<i64: 1, 128>}, {pipeline_mode = #tpu.pipeline_mode<synchronous>, transform_indices = @transform_4, window_bounds = array<i64: 384, 128>}, {pipeline_mode = #tpu.pipeline_mode<synchronous>, transform_indices = @transform_5, window_bounds = array<i64: 1, 128>}, {transform_indices = @transform_6, window_bounds = array<i64: 8, 128>}, {transform_indices = @transform_7, window_bounds = array<i64: 1, 8, 128>}]} {
    %c0 = arith.constant 0 : index
    %c1 = arith.constant 1 : index
    %c0_0 = arith.constant 0 : index
    %0 = vector.load %arg2[%c0, %c1, %c0_0] : memref<1x8x48xf32, #tpu.memory_space<vmem>>, vector<1x7x24xf32>
    %1 = vector.shape_cast %0 : vector<1x7x24xf32> to vector<7x24xf32>
    %c0_1 = arith.constant 0 : index
    %c0_2 = arith.constant 0 : index
    %2 = vector.load %arg10[%c0_1, %c0_2] : memref<8x24xf32, #tpu.memory_space<vmem>>, vector<7x24xf32>
    tpu.vector_store %arg10[%c0_1, %c0_2], %1 {strides = array<i32>} : memref<8x24xf32, #tpu.memory_space<vmem>>, vector<7x24xf32>,
    %c0_3 = arith.constant 0 : index
    %c0_4 = arith.constant 0 : index
    %c0_5 = arith.constant 0 : index
    %c0_6 = arith.constant 0 : index
    %3 = vector.load %arg3[%c0_3, %c0_4, %c0_5, %c0_6] : memref<1x1x1x24xf32, #tpu.memory_space<vmem>>, vector<1x1x1x24xf32>
    %4 = vector.shape_cast %3 : vector<1x1x1x24xf32> to vector<1x24xf32>
    %c7 = arith.constant 7 : index
    %c0_7 = arith.constant 0 : index
    %5 = vector.load %arg10[%c7, %c0_7] : memref<8x24xf32, #tpu.memory_space<vmem>>, vector<1x24xf32>
    tpu.vector_store %arg10[%c7, %c0_7], %4 {strides = array<i32>} : memref<8x24xf32, #tpu.memory_space<vmem>>, vector<1x24xf32>,
    %c0_8 = arith.constant 0 : index
    %c0_9 = arith.constant 0 : index
    %6 = vector.load %arg4[%c0_8, %c0_9] : memref<27x128xf32, #tpu.memory_space<vmem>>, vector<27x128xf32>
    %c0_10 = arith.constant 0 : index
    %c0_11 = arith.constant 0 : index
    %7 = vector.load %arg5[%c0_10, %c0_11] : memref<1x128xf32, #tpu.memory_space<vmem>>, vector<1x128xf32>
    %c0_12 = arith.constant 0 : index
    %c0_13 = arith.constant 0 : index
    %c0_14 = arith.constant 0 : index
    %8 = vector.load %arg2[%c0_12, %c0_13, %c0_14] : memref<1x8x48xf32, #tpu.memory_space<vmem>>, vector<1x8x3xf32>
    %9 = vector.shape_cast %8 : vector<1x8x3xf32> to vector<8x3xf32>
    %c0_15 = arith.constant 0 : index
    %c0_16 = arith.constant 0 : index
    %10 = vector.load %arg11[%c0_15, %c0_16] : memref<8x27xf32, #tpu.memory_space<vmem>>, vector<8x3xf32>
    tpu.vector_store %arg11[%c0_15, %c0_16], %9 {strides = array<i32>} : memref<8x27xf32, #tpu.memory_space<vmem>>, vector<8x3xf32>,
    %c0_17 = arith.constant 0 : index
    %c0_18 = arith.constant 0 : index
    %c24 = arith.constant 24 : index
    %11 = vector.load %arg2[%c0_17, %c0_18, %c24] : memref<1x8x48xf32, #tpu.memory_space<vmem>>, vector<1x8x3xf32>
    %12 = vector.shape_cast %11 : vector<1x8x3xf32> to vector<8x3xf32>
    %c0_19 = arith.constant 0 : index
    %c9 = arith.constant 9 : index
    %13 = vector.load %arg11[%c0_19, %c9] : memref<8x27xf32, #tpu.memory_space<vmem>>, vector<8x3xf32>
    tpu.vector_store %arg11[%c0_19, %c9], %12 {strides = array<i32>} : memref<8x27xf32, #tpu.memory_space<vmem>>, vector<8x3xf32>,
    %c0_20 = arith.constant 0 : index
    %c0_21 = arith.constant 0 : index
    %14 = vector.load %arg10[%c0_20, %c0_21] : memref<8x24xf32, #tpu.memory_space<vmem>>, vector<8x3xf32>
    %c0_22 = arith.constant 0 : index
    %c18 = arith.constant 18 : index
    %15 = vector.load %arg11[%c0_22, %c18] : memref<8x27xf32, #tpu.memory_space<vmem>>, vector<8x3xf32>
    tpu.vector_store %arg11[%c0_22, %c18], %14 {strides = array<i32>} : memref<8x27xf32, #tpu.memory_space<vmem>>, vector<8x3xf32>,
    %c0_23 = arith.constant 0 : index
    %c0_24 = arith.constant 0 : index
    %c8 = arith.constant 8 : index
    %16 = vector.load %arg2[%c0_23, %c0_24, %c8] : memref<1x8x48xf32, #tpu.memory_space<vmem>>, vector<1x8x3xf32>
    %17 = vector.shape_cast %16 : vector<1x8x3xf32> to vector<8x3xf32>
    %c0_25 = arith.constant 0 : index
    %c3 = arith.constant 3 : index
    %18 = vector.load %arg11[%c0_25, %c3] : memref<8x27xf32, #tpu.memory_space<vmem>>, vector<8x3xf32>
    tpu.vector_store %arg11[%c0_25, %c3], %17 {strides = array<i32>} : memref<8x27xf32, #tpu.memory_space<vmem>>, vector<8x3xf32>,
    %c0_26 = arith.constant 0 : index
    %c0_27 = arith.constant 0 : index
    %c32 = arith.constant 32 : index
    %19 = vector.load %arg2[%c0_26, %c0_27, %c32] : memref<1x8x48xf32, #tpu.memory_space<vmem>>, vector<1x8x3xf32>
    %20 = vector.shape_cast %19 : vector<1x8x3xf32> to vector<8x3xf32>
    %c0_28 = arith.constant 0 : index
    %c12 = arith.constant 12 : index
    %21 = vector.load %arg11[%c0_28, %c12] : memref<8x27xf32, #tpu.memory_space<vmem>>, vector<8x3xf32>
    tpu.vector_store %arg11[%c0_28, %c12], %20 {strides = array<i32>} : memref<8x27xf32, #tpu.memory_space<vmem>>, vector<8x3xf32>,
    %c0_29 = arith.constant 0 : index
    %c8_30 = arith.constant 8 : index
    %22 = vector.load %arg10[%c0_29, %c8_30] : memref<8x24xf32, #tpu.memory_space<vmem>>, vector<8x3xf32>
    %c0_31 = arith.constant 0 : index
    %c21 = arith.constant 21 : index
    %23 = vector.load %arg11[%c0_31, %c21] : memref<8x27xf32, #tpu.memory_space<vmem>>, vector<8x3xf32>
    tpu.vector_store %arg11[%c0_31, %c21], %22 {strides = array<i32>} : memref<8x27xf32, #tpu.memory_space<vmem>>, vector<8x3xf32>,
    %c0_32 = arith.constant 0 : index
    %c0_33 = arith.constant 0 : index
    %c16 = arith.constant 16 : index
    %24 = vector.load %arg2[%c0_32, %c0_33, %c16] : memref<1x8x48xf32, #tpu.memory_space<vmem>>, vector<1x8x3xf32>
    %25 = vector.shape_cast %24 : vector<1x8x3xf32> to vector<8x3xf32>
    %c0_34 = arith.constant 0 : index
    %c6 = arith.constant 6 : index
    %26 = vector.load %arg11[%c0_34, %c6] : memref<8x27xf32, #tpu.memory_space<vmem>>, vector<8x3xf32>
    tpu.vector_store %arg11[%c0_34, %c6], %25 {strides = array<i32>} : memref<8x27xf32, #tpu.memory_space<vmem>>, vector<8x3xf32>,
    %c0_35 = arith.constant 0 : index
    %c0_36 = arith.constant 0 : index
    %c40 = arith.constant 40 : index
    %27 = vector.load %arg2[%c0_35, %c0_36, %c40] : memref<1x8x48xf32, #tpu.memory_space<vmem>>, vector<1x8x3xf32>
    %28 = vector.shape_cast %27 : vector<1x8x3xf32> to vector<8x3xf32>
    %c0_37 = arith.constant 0 : index
    %c15 = arith.constant 15 : index
    %29 = vector.load %arg11[%c0_37, %c15] : memref<8x27xf32, #tpu.memory_space<vmem>>, vector<8x3xf32>
    tpu.vector_store %arg11[%c0_37, %c15], %28 {strides = array<i32>} : memref<8x27xf32, #tpu.memory_space<vmem>>, vector<8x3xf32>,
    %c0_38 = arith.constant 0 : index
    %c16_39 = arith.constant 16 : index
    %30 = vector.load %arg10[%c0_38, %c16_39] : memref<8x24xf32, #tpu.memory_space<vmem>>, vector<8x3xf32>
    %c0_40 = arith.constant 0 : index
    %c24_41 = arith.constant 24 : index
    %31 = vector.load %arg11[%c0_40, %c24_41] : memref<8x27xf32, #tpu.memory_space<vmem>>, vector<8x3xf32>
    tpu.vector_store %arg11[%c0_40, %c24_41], %30 {strides = array<i32>} : memref<8x27xf32, #tpu.memory_space<vmem>>, vector<8x3xf32>,
    %c0_42 = arith.constant 0 : index
    %c0_43 = arith.constant 0 : index
    %32 = vector.load %arg11[%c0_42, %c0_43] : memref<8x27xf32, #tpu.memory_space<vmem>>, vector<8x27xf32>
    %cst = arith.constant dense<0.000000e+00> : vector<8x128xf32>
    %33 = tpu.matmul %32, %6, %cst {dimension_numbers = #tpu.dot_dimension_numbers<[1], [0], [0], [1], [0, 0, 1, 1], [], []>} : vector<8x27xf32>, vector<27x128xf32>, vector<8x128xf32> -> vector<8x128xf32>
    %34 = vector.broadcast %7 : vector<1x128xf32> to vector<8x128xf32>
    %35 = arith.addf %33, %34 : vector<8x128xf32>
    %cst_44 = arith.constant 0.000000e+00 : f32
    %36 = vector.broadcast %cst_44 : f32 to vector<8x128xf32>
    %37 = arith.maximumf %35, %36 : vector<8x128xf32>
    %38 = arith.truncf %37 : vector<8x128xf32> to vector<8x128xbf16>
    %c0_45 = arith.constant 0 : index
    %c0_46 = arith.constant 0 : index
    %39 = vector.load %arg12[%c0_45, %c0_46] : memref<8x384xbf16, #tpu.memory_space<vmem>>, vector<8x128xbf16>
    tpu.vector_store %arg12[%c0_45, %c0_46], %38 {strides = array<i32>} : memref<8x384xbf16, #tpu.memory_space<vmem>>, vector<8x128xbf16>,
    %c0_47 = arith.constant 0 : index
    %c0_48 = arith.constant 0 : index
    %c2 = arith.constant 2 : index
    %40 = vector.load %arg2[%c0_47, %c0_48, %c2] : memref<1x8x48xf32, #tpu.memory_space<vmem>>, vector<1x8x3xf32>
    %41 = vector.shape_cast %40 : vector<1x8x3xf32> to vector<8x3xf32>
    %c0_49 = arith.constant 0 : index
    %c0_50 = arith.constant 0 : index
    %42 = vector.load %arg11[%c0_49, %c0_50] : memref<8x27xf32, #tpu.memory_space<vmem>>, vector<8x3xf32>
    tpu.vector_store %arg11[%c0_49, %c0_50], %41 {strides = array<i32>} : memref<8x27xf32, #tpu.memory_space<vmem>>, vector<8x3xf32>,
    %c0_51 = arith.constant 0 : index
    %c0_52 = arith.constant 0 : index
    %c26 = arith.constant 26 : index
    %43 = vector.load %arg2[%c0_51, %c0_52, %c26] : memref<1x8x48xf32, #tpu.memory_space<vmem>>, vector<1x8x3xf32>
    %44 = vector.shape_cast %43 : vector<1x8x3xf32> to vector<8x3xf32>
    %c0_53 = arith.constant 0 : index
    %c9_54 = arith.constant 9 : index
    %45 = vector.load %arg11[%c0_53, %c9_54] : memref<8x27xf32, #tpu.memory_space<vmem>>, vector<8x3xf32>
    tpu.vector_store %arg11[%c0_53, %c9_54], %44 {strides = array<i32>} : memref<8x27xf32, #tpu.memory_space<vmem>>, vector<8x3xf32>,
    %c0_55 = arith.constant 0 : index
    %c2_56 = arith.constant 2 : index
    %46 = vector.load %arg10[%c0_55, %c2_56] : memref<8x24xf32, #tpu.memory_space<vmem>>, vector<8x3xf32>
    %c0_57 = arith.constant 0 : index
    %c18_58 = arith.constant 18 : index
    %47 = vector.load %arg11[%c0_57, %c18_58] : memref<8x27xf32, #tpu.memory_space<vmem>>, vector<8x3xf32>
    tpu.vector_store %arg11[%c0_57, %c18_58], %46 {strides = array<i32>} : memref<8x27xf32, #tpu.memory_space<vmem>>, vector<8x3xf32>,
    %c0_59 = arith.constant 0 : index
    %c0_60 = arith.constant 0 : index
    %c10 = arith.constant 10 : index
    %48 = vector.load %arg2[%c0_59, %c0_60, %c10] : memref<1x8x48xf32, #tpu.memory_space<vmem>>, vector<1x8x3xf32>
    %49 = vector.shape_cast %48 : vector<1x8x3xf32> to vector<8x3xf32>
    %c0_61 = arith.constant 0 : index
    %c3_62 = arith.constant 3 : index
    %50 = vector.load %arg11[%c0_61, %c3_62] : memref<8x27xf32, #tpu.memory_space<vmem>>, vector<8x3xf32>
    tpu.vector_store %arg11[%c0_61, %c3_62], %49 {strides = array<i32>} : memref<8x27xf32, #tpu.memory_space<vmem>>, vector<8x3xf32>,
    %c0_63 = arith.constant 0 : index
    %c0_64 = arith.constant 0 : index
    %c34 = arith.constant 34 : index
    %51 = vector.load %arg2[%c0_63, %c0_64, %c34] : memref<1x8x48xf32, #tpu.memory_space<vmem>>, vector<1x8x3xf32>
    %52 = vector.shape_cast %51 : vector<1x8x3xf32> to vector<8x3xf32>
    %c0_65 = arith.constant 0 : index
    %c12_66 = arith.constant 12 : index
    %53 = vector.load %arg11[%c0_65, %c12_66] : memref<8x27xf32, #tpu.memory_space<vmem>>, vector<8x3xf32>
    tpu.vector_store %arg11[%c0_65, %c12_66], %52 {strides = array<i32>} : memref<8x27xf32, #tpu.memory_space<vmem>>, vector<8x3xf32>,
    %c0_67 = arith.constant 0 : index
    %c10_68 = arith.constant 10 : index
    %54 = vector.load %arg10[%c0_67, %c10_68] : memref<8x24xf32, #tpu.memory_space<vmem>>, vector<8x3xf32>
    %c0_69 = arith.constant 0 : index
    %c21_70 = arith.constant 21 : index
    %55 = vector.load %arg11[%c0_69, %c21_70] : memref<8x27xf32, #tpu.memory_space<vmem>>, vector<8x3xf32>
    tpu.vector_store %arg11[%c0_69, %c21_70], %54 {strides = array<i32>} : memref<8x27xf32, #tpu.memory_space<vmem>>, vector<8x3xf32>,
    %c0_71 = arith.constant 0 : index
    %c0_72 = arith.constant 0 : index
    %c18_73 = arith.constant 18 : index
    %56 = vector.load %arg2[%c0_71, %c0_72, %c18_73] : memref<1x8x48xf32, #tpu.memory_space<vmem>>, vector<1x8x3xf32>
    %57 = vector.shape_cast %56 : vector<1x8x3xf32> to vector<8x3xf32>
    %c0_74 = arith.constant 0 : index
    %c6_75 = arith.constant 6 : index
    %58 = vector.load %arg11[%c0_74, %c6_75] : memref<8x27xf32, #tpu.memory_space<vmem>>, vector<8x3xf32>
    tpu.vector_store %arg11[%c0_74, %c6_75], %57 {strides = array<i32>} : memref<8x27xf32, #tpu.memory_space<vmem>>, vector<8x3xf32>,
    %c0_76 = arith.constant 0 : index
    %c0_77 = arith.constant 0 : index
    %c42 = arith.constant 42 : index
    %59 = vector.load %arg2[%c0_76, %c0_77, %c42] : memref<1x8x48xf32, #tpu.memory_space<vmem>>, vector<1x8x3xf32>
    %60 = vector.shape_cast %59 : vector<1x8x3xf32> to vector<8x3xf32>
    %c0_78 = arith.constant 0 : index
    %c15_79 = arith.constant 15 : index
    %61 = vector.load %arg11[%c0_78, %c15_79] : memref<8x27xf32, #tpu.memory_space<vmem>>, vector<8x3xf32>
    tpu.vector_store %arg11[%c0_78, %c15_79], %60 {strides = array<i32>} : memref<8x27xf32, #tpu.memory_space<vmem>>, vector<8x3xf32>,
    %c0_80 = arith.constant 0 : index
    %c18_81 = arith.constant 18 : index
    %62 = vector.load %arg10[%c0_80, %c18_81] : memref<8x24xf32, #tpu.memory_space<vmem>>, vector<8x3xf32>
    %c0_82 = arith.constant 0 : index
    %c24_83 = arith.constant 24 : index
    %63 = vector.load %arg11[%c0_82, %c24_83] : memref<8x27xf32, #tpu.memory_space<vmem>>, vector<8x3xf32>
    tpu.vector_store %arg11[%c0_82, %c24_83], %62 {strides = array<i32>} : memref<8x27xf32, #tpu.memory_space<vmem>>, vector<8x3xf32>,
    %c0_84 = arith.constant 0 : index
    %c0_85 = arith.constant 0 : index
    %64 = vector.load %arg11[%c0_84, %c0_85] : memref<8x27xf32, #tpu.memory_space<vmem>>, vector<8x27xf32>
    %cst_86 = arith.constant dense<0.000000e+00> : vector<8x128xf32>
    %65 = tpu.matmul %64, %6, %cst_86 {dimension_numbers = #tpu.dot_dimension_numbers<[1], [0], [0], [1], [0, 0, 1, 1], [], []>} : vector<8x27xf32>, vector<27x128xf32>, vector<8x128xf32> -> vector<8x128xf32>
    %66 = vector.broadcast %7 : vector<1x128xf32> to vector<8x128xf32>
    %67 = arith.addf %65, %66 : vector<8x128xf32>
    %cst_87 = arith.constant 0.000000e+00 : f32
    %68 = vector.broadcast %cst_87 : f32 to vector<8x128xf32>
    %69 = arith.maximumf %67, %68 : vector<8x128xf32>
    %70 = arith.truncf %69 : vector<8x128xf32> to vector<8x128xbf16>
    %c0_88 = arith.constant 0 : index
    %c128 = arith.constant 128 : index
    %71 = vector.load %arg12[%c0_88, %c128] : memref<8x384xbf16, #tpu.memory_space<vmem>>, vector<8x128xbf16>
    tpu.vector_store %arg12[%c0_88, %c128], %70 {strides = array<i32>} : memref<8x384xbf16, #tpu.memory_space<vmem>>, vector<8x128xbf16>,
    %c0_89 = arith.constant 0 : index
    %c0_90 = arith.constant 0 : index
    %c4 = arith.constant 4 : index
    %72 = vector.load %arg2[%c0_89, %c0_90, %c4] : memref<1x8x48xf32, #tpu.memory_space<vmem>>, vector<1x8x3xf32>
    %73 = vector.shape_cast %72 : vector<1x8x3xf32> to vector<8x3xf32>
    %c0_91 = arith.constant 0 : index
    %c0_92 = arith.constant 0 : index
    %74 = vector.load %arg11[%c0_91, %c0_92] : memref<8x27xf32, #tpu.memory_space<vmem>>, vector<8x3xf32>
    tpu.vector_store %arg11[%c0_91, %c0_92], %73 {strides = array<i32>} : memref<8x27xf32, #tpu.memory_space<vmem>>, vector<8x3xf32>,
    %c0_93 = arith.constant 0 : index
    %c0_94 = arith.constant 0 : index
    %c28 = arith.constant 28 : index
    %75 = vector.load %arg2[%c0_93, %c0_94, %c28] : memref<1x8x48xf32, #tpu.memory_space<vmem>>, vector<1x8x3xf32>
    %76 = vector.shape_cast %75 : vector<1x8x3xf32> to vector<8x3xf32>
    %c0_95 = arith.constant 0 : index
    %c9_96 = arith.constant 9 : index
    %77 = vector.load %arg11[%c0_95, %c9_96] : memref<8x27xf32, #tpu.memory_space<vmem>>, vector<8x3xf32>
    tpu.vector_store %arg11[%c0_95, %c9_96], %76 {strides = array<i32>} : memref<8x27xf32, #tpu.memory_space<vmem>>, vector<8x3xf32>,
    %c0_97 = arith.constant 0 : index
    %c4_98 = arith.constant 4 : index
    %78 = vector.load %arg10[%c0_97, %c4_98] : memref<8x24xf32, #tpu.memory_space<vmem>>, vector<8x3xf32>
    %c0_99 = arith.constant 0 : index
    %c18_100 = arith.constant 18 : index
    %79 = vector.load %arg11[%c0_99, %c18_100] : memref<8x27xf32, #tpu.memory_space<vmem>>, vector<8x3xf32>
    tpu.vector_store %arg11[%c0_99, %c18_100], %78 {strides = array<i32>} : memref<8x27xf32, #tpu.memory_space<vmem>>, vector<8x3xf32>,
    %c0_101 = arith.constant 0 : index
    %c0_102 = arith.constant 0 : index
    %c12_103 = arith.constant 12 : index
    %80 = vector.load %arg2[%c0_101, %c0_102, %c12_103] : memref<1x8x48xf32, #tpu.memory_space<vmem>>, vector<1x8x3xf32>
    %81 = vector.shape_cast %80 : vector<1x8x3xf32> to vector<8x3xf32>
    %c0_104 = arith.constant 0 : index
    %c3_105 = arith.constant 3 : index
    %82 = vector.load %arg11[%c0_104, %c3_105] : memref<8x27xf32, #tpu.memory_space<vmem>>, vector<8x3xf32>
    tpu.vector_store %arg11[%c0_104, %c3_105], %81 {strides = array<i32>} : memref<8x27xf32, #tpu.memory_space<vmem>>, vector<8x3xf32>,
    %c0_106 = arith.constant 0 : index
    %c0_107 = arith.constant 0 : index
    %c36 = arith.constant 36 : index
    %83 = vector.load %arg2[%c0_106, %c0_107, %c36] : memref<1x8x48xf32, #tpu.memory_space<vmem>>, vector<1x8x3xf32>
    %84 = vector.shape_cast %83 : vector<1x8x3xf32> to vector<8x3xf32>
    %c0_108 = arith.constant 0 : index
    %c12_109 = arith.constant 12 : index
    %85 = vector.load %arg11[%c0_108, %c12_109] : memref<8x27xf32, #tpu.memory_space<vmem>>, vector<8x3xf32>
    tpu.vector_store %arg11[%c0_108, %c12_109], %84 {strides = array<i32>} : memref<8x27xf32, #tpu.memory_space<vmem>>, vector<8x3xf32>,
    %c0_110 = arith.constant 0 : index
    %c12_111 = arith.constant 12 : index
    %86 = vector.load %arg10[%c0_110, %c12_111] : memref<8x24xf32, #tpu.memory_space<vmem>>, vector<8x3xf32>
    %c0_112 = arith.constant 0 : index
    %c21_113 = arith.constant 21 : index
    %87 = vector.load %arg11[%c0_112, %c21_113] : memref<8x27xf32, #tpu.memory_space<vmem>>, vector<8x3xf32>
    tpu.vector_store %arg11[%c0_112, %c21_113], %86 {strides = array<i32>} : memref<8x27xf32, #tpu.memory_space<vmem>>, vector<8x3xf32>,
    %c0_114 = arith.constant 0 : index
    %c0_115 = arith.constant 0 : index
    %c20 = arith.constant 20 : index
    %88 = vector.load %arg2[%c0_114, %c0_115, %c20] : memref<1x8x48xf32, #tpu.memory_space<vmem>>, vector<1x8x3xf32>
    %89 = vector.shape_cast %88 : vector<1x8x3xf32> to vector<8x3xf32>
    %c0_116 = arith.constant 0 : index
    %c6_117 = arith.constant 6 : index
    %90 = vector.load %arg11[%c0_116, %c6_117] : memref<8x27xf32, #tpu.memory_space<vmem>>, vector<8x3xf32>
    tpu.vector_store %arg11[%c0_116, %c6_117], %89 {strides = array<i32>} : memref<8x27xf32, #tpu.memory_space<vmem>>, vector<8x3xf32>,
    %c0_118 = arith.constant 0 : index
    %c0_119 = arith.constant 0 : index
    %c44 = arith.constant 44 : index
    %91 = vector.load %arg2[%c0_118, %c0_119, %c44] : memref<1x8x48xf32, #tpu.memory_space<vmem>>, vector<1x8x3xf32>
    %92 = vector.shape_cast %91 : vector<1x8x3xf32> to vector<8x3xf32>
    %c0_120 = arith.constant 0 : index
    %c15_121 = arith.constant 15 : index
    %93 = vector.load %arg11[%c0_120, %c15_121] : memref<8x27xf32, #tpu.memory_space<vmem>>, vector<8x3xf32>
    tpu.vector_store %arg11[%c0_120, %c15_121], %92 {strides = array<i32>} : memref<8x27xf32, #tpu.memory_space<vmem>>, vector<8x3xf32>,
    %c0_122 = arith.constant 0 : index
    %c20_123 = arith.constant 20 : index
    %94 = vector.load %arg10[%c0_122, %c20_123] : memref<8x24xf32, #tpu.memory_space<vmem>>, vector<8x3xf32>
    %c0_124 = arith.constant 0 : index
    %c24_125 = arith.constant 24 : index
    %95 = vector.load %arg11[%c0_124, %c24_125] : memref<8x27xf32, #tpu.memory_space<vmem>>, vector<8x3xf32>
    tpu.vector_store %arg11[%c0_124, %c24_125], %94 {strides = array<i32>} : memref<8x27xf32, #tpu.memory_space<vmem>>, vector<8x3xf32>,
    %c0_126 = arith.constant 0 : index
    %c0_127 = arith.constant 0 : index
    %96 = vector.load %arg11[%c0_126, %c0_127] : memref<8x27xf32, #tpu.memory_space<vmem>>, vector<8x27xf32>
    %cst_128 = arith.constant dense<0.000000e+00> : vector<8x128xf32>
    %97 = tpu.matmul %96, %6, %cst_128 {dimension_numbers = #tpu.dot_dimension_numbers<[1], [0], [0], [1], [0, 0, 1, 1], [], []>} : vector<8x27xf32>, vector<27x128xf32>, vector<8x128xf32> -> vector<8x128xf32>
    %98 = vector.broadcast %7 : vector<1x128xf32> to vector<8x128xf32>
    %99 = arith.addf %97, %98 : vector<8x128xf32>
    %cst_129 = arith.constant 0.000000e+00 : f32
    %100 = vector.broadcast %cst_129 : f32 to vector<8x128xf32>
    %101 = arith.maximumf %99, %100 : vector<8x128xf32>
    %102 = arith.truncf %101 : vector<8x128xf32> to vector<8x128xbf16>
    %c0_130 = arith.constant 0 : index
    %c256 = arith.constant 256 : index
    %103 = vector.load %arg12[%c0_130, %c256] : memref<8x384xbf16, #tpu.memory_space<vmem>>, vector<8x128xbf16>
    tpu.vector_store %arg12[%c0_130, %c256], %102 {strides = array<i32>} : memref<8x384xbf16, #tpu.memory_space<vmem>>, vector<8x128xbf16>,
    %c0_131 = arith.constant 0 : index
    %c0_132 = arith.constant 0 : index
    %104 = vector.load %arg12[%c0_131, %c0_132] : memref<8x384xbf16, #tpu.memory_space<vmem>>, vector<8x384xbf16>
    %c0_133 = arith.constant 0 : index
    %c0_134 = arith.constant 0 : index
    %105 = vector.load %arg6[%c0_133, %c0_134] : memref<384x128xbf16, #tpu.memory_space<vmem>>, vector<384x128xbf16>
    %cst_135 = arith.constant dense<0.000000e+00> : vector<8x128xf32>
    %106 = tpu.matmul %104, %105, %cst_135 {dimension_numbers = #tpu.dot_dimension_numbers<[1], [0], [0], [1], [0, 0, 1, 1], [], []>} : vector<8x384xbf16>, vector<384x128xbf16>, vector<8x128xf32> -> vector<8x128xf32>
    %c0_136 = arith.constant 0 : index
    %c0_137 = arith.constant 0 : index
    %107 = vector.load %arg7[%c0_136, %c0_137] : memref<1x128xf32, #tpu.memory_space<vmem>>, vector<1x128xf32>
    %108 = vector.broadcast %107 : vector<1x128xf32> to vector<8x128xf32>
    %109 = arith.addf %106, %108 : vector<8x128xf32>
    %cst_138 = arith.constant 11.3137083 : f32
    %110 = vector.broadcast %cst_138 : f32 to vector<8x128xf32>
    %111 = arith.mulf %109, %110 : vector<8x128xf32>
    %c0_139 = arith.constant 0 : index
    %c0_140 = arith.constant 0 : index
    %112 = vector.load %arg8[%c0_139, %c0_140] : memref<8x128xf32, #tpu.memory_space<vmem>>, vector<8x128xf32>
    %113 = arith.addf %111, %112 : vector<8x128xf32>
    %c0_141 = arith.constant 0 : index
    %c0_142 = arith.constant 0 : index
    %c0_143 = arith.constant 0 : index
    %114 = vector.load %arg9[%c0_141, %c0_142, %c0_143] : memref<1x8x128xf32, #tpu.memory_space<vmem>>, vector<1x8x128xf32>
    %115 = vector.shape_cast %114 : vector<1x8x128xf32> to vector<8x128xf32>
    %116 = vector.shape_cast %113 : vector<8x128xf32> to vector<1x8x128xf32>
    tpu.vector_store %arg9[%c0_141, %c0_142, %c0_143], %116 {strides = array<i32>} : memref<1x8x128xf32, #tpu.memory_space<vmem>>, vector<1x8x128xf32>,
    return
  }
  func.func @transform_0(%arg0: i32, %arg1: i32) -> (i32, i32, i32) {
    %c0_i32 = arith.constant 0 : i32
    %c0_i32_0 = arith.constant 0 : i32
    return %arg0, %arg1, %c0_i32 : i32, i32, i32
  }
  func.func @transform_1(%arg0: i32, %arg1: i32) -> (i32, i32, i32, i32) {
    %c0_i32 = arith.constant 0 : i32
    %c0_i32_0 = arith.constant 0 : i32
    %c0_i32_1 = arith.constant 0 : i32
    return %arg0, %arg1, %c0_i32, %c0_i32_0 : i32, i32, i32, i32
  }
  func.func @transform_2(%arg0: i32, %arg1: i32) -> (i32, i32) {
    %c0_i32 = arith.constant 0 : i32
    %c0_i32_0 = arith.constant 0 : i32
    %c0_i32_1 = arith.constant 0 : i32
    return %c0_i32, %c0_i32_0 : i32, i32
  }
  func.func @transform_3(%arg0: i32, %arg1: i32) -> (i32, i32) {
    %c0_i32 = arith.constant 0 : i32
    %c0_i32_0 = arith.constant 0 : i32
    %c0_i32_1 = arith.constant 0 : i32
    return %c0_i32, %c0_i32_0 : i32, i32
  }
  func.func @transform_4(%arg0: i32, %arg1: i32) -> (i32, i32) {
    %c0_i32 = arith.constant 0 : i32
    %c0_i32_0 = arith.constant 0 : i32
    %c0_i32_1 = arith.constant 0 : i32
    return %c0_i32, %c0_i32_0 : i32, i32
  }
  func.func @transform_5(%arg0: i32, %arg1: i32) -> (i32, i32) {
    %c0_i32 = arith.constant 0 : i32
    %c0_i32_0 = arith.constant 0 : i32
    %c0_i32_1 = arith.constant 0 : i32
    return %c0_i32, %c0_i32_0 : i32, i32
  }
  func.func @transform_6(%arg0: i32, %arg1: i32) -> (i32, i32) {
    %c0_i32 = arith.constant 0 : i32
    %c0_i32_0 = arith.constant 0 : i32
    return %arg1, %c0_i32 : i32, i32
  }
  func.func @transform_7(%arg0: i32, %arg1: i32) -> (i32, i32, i32) {
    %c0_i32 = arith.constant 0 : i32
    %c0_i32_0 = arith.constant 0 : i32
    return %arg0, %arg1, %c0_i32 : i32, i32, i32
  }
}

</mosaic_0001>

<llo_original>
// kernel: tpu_custom_call.1
$region0: #{tpu_custom_call.1}
  #allocation0 [shape = 'u32[]', space=smem, size = 0x4, offset = 0x4, fixed_abs, tag = 'smem constant byte address 0x4 - core index']
  #allocation1 [shape = 'u32[144,128]{1,0:T(1,128)}', space=vmem, size = 0x12000, scoped, tag = 'internal scratch']
  #allocation2 [shape = 'f32[8,24]{1,0:T(8,128)}', space=vmem, size = 0x1000, scoped, tag = 'scratch operand']
  #allocation3 [shape = 'f32[8,27]{1,0:T(8,128)}', space=vmem, size = 0x1000, scoped, tag = 'scratch operand']
  #allocation4 [shape = 'bf16[8,384]{1,0:T(8,128)(2,1)}', space=vmem, size = 0x1800, scoped, tag = 'scratch operand']
  %s0 = inlined_call_operand.hbm [shape: f32[2,8,48], index: 0, kind: input, shape index: {}]
  %s1 = inlined_call_operand.vmem [shape: f32[2,1,1,24], index: 1, kind: input, shape index: {}]
  %s2 = inlined_call_operand.hbm [shape: f32[27,128], index: 2, kind: input, shape index: {}]
  %s3 = inlined_call_operand.vmem [shape: f32[1,128], index: 3, kind: input, shape index: {}]
  %s4 = inlined_call_operand.hbm [shape: bf16[384,128], index: 4, kind: input, shape index: {}]
  %s5 = inlined_call_operand.vmem [shape: f32[1,128], index: 5, kind: input, shape index: {}]
  %s6 = inlined_call_operand.vmem [shape: f32[8,128], index: 6, kind: input, shape index: {}]
  %s7 = inlined_call_operand.hbm [shape: f32[2,8,128], index: 7, kind: output, shape index: {}]
  %s8 = sld [smem:[#allocation0]]
  $region73: #{tpu_custom_call.1} parent=0
    _
  %s10 = ssub.s32 1, %s8
  %s11 = scalar_select 0, %s10, %s8
  $region1: #{tpu_custom_call.1} parent=0
    #allocation5 [shape = 'u8[8192]{0}', space=vmem, size = 0x2000, scoped, tag = 'input window, operand 0']
    #allocation6 [shape = 's32[2]{0}', space=sflag, size = 0x8, scoped, tag = 'scoped memory for tpu_custom_call.1']
    #allocation7 [shape = 's32[2]{0}', space=sflag, size = 0x8, scoped, tag = 'scoped memory for tpu_custom_call.1']
    #allocation8 [shape = 'u8[16384]{0}', space=vmem, size = 0x4000, scoped, tag = 'input window, operand 2, single buffered']
    #allocation9 [shape = 's32[1]{0}', space=sflag, size = 0x4, scoped, tag = 'scoped memory for tpu_custom_call.1']
    #allocation10 [shape = 'u8[98304]{0}', space=vmem, size = 0x18000, scoped, tag = 'input window, operand 4, single buffered']
    #allocation11 [shape = 'u8[8192]{0}', space=vmem, size = 0x2000, scoped, tag = 'output window, operand 0']
    %12 = vsyncpa [#allocation6], 0
    %s13 = scalar_lea.sflag [#allocation6], 1
    %14 = vsyncpa %s13, 0
    %15 = vsyncpa [#allocation9], 0
    %16 = vsyncpa [#allocation7], 0
    %s17 = scalar_lea.sflag [#allocation7], 1
    %18 = vsyncpa %s17, 0
    loop: start=0, step=1, limit=4
    $region2: #{tpu_custom_call.1} parent=1 // loop_pre_header
      _
    $region3: #{tpu_custom_call.1} parent=1 // loop_header
      %s20 = sphi 0, %s24
      %p21 = scmp.ge.s32.totalorder %s20, 4
      %s27 = sphi 0, %s39
      %s28 = sphi 0, %s35
      %s29 = sphi 0, %s27
      %s30 = sphi 0, %s28
      %s31 = sphi 0, %s29
      %s32 = sphi 0, %s30
      %s44 = sphi 0, %s46
      %s47 = sphi 0, %s44
      %s48 = sphi 0, %s47
      %s64 = sphi 0, %s48
      %s72 = sphi 0, %s74
      %s75 = sphi 0, %s72
      %s76 = sphi 0, %s75
      %s92 = sphi 0, %s76
      %s96 = sphi 0, %s96
      %s98 = sphi 0, %s96
      %s99 = sphi 0, %s98
      %s113 = sphi 0, %s99
      %s117 = sphi 0, %s117
      %s119 = sphi 0, %s117
      %s120 = sphi 0, %s119
      %s134 = sphi 0, %s120
      %s138 = sphi 0, %s138
      %s140 = sphi 0, %s138
      %s141 = sphi 0, %s140
      %s155 = sphi 0, %s141
      %s159 = sphi 0, %s159
      %s161 = sphi 0, %s159
      %s162 = sphi 0, %s161
      %s176 = sphi 0, %s162
      %s182 = sphi 0, %s184
      %s185 = sphi 0, %s182
      %s186 = sphi 0, %s185
      %s202 = sphi 0, %s186
      %s210 = sphi 0, %s212
      %s213 = sphi 0, %s210
      %s214 = sphi 0, %s213
      %s230 = sphi 0, %s214
    $region4: #{tpu_custom_call.1} parent=1 // loop_header_branch
      %23 = sbr.rel (%p21) target = $region8
    $region5: #{tpu_custom_call.1} parent=1 // loop_body
      %s25 = ssub.s32 %s20, 1
      %s26 = ssub.s32 %s20, 2
      %s33 = sadd.s32 1, %s28
      %p34 = scmp.ge.s32.totalorder %s33, 1
      %s35 = scalar_select %p34, 0, %s33
      %s36 = sadd.s32 1, %s27
      %s37 = scalar_select %p34, %s36, %s27
      %p38 = scmp.ge.s32.totalorder %s37, 2
      %s39 = scalar_select %p38, 0, %s37
      %s40 = ssub.s32 %s27, %s39
      %s41 = ssub.s32 %s28, %s35
      %s42 = sor.u32 %s40, %s41
      %p43 = scmp.eq.s32.totalorder %s42, 0
      %s45 = sadd.s32 %s44, 1
      %s46 = scalar_select %p43, %s44, %s45
      %p49 = pneg %p43
      %p50 = scmp.eq.s32.totalorder %s20, 1
      %p51 = por %p49, %p50
      %p52 = scmp.ne.s32.totalorder %s44, %s47
      %p53 = scmp.eq.s32.totalorder %s20, 0
      %p54 = por %p52, %p53
      %p55 = scmp.ne.s32.totalorder %s44, %s47
      %p56 = scmp.eq.s32.totalorder %s25, 1
      %p57 = por %p55, %p56
      %p58 = scmp.ne.s32.totalorder %s47, %s48
      %p59 = scmp.eq.s32.totalorder %s25, 0
      %p60 = por %p58, %p59
      %p61 = scmp.ne.s32.totalorder %s47, %s48
      %p62 = scmp.eq.s32.totalorder %s26, 1
      %p63 = por %p61, %p62
      %p65 = scmp.ne.s32.totalorder %s48, %s64
      %p66 = scmp.eq.s32.totalorder %s26, 0
      %p67 = por %p65, %p66
      %s68 = ssub.s32 %s27, %s39
      %s69 = ssub.s32 %s28, %s35
      %s70 = sor.u32 %s68, %s69
      %p71 = scmp.eq.s32.totalorder %s70, 0
      %s73 = sadd.s32 %s72, 1
      %s74 = scalar_select %p71, %s72, %s73
      %p77 = pneg %p71
      %p78 = scmp.eq.s32.totalorder %s20, 1
      %p79 = por %p77, %p78
      %p80 = scmp.ne.s32.totalorder %s72, %s75
      %p81 = scmp.eq.s32.totalorder %s20, 0
      %p82 = por %p80, %p81
      %p83 = scmp.ne.s32.totalorder %s72, %s75
      %p84 = scmp.eq.s32.totalorder %s25, 1
      %p85 = por %p83, %p84
      %p86 = scmp.ne.s32.totalorder %s75, %s76
      %p87 = scmp.eq.s32.totalorder %s25, 0
      %p88 = por %p86, %p87
      %p89 = scmp.ne.s32.totalorder %s75, %s76
      %p90 = scmp.eq.s32.totalorder %s26, 1
      %p91 = por %p89, %p90
      %p93 = scmp.ne.s32.totalorder %s76, %s92
      %p94 = scmp.eq.s32.totalorder %s26, 0
      %p95 = por %p93, %p94
      %s97 = sadd.s32 %s96, 1
      %p100 = scmp.eq.s32.totalorder %s20, 1
      %p101 = scmp.ne.s32.totalorder %s96, %s98
      %p102 = scmp.eq.s32.totalorder %s20, 0
      %p103 = por %p101, %p102
      %p104 = scmp.ne.s32.totalorder %s96, %s98
      %p105 = scmp.eq.s32.totalorder %s25, 1
      %p106 = por %p104, %p105
      %p107 = scmp.ne.s32.totalorder %s98, %s99
      %p108 = scmp.eq.s32.totalorder %s25, 0
      %p109 = por %p107, %p108
      %p110 = scmp.ne.s32.totalorder %s98, %s99
      %p111 = scmp.eq.s32.totalorder %s26, 1
      %p112 = por %p110, %p111
      %p114 = scmp.ne.s32.totalorder %s99, %s113
      %p115 = scmp.eq.s32.totalorder %s26, 0
      %p116 = por %p114, %p115
      %s118 = sadd.s32 %s117, 1
      %p121 = scmp.eq.s32.totalorder %s20, 1
      %p122 = scmp.ne.s32.totalorder %s117, %s119
      %p123 = scmp.eq.s32.totalorder %s20, 0
      %p124 = por %p122, %p123
      %p125 = scmp.ne.s32.totalorder %s117, %s119
      %p126 = scmp.eq.s32.totalorder %s25, 1
      %p127 = por %p125, %p126
      %p128 = scmp.ne.s32.totalorder %s119, %s120
      %p129 = scmp.eq.s32.totalorder %s25, 0
      %p130 = por %p128, %p129
      %p131 = scmp.ne.s32.totalorder %s119, %s120
      %p132 = scmp.eq.s32.totalorder %s26, 1
      %p133 = por %p131, %p132
      %p135 = scmp.ne.s32.totalorder %s120, %s134
      %p136 = scmp.eq.s32.totalorder %s26, 0
      %p137 = por %p135, %p136
      %s139 = sadd.s32 %s138, 1
      %p142 = scmp.eq.s32.totalorder %s20, 1
      %p143 = scmp.ne.s32.totalorder %s138, %s140
      %p144 = scmp.eq.s32.totalorder %s20, 0
      %p145 = por %p143, %p144
      %p146 = scmp.ne.s32.totalorder %s138, %s140
      %p147 = scmp.eq.s32.totalorder %s25, 1
      %p148 = por %p146, %p147
      %p149 = scmp.ne.s32.totalorder %s140, %s141
      %p150 = scmp.eq.s32.totalorder %s25, 0
      %p151 = por %p149, %p150
      %p152 = scmp.ne.s32.totalorder %s140, %s141
      %p153 = scmp.eq.s32.totalorder %s26, 1
      %p154 = por %p152, %p153
      %p156 = scmp.ne.s32.totalorder %s141, %s155
      %p157 = scmp.eq.s32.totalorder %s26, 0
      %p158 = por %p156, %p157
      %s160 = sadd.s32 %s159, 1
      %p163 = scmp.eq.s32.totalorder %s20, 1
      %p164 = scmp.ne.s32.totalorder %s159, %s161
      %p165 = scmp.eq.s32.totalorder %s20, 0
      %p166 = por %p164, %p165
      %p167 = scmp.ne.s32.totalorder %s159, %s161
      %p168 = scmp.eq.s32.totalorder %s25, 1
      %p169 = por %p167, %p168
      %p170 = scmp.ne.s32.totalorder %s161, %s162
      %p171 = scmp.eq.s32.totalorder %s25, 0
      %p172 = por %p170, %p171
      %p173 = scmp.ne.s32.totalorder %s161, %s162
      %p174 = scmp.eq.s32.totalorder %s26, 1
      %p175 = por %p173, %p174
      %p177 = scmp.ne.s32.totalorder %s162, %s176
      %p178 = scmp.eq.s32.totalorder %s26, 0
      %p179 = por %p177, %p178
      %s180 = ssub.s32 %s28, %s35
      %p181 = scmp.eq.s32.totalorder %s180, 0
      %s183 = sadd.s32 %s182, 1
      %s184 = scalar_select %p181, %s182, %s183
      %p187 = pneg %p181
      %p188 = scmp.eq.s32.totalorder %s20, 1
      %p189 = por %p187, %p188
      %p190 = scmp.ne.s32.totalorder %s182, %s185
      %p191 = scmp.eq.s32.totalorder %s20, 0
      %p192 = por %p190, %p191
      %p193 = scmp.ne.s32.totalorder %s182, %s185
      %p194 = scmp.eq.s32.totalorder %s25, 1
      %p195 = por %p193, %p194
      %p196 = scmp.ne.s32.totalorder %s185, %s186
      %p197 = scmp.eq.s32.totalorder %s25, 0
      %p198 = por %p196, %p197
      %p199 = scmp.ne.s32.totalorder %s185, %s186
      %p200 = scmp.eq.s32.totalorder %s26, 1
      %p201 = por %p199, %p200
      %p203 = scmp.ne.s32.totalorder %s186, %s202
      %p204 = scmp.eq.s32.totalorder %s26, 0
      %p205 = por %p203, %p204
      %s206 = ssub.s32 %s27, %s39
      %s207 = ssub.s32 %s28, %s35
      %s208 = sor.u32 %s206, %s207
      %p209 = scmp.eq.s32.totalorder %s208, 0
      %s211 = sadd.s32 %s210, 1
      %s212 = scalar_select %p209, %s210, %s211
      %p215 = pneg %p209
      %p216 = scmp.eq.s32.totalorder %s20, 1
      %p217 = por %p215, %p216
      %p218 = scmp.ne.s32.totalorder %s210, %s213
      %p219 = scmp.eq.s32.totalorder %s20, 0
      %p220 = por %p218, %p219
      %p221 = scmp.ne.s32.totalorder %s210, %s213
      %p222 = scmp.eq.s32.totalorder %s25, 1
      %p223 = por %p221, %p222
      %p224 = scmp.ne.s32.totalorder %s213, %s214
      %p225 = scmp.eq.s32.totalorder %s25, 0
      %p226 = por %p224, %p225
      %p227 = scmp.ne.s32.totalorder %s213, %s214
      %p228 = scmp.eq.s32.totalorder %s26, 1
      %p229 = por %p227, %p228
      %p231 = scmp.ne.s32.totalorder %s214, %s230
      %p232 = scmp.eq.s32.totalorder %s26, 0
      %p233 = por %p231, %p232
      %p234 = scmp.le.s32.totalorder 1, %s20
      %p235 = scmp.lt.s32.totalorder %s20, 3
      %p236 = pnand %p234, %p235
      %p237 = pneg %p236
      // Predicated region
      $region9: #{tpu_custom_call.1} parent=5 // pred_check
        _
      $region10: #{tpu_custom_call.1} parent=5 // pred_check_branch
        %239 = sbr.rel (%p236) target = $region12
      $region11: #{tpu_custom_call.1} parent=5 // pred_region
        %s240 = ssub.s32 %s20, 1
        // Predicated region
        $region13: #{tpu_custom_call.1} parent=11 // pred_check
          %p241 = pneg %p109
        $region14: #{tpu_custom_call.1} parent=11 // pred_check_branch
          %243 = sbr.rel (%p241) target = $region16
        $region15: #{tpu_custom_call.1} parent=11 // pred_region
          %s245 = ssub.s32 512, 512
          %246 = vsyncadd [#allocation9], %s245
          %s247 = sshll.u32 [#allocation8], 4
          %s248 = int_to_ptr.vmem [resolvable:$true] %s247
          %253 = dma.hbm_to_vmem [thread:$0]  %s2, 512, %s248, [#allocation9], 128, 128, 8
        $region16: #{tpu_custom_call.1} parent=11 // pred_fallthru
          _
        // Predicated region
        $region17: #{tpu_custom_call.1} parent=11 // pred_check
          %p254 = pneg %p130
        $region18: #{tpu_custom_call.1} parent=11 // pred_check_branch
          %256 = sbr.rel (%p254) target = $region20
        $region19: #{tpu_custom_call.1} parent=11 // pred_region
          _
        $region20: #{tpu_custom_call.1} parent=11 // pred_fallthru
          _
        // Predicated region
        $region21: #{tpu_custom_call.1} parent=11 // pred_check
          %p257 = pneg %p151
        $region22: #{tpu_custom_call.1} parent=11 // pred_check_branch
          %259 = sbr.rel (%p257) target = $region24
        $region23: #{tpu_custom_call.1} parent=11 // pred_region
          %s261 = ssub.s32 3072, 3072
          %262 = vsyncadd [#allocation9], %s261
          %s263 = sshll.u32 [#allocation10], 4
          %s264 = int_to_ptr.vmem [resolvable:$true] %s263
          %269 = dma.hbm_to_vmem [thread:$0]  %s4, 3072, %s264, [#allocation9], 64, 64, 4
        $region24: #{tpu_custom_call.1} parent=11 // pred_fallthru
          _
        // Predicated region
        $region25: #{tpu_custom_call.1} parent=11 // pred_check
          %p270 = pneg %p172
        $region26: #{tpu_custom_call.1} parent=11 // pred_check_branch
          %272 = sbr.rel (%p270) target = $region28
        $region27: #{tpu_custom_call.1} parent=11 // pred_region
          _
        $region28: #{tpu_custom_call.1} parent=11 // pred_fallthru
          _
        // Predicated region
        $region29: #{tpu_custom_call.1} parent=11 // pred_check
          %p273 = pneg %p198
        $region30: #{tpu_custom_call.1} parent=11 // pred_check_branch
          %275 = sbr.rel (%p273) target = $region32
        $region31: #{tpu_custom_call.1} parent=11 // pred_region
          %p276 = scmp.lt.s32.totalorder %s30, 0
          %s277 = scalar_select %p276, %s30, 0
          %s278 = smul.addr %s277, 8
          %s279 = scalar_lea.vmem %s6, %s278
        $region32: #{tpu_custom_call.1} parent=11 // pred_fallthru
          _
      $region12: #{tpu_custom_call.1} parent=5 // pred_fallthru
        _
      %p280 = scmp.lt.s32.totalorder %s20, 2
      // Predicated region
      $region33: #{tpu_custom_call.1} parent=5 // pred_check
        %p281 = pneg %p280
      $region34: #{tpu_custom_call.1} parent=5 // pred_check_branch
        %283 = sbr.rel (%p281) target = $region36
      $region35: #{tpu_custom_call.1} parent=5 // pred_region
        // Predicated region
        $region37: #{tpu_custom_call.1} parent=35 // pred_check
          %p284 = pneg %p54
        $region38: #{tpu_custom_call.1} parent=35 // pred_check_branch
          %286 = sbr.rel (%p284) target = $region40
        $region39: #{tpu_custom_call.1} parent=35 // pred_region
          %s287 = sand.u32 %s44, 1
          %s288 = scalar_lea.sflag [#allocation6], %s287
          %s289 = sand.u32 %s44, 1
          %s290 = smul.addr %s289, 8
          %s291 = scalar_lea.vmem [#allocation5], %s290
          %s293 = ssub.s32 128, 128
          %294 = vsyncadd %s288, %s293
          %s295 = sadd.s32 %s28, %s27
          %s296 = smul.addr %s295, 128
          %s297 = scalar_lea.hbm %s0, %s296
          %s299 = sshll.u32 %s291, 4
          %s300 = int_to_ptr.vmem [resolvable:$true] %s299
          %302 = dma.hbm_to_vmem [thread:$0]  %s297, 128, %s300, %s288
        $region40: #{tpu_custom_call.1} parent=35 // pred_fallthru
          _
        // Predicated region
        $region41: #{tpu_custom_call.1} parent=35 // pred_check
          %p303 = pneg %p82
        $region42: #{tpu_custom_call.1} parent=35 // pred_check_branch
          %305 = sbr.rel (%p303) target = $region44
        $region43: #{tpu_custom_call.1} parent=35 // pred_region
          %p306 = scmp.lt.s32.totalorder %s27, 1
          %s307 = scalar_select %p306, %s27, 1
          %p308 = scmp.lt.s32.totalorder %s28, 0
          %s309 = scalar_select %p308, %s28, 0
          %s310 = sadd.s32 %s309, %s307
          %s311 = scalar_lea.vmem %s1, %s310
        $region44: #{tpu_custom_call.1} parent=35 // pred_fallthru
          _
      $region36: #{tpu_custom_call.1} parent=5 // pred_fallthru
        _
      %p312 = scmp.le.s32.totalorder 1, %s20
      %p313 = scmp.lt.s32.totalorder %s20, 3
      %p314 = pnand %p312, %p313
      %p315 = pneg %p314
      // Predicated region
      $region45: #{tpu_custom_call.1} parent=5 // pred_check
        _
      $region46: #{tpu_custom_call.1} parent=5 // pred_check_branch
        %317 = sbr.rel (%p314) target = $region48
      $region47: #{tpu_custom_call.1} parent=5 // pred_region
        %s318 = ssub.s32 %s20, 1
        %s319 = sand.u32 %s47, 1
        %s320 = scalar_lea.sflag [#allocation6], %s319
        %s321 = sand.u32 %s47, 1
        %s322 = smul.addr %s321, 8
        %s323 = scalar_lea.vmem [#allocation5], %s322
        // Predicated region
        $region49: #{tpu_custom_call.1} parent=47 // pred_check
          %p324 = pneg %p60
        $region50: #{tpu_custom_call.1} parent=47 // pred_check_branch
          %326 = sbr.rel (%p324) target = $region52
        $region51: #{tpu_custom_call.1} parent=47 // pred_region
          %327 = dma.done %s320, 128
        $region52: #{tpu_custom_call.1} parent=47 // pred_fallthru
          _
        // Predicated region
        $region53: #{tpu_custom_call.1} parent=47 // pred_check
          %p328 = pneg %p109
        $region54: #{tpu_custom_call.1} parent=47 // pred_check_branch
          %330 = sbr.rel (%p328) target = $region56
        $region55: #{tpu_custom_call.1} parent=47 // pred_region
          %331 = dma.done [#allocation9], 512
        $region56: #{tpu_custom_call.1} parent=47 // pred_fallthru
          _
        // Predicated region
        $region57: #{tpu_custom_call.1} parent=47 // pred_check
          %p332 = pneg %p151
        $region58: #{tpu_custom_call.1} parent=47 // pred_check_branch
          %334 = sbr.rel (%p332) target = $region60
        $region59: #{tpu_custom_call.1} parent=47 // pred_region
          %335 = dma.done [#allocation9], 3072
        $region60: #{tpu_custom_call.1} parent=47 // pred_fallthru
          _
        %s336 = sand.u32 %s47, 1
        %s337 = scalar_lea.sflag [#allocation6], %s336
        %s338 = sand.u32 %s47, 1
        %s339 = smul.addr %s338, 8
        %s340 = scalar_lea.vmem [#allocation5], %s339
        %p341 = pneg %p60
        %p342 = pneg %p57
        %p343 = scmp.lt.s32.totalorder %s29, 1
        %s344 = scalar_select %p343, %s29, 1
        %p345 = scmp.lt.s32.totalorder %s30, 0
        %s346 = scalar_select %p345, %s30, 0
        %s347 = sadd.s32 %s346, %s344
        %s348 = scalar_lea.vmem %s1, %s347
        %p349 = pneg %p88
        %p350 = pneg %p85
        %p351 = pneg %p109
        %p352 = pneg %p106
        %p353 = pneg %p130
        %p354 = pneg %p127
        %p355 = pneg %p151
        %p356 = pneg %p148
        %p357 = pneg %p172
        %p358 = pneg %p169
        %p359 = scmp.lt.s32.totalorder %s30, 0
        %s360 = scalar_select %p359, %s30, 0
        %s361 = smul.addr %s360, 8
        %s362 = scalar_lea.vmem %s6, %s361
        %p363 = pneg %p198
        %p364 = pneg %p195
        %p365 = pneg %p226
        %p366 = pneg %p223
        %s367 = sand.u32 %s213, 1
        %s368 = scalar_lea.sflag [#allocation7], %s367
        %s369 = sand.u32 %s213, 1
        %s370 = smul.addr %s369, 8
        %s371 = scalar_lea.vmem [#allocation11], %s370
        %p372 = scmp.lt.s32.totalorder %s29, 1
        %s373 = scalar_select %p372, %s29, 1
        %p374 = scmp.lt.s32.totalorder %s30, 0
        %s375 = scalar_select %p374, %s30, 0
        %s376 = sadd.s32 %s375, %s373
        %s377 = scalar_lea.vmem %s1, %s376
        %p378 = scmp.lt.s32.totalorder %s30, 0
        %s379 = scalar_select %p378, %s30, 0
        %s380 = smul.addr %s379, 8
        %s381 = scalar_lea.vmem %s6, %s380
        %v383 = vld [vmem:[%s323 + $0x1] sm:$0x7f]
        %vm384 = vcmask 194560
        %385 = vst.msk [vmem:[#allocation2] sm:$0x7f] %vm384, %v383
        %v386 = vld [vmem:[%s377] sm:$0x1]
        %vm387 = vcmask 188416
        %388 = vst.msk [vmem:[#allocation2 + $0x7] sm:$0x1] %vm387, %v386
        %v389 = vld [vmem:[#allocation8] sm:$0xff]
        %v390 = vld [vmem:[#allocation8 + $0x8] sm:$0xff]
        %v391 = vld [vmem:[#allocation8 + $0x10] sm:$0xff]
        %v392 = vld [vmem:[#allocation8 + $0x18] sm:$0x7]
        %v393 = vld [vmem:[%s3] sm:$0x1]
        %v394 = vld [vmem:[%s323] sm:$0xff]
        %vm395 = vcmask 23552
        %396 = vst.msk [vmem:[#allocation3] sm:$0xff] %vm395, %v394
        %v397 = vld [vmem:[%s323] sm:$0xff]
        %399 = vrot.lane.b32.xlu0 %v397, 113
        %v400 = vpop.permute.xlu0 %399
        %vm402 = vcmask 97352
        %403 = vst.msk [vmem:[#allocation3] sm:$0xff] %vm402, %v400
        %v404 = vld [vmem:[#allocation2] sm:$0xff]
        %406 = vrot.lane.b32.xlu0 %v404, 18
        %v407 = vpop.permute.xlu0 %406
        %vm409 = vcmask 171152
        %410 = vst.msk [vmem:[#allocation3] sm:$0xff] %vm409, %v407
        %v411 = vld [vmem:[%s323] sm:$0xff]
        %413 = vrot.lane.b32.xlu0 %v411, 123
        %v414 = vpop.permute.xlu0 %413
        %vm416 = vcmask 48152
        %417 = vst.msk [vmem:[#allocation3] sm:$0xff] %vm416, %v414
        %v418 = vld [vmem:[%s323] sm:$0xff]
        %420 = vrot.lane.b32.xlu0 %v418, 108
        %v421 = vpop.permute.xlu0 %420
        %vm423 = vcmask 121952
        %424 = vst.msk [vmem:[#allocation3] sm:$0xff] %vm423, %v421
        %v425 = vld [vmem:[#allocation2] sm:$0xff]
        %427 = vrot.lane.b32.xlu0 %v425, 13
        %v428 = vpop.permute.xlu0 %427
        %vm430 = vcmask 195752
        %431 = vst.msk [vmem:[#allocation3] sm:$0xff] %vm430, %v428
        %v432 = vld [vmem:[%s323] sm:$0xff]
        %434 = vrot.lane.b32.xlu0 %v432, 118
        %v435 = vpop.permute.xlu0 %434
        %vm437 = vcmask 72752
        %438 = vst.msk [vmem:[#allocation3] sm:$0xff] %vm437, %v435
        %v439 = vld [vmem:[%s323] sm:$0xff]
        %441 = vrot.lane.b32.xlu0 %v439, 103
        %v442 = vpop.permute.xlu0 %441
        %vm444 = vcmask 146552
        %445 = vst.msk [vmem:[#allocation3] sm:$0xff] %vm444, %v442
        %v446 = vld [vmem:[#allocation2] sm:$0xff]
        %448 = vrot.lane.b32.xlu0 %v446, 8
        %v449 = vpop.permute.xlu0 %448
        %vm451 = vcmask 220352
        %452 = vst.msk [vmem:[#allocation3] sm:$0xff] %vm451, %v449
        %v453 = vld [vmem:[#allocation3] sm:$0xff]
        %v455 = vlaneseq
        %v456 = vshrl.u32 %v455, 7
        %v457 = vsub.s32 0, %v456
        %v458 = vrot.slane %v393, %v457
        %vm460 = vcmask 220160
        %v462 = vsel %vm460, %v453, 0
        %vm464 = vcmask 1042432
        %v466 = vsel %vm464, %v392, 0
        %468 = vmatprep.subr.mxu0 0.0
        %469 = vmatpush1.msra.mxu0 %v389
        %470 = vmatprep.subr.mxu0 0.0
        %471 = vmatpush1.msra.mxu0 %v390
        %472 = vmatprep.subr.mxu0 0.0
        %473 = vmatpush1.msra.mxu0 %v391
        %474 = vmatprep.subr.mxu0 0.0
        %475 = vmatpush1.msra.mxu0 %v466
        %476 = vmatprep.subr.mxu0 0.0
        %477 = vmatpush1.msra.mxu0 0.0
        %478 = vmatprep.subr.mxu0 0.0
        %479 = vmatpush1.msra.mxu0 0.0
        %480 = vmatprep.subr.mxu0 0.0
        %481 = vmatpush1.msra.mxu0 0.0
        %482 = vmatprep.subr.mxu0 0.0
        %483 = vmatpush1.msra.mxu0 0.0
        %484 = vmatprep.subr.mxu0 0.0
        %485 = vmatpush1.msra.mxu0 0.0
        %486 = vmatprep.subr.mxu0 0.0
        %487 = vmatpush1.msra.mxu0 0.0
        %488 = vmatprep.subr.mxu0 0.0
        %489 = vmatpush1.msra.mxu0 0.0
        %490 = vmatprep.subr.mxu0 0.0
        %491 = vmatpush1.msra.mxu0 0.0
        %492 = vmatprep.subr.mxu0 0.0
        %493 = vmatpush1.msra.mxu0 0.0
        %494 = vmatprep.subr.mxu0 0.0
        %495 = vmatpush1.msra.mxu0 0.0
        %496 = vmatprep.subr.mxu0 0.0
        %497 = vmatpush1.msra.mxu0 0.0
        %498 = vmatprep.subr.mxu0 0.0
        %499 = vmatpush1.msra.mxu0 0.0
        %500 = vmatprep.subr.mxu0 0.0
        %501 = vmatpush1.msra.mxu0 0.0
        %502 = vmatprep.subr.mxu0 0.0
        %503 = vmatpush1.msra.mxu0 0.0
        %504 = vmatprep.subr.mxu0 0.0
        %505 = vmatpush1.msra.mxu0 0.0
        %506 = vmatprep.subr.mxu0 0.0
        %507 = vmatpush1.msra.mxu0 0.0
        %508 = vmatprep.subr.mxu0 0.0
        %509 = vmatpush1.msra.mxu0 0.0
        %510 = vmatprep.subr.mxu0 0.0
        %511 = vmatpush1.msra.mxu0 0.0
        %512 = vmatprep.subr.mxu0 0.0
        %513 = vmatpush1.msra.mxu0 0.0
        %514 = vmatprep.subr.mxu0 0.0
        %515 = vmatpush1.msra.mxu0 0.0
        %516 = vmatprep.subr.mxu0 0.0
        %517 = vmatpush1.msra.mxu0 0.0
        %518 = vmatprep.subr.mxu0 0.0
        %519 = vmatpush1.msra.mxu0 0.0
        %520 = vmatprep.subr.mxu0 0.0
        %521 = vmatpush1.msra.mxu0 0.0
        %522 = vmatprep.subr.mxu0 0.0
        %523 = vmatpush1.msra.mxu0 0.0
        %524 = vmatprep.subr.mxu0 0.0
        %525 = vmatpush1.msra.mxu0 0.0
        %526 = vmatprep.subr.mxu0 0.0
        %527 = vmatpush1.msra.mxu0 0.0
        %528 = vmatprep.subr.mxu0 0.0
        %529 = vmatpush1.msra.mxu0 0.0
        %530 = vmatprep.subr.mxu0 0.0
        %531 = vmatpush1.msra.mxu0 0.0
        %532 = vmatprep.mubr.f32.mxu0 0.0
        %533 = vmatmul.mubr.f32.gmra.mrb[0].mxu0 %v462
        %v534 = vpop.f32.mrb[0].mxu0
        %v535 = vadd.f32 %v458, %v534
        %v536 = vpop.f32.mrb[0].mxu0
        %537 = vdwg.mxu0
        %v538 = vmax.f32 %v535, 0.0
        %v539 = vpack.c.bf16 %v538, %v538
        %540 = vst [vmem:[#allocation4] sm:$0xf] %v539
        %v541 = vld [vmem:[%s323] sm:$0xff]
        %543 = vrot.lane.b32.xlu0 %v541, 126
        %v544 = vpop.permute.xlu0 %543
        %546 = vst.msk [vmem:[#allocation3] sm:$0xff] %vm395, %v544
        %v547 = vld [vmem:[%s323] sm:$0xff]
        %549 = vrot.lane.b32.xlu0 %v547, 111
        %v550 = vpop.permute.xlu0 %549
        %552 = vst.msk [vmem:[#allocation3] sm:$0xff] %vm402, %v550
        %v553 = vld [vmem:[#allocation2] sm:$0xff]
        %555 = vrot.lane.b32.xlu0 %v553, 16
        %v556 = vpop.permute.xlu0 %555
        %558 = vst.msk [vmem:[#allocation3] sm:$0xff] %vm409, %v556
        %v559 = vld [vmem:[%s323] sm:$0xff]
        %561 = vrot.lane.b32.xlu0 %v559, 121
        %v562 = vpop.permute.xlu0 %561
        %564 = vst.msk [vmem:[#allocation3] sm:$0xff] %vm416, %v562
        %v565 = vld [vmem:[%s323] sm:$0xff]
        %567 = vrot.lane.b32.xlu0 %v565, 106
        %v568 = vpop.permute.xlu0 %567
        %570 = vst.msk [vmem:[#allocation3] sm:$0xff] %vm423, %v568
        %v571 = vld [vmem:[#allocation2] sm:$0xff]
        %573 = vrot.lane.b32.xlu0 %v571, 11
        %v574 = vpop.permute.xlu0 %573
        %576 = vst.msk [vmem:[#allocation3] sm:$0xff] %vm430, %v574
        %v577 = vld [vmem:[%s323] sm:$0xff]
        %579 = vrot.lane.b32.xlu0 %v577, 116
        %v580 = vpop.permute.xlu0 %579
        %582 = vst.msk [vmem:[#allocation3] sm:$0xff] %vm437, %v580
        %v583 = vld [vmem:[%s323] sm:$0xff]
        %585 = vrot.lane.b32.xlu0 %v583, 101
        %v586 = vpop.permute.xlu0 %585
        %588 = vst.msk [vmem:[#allocation3] sm:$0xff] %vm444, %v586
        %v589 = vld [vmem:[#allocation2] sm:$0xff]
        %591 = vrot.lane.b32.xlu0 %v589, 6
        %v592 = vpop.permute.xlu0 %591
        %594 = vst.msk [vmem:[#allocation3] sm:$0xff] %vm451, %v592
        %v595 = vld [vmem:[#allocation3] sm:$0xff]
        %v597 = vsel %vm460, %v595, 0
        %599 = vmatprep.subr.mxu0 0.0
        %600 = vmatpush1.msra.mxu0 %v389
        %601 = vmatprep.subr.mxu0 0.0
        %602 = vmatpush1.msra.mxu0 %v390
        %603 = vmatprep.subr.mxu0 0.0
        %604 = vmatpush1.msra.mxu0 %v391
        %605 = vmatprep.subr.mxu0 0.0
        %606 = vmatpush1.msra.mxu0 %v466
        %607 = vmatprep.subr.mxu0 0.0
        %608 = vmatpush1.msra.mxu0 0.0
        %609 = vmatprep.subr.mxu0 0.0
        %610 = vmatpush1.msra.mxu0 0.0
        %611 = vmatprep.subr.mxu0 0.0
        %612 = vmatpush1.msra.mxu0 0.0
        %613 = vmatprep.subr.mxu0 0.0
        %614 = vmatpush1.msra.mxu0 0.0
        %615 = vmatprep.subr.mxu0 0.0
        %616 = vmatpush1.msra.mxu0 0.0
        %617 = vmatprep.subr.mxu0 0.0
        %618 = vmatpush1.msra.mxu0 0.0
        %619 = vmatprep.subr.mxu0 0.0
        %620 = vmatpush1.msra.mxu0 0.0
        %621 = vmatprep.subr.mxu0 0.0
        %622 = vmatpush1.msra.mxu0 0.0
        %623 = vmatprep.subr.mxu0 0.0
        %624 = vmatpush1.msra.mxu0 0.0
        %625 = vmatprep.subr.mxu0 0.0
        %626 = vmatpush1.msra.mxu0 0.0
        %627 = vmatprep.subr.mxu0 0.0
        %628 = vmatpush1.msra.mxu0 0.0
        %629 = vmatprep.subr.mxu0 0.0
        %630 = vmatpush1.msra.mxu0 0.0
        %631 = vmatprep.subr.mxu0 0.0
        %632 = vmatpush1.msra.mxu0 0.0
        %633 = vmatprep.subr.mxu0 0.0
        %634 = vmatpush1.msra.mxu0 0.0
        %635 = vmatprep.subr.mxu0 0.0
        %636 = vmatpush1.msra.mxu0 0.0
        %637 = vmatprep.subr.mxu0 0.0
        %638 = vmatpush1.msra.mxu0 0.0
        %639 = vmatprep.subr.mxu0 0.0
        %640 = vmatpush1.msra.mxu0 0.0
        %641 = vmatprep.subr.mxu0 0.0
        %642 = vmatpush1.msra.mxu0 0.0
        %643 = vmatprep.subr.mxu0 0.0
        %644 = vmatpush1.msra.mxu0 0.0
        %645 = vmatprep.subr.mxu0 0.0
        %646 = vmatpush1.msra.mxu0 0.0
        %647 = vmatprep.subr.mxu0 0.0
        %648 = vmatpush1.msra.mxu0 0.0
        %649 = vmatprep.subr.mxu0 0.0
        %650 = vmatpush1.msra.mxu0 0.0
        %651 = vmatprep.subr.mxu0 0.0
        %652 = vmatpush1.msra.mxu0 0.0
        %653 = vmatprep.subr.mxu0 0.0
        %654 = vmatpush1.msra.mxu0 0.0
        %655 = vmatprep.subr.mxu0 0.0
        %656 = vmatpush1.msra.mxu0 0.0
        %657 = vmatprep.subr.mxu0 0.0
        %658 = vmatpush1.msra.mxu0 0.0
        %659 = vmatprep.subr.mxu0 0.0
        %660 = vmatpush1.msra.mxu0 0.0
        %661 = vmatprep.subr.mxu0 0.0
        %662 = vmatpush1.msra.mxu0 0.0
        %663 = vmatprep.mubr.f32.mxu0 0.0
        %664 = vmatmul.mubr.f32.gmra.mrb[0].mxu0 %v597
        %v665 = vpop.f32.mrb[0].mxu0
        %v666 = vadd.f32 %v458, %v665
        %v667 = vpop.f32.mrb[0].mxu0
        %668 = vdwg.mxu0
        %v669 = vmax.f32 %v666, 0.0
        %v670 = vpack.c.bf16 %v669, %v669
        %671 = vst [vmem:[#allocation4 + $0x4] sm:$0xf] %v670
        %v672 = vld [vmem:[%s323] sm:$0xff]
        %674 = vrot.lane.b32.xlu0 %v672, 124
        %v675 = vpop.permute.xlu0 %674
        %677 = vst.msk [vmem:[#allocation3] sm:$0xff] %vm395, %v675
        %v678 = vld [vmem:[%s323] sm:$0xff]
        %680 = vrot.lane.b32.xlu0 %v678, 109
        %v681 = vpop.permute.xlu0 %680
        %683 = vst.msk [vmem:[#allocation3] sm:$0xff] %vm402, %v681
        %v684 = vld [vmem:[#allocation2] sm:$0xff]
        %686 = vrot.lane.b32.xlu0 %v684, 14
        %v687 = vpop.permute.xlu0 %686
        %689 = vst.msk [vmem:[#allocation3] sm:$0xff] %vm409, %v687
        %v690 = vld [vmem:[%s323] sm:$0xff]
        %692 = vrot.lane.b32.xlu0 %v690, 119
        %v693 = vpop.permute.xlu0 %692
        %695 = vst.msk [vmem:[#allocation3] sm:$0xff] %vm416, %v693
        %v696 = vld [vmem:[%s323] sm:$0xff]
        %698 = vrot.lane.b32.xlu0 %v696, 104
        %v699 = vpop.permute.xlu0 %698
        %701 = vst.msk [vmem:[#allocation3] sm:$0xff] %vm423, %v699
        %v702 = vld [vmem:[#allocation2] sm:$0xff]
        %704 = vrot.lane.b32.xlu0 %v702, 9
        %v705 = vpop.permute.xlu0 %704
        %707 = vst.msk [vmem:[#allocation3] sm:$0xff] %vm430, %v705
        %v708 = vld [vmem:[%s323] sm:$0xff]
        %710 = vrot.lane.b32.xlu0 %v708, 114
        %v711 = vpop.permute.xlu0 %710
        %713 = vst.msk [vmem:[#allocation3] sm:$0xff] %vm437, %v711
        %v714 = vld [vmem:[%s323] sm:$0xff]
        %716 = vrot.lane.b32.xlu0 %v714, 99
        %v717 = vpop.permute.xlu0 %716
        %719 = vst.msk [vmem:[#allocation3] sm:$0xff] %vm444, %v717
        %v720 = vld [vmem:[#allocation2] sm:$0xff]
        %722 = vrot.lane.b32.xlu0 %v720, 4
        %v723 = vpop.permute.xlu0 %722
        %725 = vst.msk [vmem:[#allocation3] sm:$0xff] %vm451, %v723
        %v726 = vld [vmem:[#allocation3] sm:$0xff]
        %v728 = vsel %vm460, %v726, 0
        %730 = vmatprep.subr.mxu0 0.0
        %731 = vmatpush1.msra.mxu0 %v389
        %732 = vmatprep.subr.mxu0 0.0
        %733 = vmatpush1.msra.mxu0 %v390
        %734 = vmatprep.subr.mxu0 0.0
        %735 = vmatpush1.msra.mxu0 %v391
        %736 = vmatprep.subr.mxu0 0.0
        %737 = vmatpush1.msra.mxu0 %v466
        %738 = vmatprep.subr.mxu0 0.0
        %739 = vmatpush1.msra.mxu0 0.0
        %740 = vmatprep.subr.mxu0 0.0
        %741 = vmatpush1.msra.mxu0 0.0
        %742 = vmatprep.subr.mxu0 0.0
        %743 = vmatpush1.msra.mxu0 0.0
        %744 = vmatprep.subr.mxu0 0.0
        %745 = vmatpush1.msra.mxu0 0.0
        %746 = vmatprep.subr.mxu0 0.0
        %747 = vmatpush1.msra.mxu0 0.0
        %748 = vmatprep.subr.mxu0 0.0
        %749 = vmatpush1.msra.mxu0 0.0
        %750 = vmatprep.subr.mxu0 0.0
        %751 = vmatpush1.msra.mxu0 0.0
        %752 = vmatprep.subr.mxu0 0.0
        %753 = vmatpush1.msra.mxu0 0.0
        %754 = vmatprep.subr.mxu0 0.0
        %755 = vmatpush1.msra.mxu0 0.0
        %756 = vmatprep.subr.mxu0 0.0
        %757 = vmatpush1.msra.mxu0 0.0
        %758 = vmatprep.subr.mxu0 0.0
        %759 = vmatpush1.msra.mxu0 0.0
        %760 = vmatprep.subr.mxu0 0.0
        %761 = vmatpush1.msra.mxu0 0.0
        %762 = vmatprep.subr.mxu0 0.0
        %763 = vmatpush1.msra.mxu0 0.0
        %764 = vmatprep.subr.mxu0 0.0
        %765 = vmatpush1.msra.mxu0 0.0
        %766 = vmatprep.subr.mxu0 0.0
        %767 = vmatpush1.msra.mxu0 0.0
        %768 = vmatprep.subr.mxu0 0.0
        %769 = vmatpush1.msra.mxu0 0.0
        %770 = vmatprep.subr.mxu0 0.0
        %771 = vmatpush1.msra.mxu0 0.0
        %772 = vmatprep.subr.mxu0 0.0
        %773 = vmatpush1.msra.mxu0 0.0
        %774 = vmatprep.subr.mxu0 0.0
        %775 = vmatpush1.msra.mxu0 0.0
        %776 = vmatprep.subr.mxu0 0.0
        %777 = vmatpush1.msra.mxu0 0.0
        %778 = vmatprep.subr.mxu0 0.0
        %779 = vmatpush1.msra.mxu0 0.0
        %780 = vmatprep.subr.mxu0 0.0
        %781 = vmatpush1.msra.mxu0 0.0
        %782 = vmatprep.subr.mxu0 0.0
        %783 = vmatpush1.msra.mxu0 0.0
        %784 = vmatprep.subr.mxu0 0.0
        %785 = vmatpush1.msra.mxu0 0.0
        %786 = vmatprep.subr.mxu0 0.0
        %787 = vmatpush1.msra.mxu0 0.0
        %788 = vmatprep.subr.mxu0 0.0
        %789 = vmatpush1.msra.mxu0 0.0
        %790 = vmatprep.subr.mxu0 0.0
        %791 = vmatpush1.msra.mxu0 0.0
        %792 = vmatprep.subr.mxu0 0.0
        %793 = vmatpush1.msra.mxu0 0.0
        %794 = vmatprep.mubr.f32.mxu0 0.0
        %795 = vmatmul.mubr.f32.gmra.mrb[0].mxu0 %v728
        %v796 = vpop.f32.mrb[0].mxu0
        %v797 = vadd.f32 %v458, %v796
        %v798 = vpop.f32.mrb[0].mxu0
        %799 = vdwg.mxu0
        %v800 = vmax.f32 %v797, 0.0
        %v801 = vpack.c.bf16 %v800, %v800
        %802 = vst [vmem:[#allocation4 + $0x8] sm:$0xf] %v801
        %v803 = vld [vmem:[#allocation4] sm:$0xff]
        %v804 = vld [vmem:[#allocation4 + $0x8] sm:$0xf]
        %v805 = vld [vmem:[#allocation10] sm:$0xf]
        %v806 = vld [vmem:[#allocation10 + $0x4] sm:$0xf]
        %v807 = vld [vmem:[#allocation10 + $0x8] sm:$0xf]
        %v808 = vld [vmem:[#allocation10 + $0xc] sm:$0xf]
        %v809 = vld [vmem:[#allocation10 + $0x10] sm:$0xf]
        %v810 = vld [vmem:[#allocation10 + $0x14] sm:$0xf]
        %v811 = vld [vmem:[#allocation10 + $0x18] sm:$0xf]
        %v812 = vld [vmem:[#allocation10 + $0x1c] sm:$0xf]
        %v813 = vld [vmem:[#allocation10 + $0x20] sm:$0xf]
        %v814 = vld [vmem:[#allocation10 + $0x24] sm:$0xf]
        %v815 = vld [vmem:[#allocation10 + $0x28] sm:$0xf]
        %v816 = vld [vmem:[#allocation10 + $0x2c] sm:$0xf]
        %v817 = vld [vmem:[#allocation10 + $0x30] sm:$0xf]
        %v818 = vld [vmem:[#allocation10 + $0x34] sm:$0xf]
        %v819 = vld [vmem:[#allocation10 + $0x38] sm:$0xf]
        %v820 = vld [vmem:[#allocation10 + $0x3c] sm:$0xf]
        %v821 = vld [vmem:[#allocation10 + $0x40] sm:$0xf]
        %v822 = vld [vmem:[#allocation10 + $0x44] sm:$0xf]
        %v823 = vld [vmem:[#allocation10 + $0x48] sm:$0xf]
        %v824 = vld [vmem:[#allocation10 + $0x4c] sm:$0xf]
        %v825 = vld [vmem:[#allocation10 + $0x50] sm:$0xf]
        %v826 = vld [vmem:[#allocation10 + $0x54] sm:$0xf]
        %v827 = vld [vmem:[#allocation10 + $0x58] sm:$0xf]
        %v828 = vld [vmem:[#allocation10 + $0x5c] sm:$0xf]
        %v829 = vld [vmem:[#allocation10 + $0x60] sm:$0xf]
        %v830 = vld [vmem:[#allocation10 + $0x64] sm:$0xf]
        %v831 = vld [vmem:[#allocation10 + $0x68] sm:$0xf]
        %v832 = vld [vmem:[#allocation10 + $0x6c] sm:$0xf]
        %v833 = vld [vmem:[#allocation10 + $0x70] sm:$0xf]
        %v834 = vld [vmem:[#allocation10 + $0x74] sm:$0xf]
        %v835 = vld [vmem:[#allocation10 + $0x78] sm:$0xf]
        %v836 = vld [vmem:[#allocation10 + $0x7c] sm:$0xf]
        %v837 = vld [vmem:[#allocation10 + $0x80] sm:$0xf]
        %v838 = vld [vmem:[#allocation10 + $0x84] sm:$0xf]
        %v839 = vld [vmem:[#allocation10 + $0x88] sm:$0xf]
        %v840 = vld [vmem:[#allocation10 + $0x8c] sm:$0xf]
        %v841 = vld [vmem:[#allocation10 + $0x90] sm:$0xf]
        %v842 = vld [vmem:[#allocation10 + $0x94] sm:$0xf]
        %v843 = vld [vmem:[#allocation10 + $0x98] sm:$0xf]
        %v844 = vld [vmem:[#allocation10 + $0x9c] sm:$0xf]
        %v845 = vld [vmem:[#allocation10 + $0xa0] sm:$0xf]
        %v846 = vld [vmem:[#allocation10 + $0xa4] sm:$0xf]
        %v847 = vld [vmem:[#allocation10 + $0xa8] sm:$0xf]
        %v848 = vld [vmem:[#allocation10 + $0xac] sm:$0xf]
        %v849 = vld [vmem:[#allocation10 + $0xb0] sm:$0xf]
        %v850 = vld [vmem:[#allocation10 + $0xb4] sm:$0xf]
        %v851 = vld [vmem:[#allocation10 + $0xb8] sm:$0xf]
        %v852 = vld [vmem:[#allocation10 + $0xbc] sm:$0xf]
        %v853 = vld [vmem:[%s5] sm:$0x1]
        %v855 = vlaneseq
        %v856 = vshrl.u32 %v855, 7
        %v857 = vsub.s32 0, %v856
        %v858 = vrot.slane %v853, %v857
        %v862 = vunpack.c.l.b16 %v803
        %v863 = vunpack.c.h.b16 %v803
        %v864 = vunpack.c.l.b16 %v804
        %v865 = vpack.c.b16 %v862, %v862
        %v866 = vpack.c.b16 %v863, %v863
        %v867 = vpack.c.b16 %v864, %v864
        %v919 = vunpack.c.l.b16 %v805
        %v920 = vunpack.c.l.b16 %v806
        %v921 = vunpack.c.l.b16 %v807
        %v922 = vunpack.c.l.b16 %v808
        %v923 = vunpack.c.l.b16 %v809
        %v924 = vunpack.c.l.b16 %v810
        %v925 = vunpack.c.l.b16 %v811
        %v926 = vunpack.c.l.b16 %v812
        %v927 = vunpack.c.l.b16 %v813
        %v928 = vunpack.c.l.b16 %v814
        %v929 = vunpack.c.l.b16 %v815
        %v930 = vunpack.c.l.b16 %v816
        %v931 = vunpack.c.l.b16 %v817
        %v932 = vunpack.c.l.b16 %v818
        %v933 = vunpack.c.l.b16 %v819
        %v934 = vunpack.c.l.b16 %v820
        %v935 = vunpack.c.l.b16 %v821
        %v936 = vunpack.c.l.b16 %v822
        %v937 = vunpack.c.l.b16 %v823
        %v938 = vunpack.c.l.b16 %v824
        %v939 = vunpack.c.l.b16 %v825
        %v940 = vunpack.c.l.b16 %v826
        %v941 = vunpack.c.l.b16 %v827
        %v942 = vunpack.c.l.b16 %v828
        %v943 = vunpack.c.l.b16 %v829
        %v944 = vunpack.c.l.b16 %v830
        %v945 = vunpack.c.l.b16 %v831
        %v946 = vunpack.c.l.b16 %v832
        %v947 = vunpack.c.l.b16 %v833
        %v948 = vunpack.c.l.b16 %v834
        %v949 = vunpack.c.l.b16 %v835
        %v950 = vunpack.c.l.b16 %v836
        %v951 = vunpack.c.l.b16 %v837
        %v952 = vunpack.c.l.b16 %v838
        %v953 = vunpack.c.l.b16 %v839
        %v954 = vunpack.c.l.b16 %v840
        %v955 = vunpack.c.l.b16 %v841
        %v956 = vunpack.c.l.b16 %v842
        %v957 = vunpack.c.l.b16 %v843
        %v958 = vunpack.c.l.b16 %v844
        %v959 = vunpack.c.l.b16 %v845
        %v960 = vunpack.c.l.b16 %v846
        %v961 = vunpack.c.l.b16 %v847
        %v962 = vunpack.c.l.b16 %v848
        %v963 = vunpack.c.l.b16 %v849
        %v964 = vunpack.c.l.b16 %v850
        %v965 = vunpack.c.l.b16 %v851
        %v966 = vunpack.c.l.b16 %v852
        %v967 = vpack.c.b16 %v920, %v919
        %v968 = vpack.c.b16 %v922, %v921
        %v969 = vpack.c.b16 %v924, %v923
        %v970 = vpack.c.b16 %v926, %v925
        %v971 = vpack.c.b16 %v928, %v927
        %v972 = vpack.c.b16 %v930, %v929
        %v973 = vpack.c.b16 %v932, %v931
        %v974 = vpack.c.b16 %v934, %v933
        %v975 = vpack.c.b16 %v936, %v935
        %v976 = vpack.c.b16 %v938, %v937
        %v977 = vpack.c.b16 %v940, %v939
        %v978 = vpack.c.b16 %v942, %v941
        %v979 = vpack.c.b16 %v944, %v943
        %v980 = vpack.c.b16 %v946, %v945
        %v981 = vpack.c.b16 %v948, %v947
        %v982 = vpack.c.b16 %v950, %v949
        %v983 = vpack.c.b16 %v952, %v951
        %v984 = vpack.c.b16 %v954, %v953
        %v985 = vpack.c.b16 %v956, %v955
        %v986 = vpack.c.b16 %v958, %v957
        %v987 = vpack.c.b16 %v960, %v959
        %v988 = vpack.c.b16 %v962, %v961
        %v989 = vpack.c.b16 %v964, %v963
        %v990 = vpack.c.b16 %v966, %v965
        %1015 = vmatprep.subr.bf16.mxu0 0
        %1016 = vmatpush1.bf16.msra.mxu0 %v967
        %1017 = vmatprep.subr.bf16.mxu0 0
        %1018 = vmatpush1.bf16.msra.mxu0 %v968
        %1019 = vmatprep.subr.bf16.mxu0 0
        %1020 = vmatpush1.bf16.msra.mxu0 %v969
        %1021 = vmatprep.subr.bf16.mxu0 0
        %1022 = vmatpush1.bf16.msra.mxu0 %v970
        %1023 = vmatprep.subr.bf16.mxu0 0
        %1024 = vmatpush1.bf16.msra.mxu0 %v971
        %1025 = vmatprep.subr.bf16.mxu0 0
        %1026 = vmatpush1.bf16.msra.mxu0 %v972
        %1027 = vmatprep.subr.bf16.mxu0 0
        %1028 = vmatpush1.bf16.msra.mxu0 %v973
        %1029 = vmatprep.subr.bf16.mxu0 0
        %1030 = vmatpush1.bf16.msra.mxu0 %v974
        %1031 = vmatprep.subr.bf16.mxu0 0
        %1032 = vmatpush1.bf16.msra.mxu0 %v975
        %1033 = vmatprep.subr.bf16.mxu0 0
        %1034 = vmatpush1.bf16.msra.mxu0 %v976
        %1035 = vmatprep.subr.bf16.mxu0 0
        %1036 = vmatpush1.bf16.msra.mxu0 %v977
        %1037 = vmatprep.subr.bf16.mxu0 0
        %1038 = vmatpush1.bf16.msra.mxu0 %v978
        %1039 = vmatprep.subr.bf16.mxu0 0
        %1040 = vmatpush1.bf16.msra.mxu0 %v979
        %1041 = vmatprep.subr.bf16.mxu0 0
        %1042 = vmatpush1.bf16.msra.mxu0 %v980
        %1043 = vmatprep.subr.bf16.mxu0 0
        %1044 = vmatpush1.bf16.msra.mxu0 %v981
        %1045 = vmatprep.subr.bf16.mxu0 0
        %1046 = vmatpush1.bf16.msra.mxu0 %v982
        %1047 = vmatprep.mubr.bf16.mxu0 %v866
        %1048 = vmatmul.mubr.bf16.gmra.mrb[0].mxu0 %v865
        %v1049 = vpop.f32.mrb[0].mxu0
        %v1050 = vadd.f32 %v858, %v1049
        %v1051 = vpop.f32.mrb[0].mxu0
        %v1052 = vpop.f32.mrb[0].mxu0
        %v1053 = vpop.f32.mrb[0].mxu0
        %1054 = vdwg.mxu0
        %1055 = vmatprep.subr.bf16.mxu0 0
        %1056 = vmatpush1.bf16.msra.mxu0 %v983
        %1057 = vmatprep.subr.bf16.mxu0 0
        %1058 = vmatpush1.bf16.msra.mxu0 %v984
        %1059 = vmatprep.subr.bf16.mxu0 0
        %1060 = vmatpush1.bf16.msra.mxu0 %v985
        %1061 = vmatprep.subr.bf16.mxu0 0
        %1062 = vmatpush1.bf16.msra.mxu0 %v986
        %1063 = vmatprep.subr.bf16.mxu0 0
        %1064 = vmatpush1.bf16.msra.mxu0 %v987
        %1065 = vmatprep.subr.bf16.mxu0 0
        %1066 = vmatpush1.bf16.msra.mxu0 %v988
        %1067 = vmatprep.subr.bf16.mxu0 0
        %1068 = vmatpush1.bf16.msra.mxu0 %v989
        %1069 = vmatprep.subr.bf16.mxu0 0
        %1070 = vmatpush1.bf16.msra.mxu0 %v990
        %1071 = vmatprep.subr.bf16.mxu0 0
        %1072 = vmatpush1.bf16.msra.mxu0 0
        %1073 = vmatprep.subr.bf16.mxu0 0
        %1074 = vmatpush1.bf16.msra.mxu0 0
        %1075 = vmatprep.subr.bf16.mxu0 0
        %1076 = vmatpush1.bf16.msra.mxu0 0
        %1077 = vmatprep.subr.bf16.mxu0 0
        %1078 = vmatpush1.bf16.msra.mxu0 0
        %1079 = vmatprep.subr.bf16.mxu0 0
        %1080 = vmatpush1.bf16.msra.mxu0 0
        %1081 = vmatprep.subr.bf16.mxu0 0
        %1082 = vmatpush1.bf16.msra.mxu0 0
        %1083 = vmatprep.subr.bf16.mxu0 0
        %1084 = vmatpush1.bf16.msra.mxu0 0
        %1085 = vmatprep.subr.bf16.mxu0 0
        %1086 = vmatpush1.bf16.msra.mxu0 0
        %1087 = vmatprep.mubr.bf16.mxu0 0
        %1088 = vmatmul.mubr.bf16.gmra.mrb[0].mxu0 %v867
        %v1089 = vpop.f32.mrb[0].mxu0
        %v1090 = vadd.f32 %v1050, %v1089
        %v1091 = vpop.f32.mrb[0].mxu0
        %v1092 = vpop.f32.mrb[0].mxu0
        %v1093 = vpop.f32.mrb[0].mxu0
        %1094 = vdwg.mxu0
        %v1095 = vmul.f32 %v1090, 11.313708
        %v1096 = vld [vmem:[%s381] sm:$0xff]
        %v1097 = vadd.f32 %v1095, %v1096
        %1098 = vst [vmem:[%s371] sm:$0xff] %v1097
        %s1099 = sand.u32 %s213, 1
        %s1100 = scalar_lea.sflag [#allocation7], %s1099
        %s1101 = sand.u32 %s213, 1
        %s1102 = smul.addr %s1101, 8
        %s1103 = scalar_lea.vmem [#allocation11], %s1102
        // Predicated region
        $region61: #{tpu_custom_call.1} parent=47 // pred_check
          %p1104 = pneg %p223
        $region62: #{tpu_custom_call.1} parent=47 // pred_check_branch
          %1106 = sbr.rel (%p1104) target = $region64
        $region63: #{tpu_custom_call.1} parent=47 // pred_region
          %s1108 = ssub.s32 128, 128
          %1109 = vsyncadd %s1100, %s1108
          %s1110 = sadd.s32 %s30, %s29
          %s1111 = smul.addr %s1110, 128
          %s1112 = scalar_lea.hbm %s7, %s1111
          %s1114 = sshll.u32 %s1103, 4
          %s1115 = int_to_ptr.vmem [resolvable:$true] %s1114
          %1117 = dma.vmem_to_hbm [thread:$0]  %s1115, 128, %s1112, %s1100
        $region64: #{tpu_custom_call.1} parent=47 // pred_fallthru
          _
      $region48: #{tpu_custom_call.1} parent=5 // pred_fallthru
        _
      %p1118 = scmp.le.s32.totalorder 2, %s20
      // Predicated region
      $region65: #{tpu_custom_call.1} parent=5 // pred_check
        %p1119 = pneg %p1118
      $region66: #{tpu_custom_call.1} parent=5 // pred_check_branch
        %1121 = sbr.rel (%p1119) target = $region68
      $region67: #{tpu_custom_call.1} parent=5 // pred_region
        %s1122 = ssub.s32 %s20, 2
        // Predicated region
        $region69: #{tpu_custom_call.1} parent=67 // pred_check
          %p1123 = pneg %p229
        $region70: #{tpu_custom_call.1} parent=67 // pred_check_branch
          %1125 = sbr.rel (%p1123) target = $region72
        $region71: #{tpu_custom_call.1} parent=67 // pred_region
          %s1126 = sand.u32 %s214, 1
          %s1127 = scalar_lea.sflag [#allocation7], %s1126
          %s1128 = sand.u32 %s214, 1
          %s1129 = smul.addr %s1128, 8
          %s1130 = scalar_lea.vmem [#allocation11], %s1129
          %1131 = dma.done %s1127, 128
        $region72: #{tpu_custom_call.1} parent=67 // pred_fallthru
          _
      $region68: #{tpu_custom_call.1} parent=5 // pred_fallthru
        _
    $region6: #{tpu_custom_call.1} parent=1 // loop_footer
      %s24 = sadd.s32 1, %s20
    $region7: #{tpu_custom_call.1} parent=1 // loop_footer_branch
      %19 = sbr.rel target = $region3
    $region8: #{tpu_custom_call.1} parent=1 // loop_exit
      _
    %1132 = vsyncpa [#allocation6], 1
    %s1133 = scalar_lea.sflag [#allocation6], 1
    %1134 = vsyncpa %s1133, 1
    %1135 = vsyncpa [#allocation9], 1
    %1136 = vsyncpa [#allocation7], 1
    %s1137 = scalar_lea.sflag [#allocation7], 1
    %1138 = vsyncpa %s1137, 1

// kernel: tpu_custom_call.1
$region0: #{tpu_custom_call.1}
  #allocation0 [shape = 'u32[]', space=smem, size = 0x4, offset = 0x4, fixed_abs, tag = 'smem constant byte address 0x4 - core index']
  #allocation1 [shape = 'u32[144,128]{1,0:T(1,128)}', space=vmem, size = 0x12000, scoped, tag = 'internal scratch']
  #allocation2 [shape = 'f32[8,24]{1,0:T(8,128)}', space=vmem, size = 0x1000, scoped, tag = 'scratch operand']
  #allocation3 [shape = 'f32[8,27]{1,0:T(8,128)}', space=vmem, size = 0x1000, scoped, tag = 'scratch operand']
  #allocation4 [shape = 'bf16[8,384]{1,0:T(8,128)(2,1)}', space=vmem, size = 0x1800, scoped, tag = 'scratch operand']
  %s0 = inlined_call_operand.hbm [shape: f32[2,8,48], index: 0, kind: input, shape index: {}]
  %s1 = inlined_call_operand.vmem [shape: f32[2,1,1,24], index: 1, kind: input, shape index: {}]
  %s2 = inlined_call_operand.hbm [shape: f32[27,128], index: 2, kind: input, shape index: {}]
  %s3 = inlined_call_operand.vmem [shape: f32[1,128], index: 3, kind: input, shape index: {}]
  %s4 = inlined_call_operand.hbm [shape: bf16[384,128], index: 4, kind: input, shape index: {}]
  %s5 = inlined_call_operand.vmem [shape: f32[1,128], index: 5, kind: input, shape index: {}]
  %s6 = inlined_call_operand.vmem [shape: f32[8,128], index: 6, kind: input, shape index: {}]
  %s7 = inlined_call_operand.hbm [shape: f32[2,8,128], index: 7, kind: output, shape index: {}]
  %s8 = sld [smem:[#allocation0]]
  $region73: #{tpu_custom_call.1} parent=0
    _
  %s10 = ssub.s32 1, %s8
  %s11 = scalar_select 0, %s10, %s8
  $region1: #{tpu_custom_call.1} parent=0
    #allocation5 [shape = 'u8[8192]{0}', space=vmem, size = 0x2000, scoped, tag = 'input window, operand 0']
    #allocation6 [shape = 's32[2]{0}', space=sflag, size = 0x8, scoped, tag = 'scoped memory for tpu_custom_call.1']
    #allocation7 [shape = 's32[2]{0}', space=sflag, size = 0x8, scoped, tag = 'scoped memory for tpu_custom_call.1']
    #allocation8 [shape = 'u8[16384]{0}', space=vmem, size = 0x4000, scoped, tag = 'input window, operand 2, single buffered']
    #allocation9 [shape = 's32[1]{0}', space=sflag, size = 0x4, scoped, tag = 'scoped memory for tpu_custom_call.1']
    #allocation10 [shape = 'u8[98304]{0}', space=vmem, size = 0x18000, scoped, tag = 'input window, operand 4, single buffered']
    #allocation11 [shape = 'u8[8192]{0}', space=vmem, size = 0x2000, scoped, tag = 'output window, operand 0']
    %12 = vsyncpa [#allocation6], 0
    %s13 = scalar_lea.sflag [#allocation6], 1
    %14 = vsyncpa %s13, 0
    %15 = vsyncpa [#allocation9], 0
    %16 = vsyncpa [#allocation7], 0
    %s17 = scalar_lea.sflag [#allocation7], 1
    %18 = vsyncpa %s17, 0
    loop: start=0, step=1, limit=4
    $region2: #{tpu_custom_call.1} parent=1 // loop_pre_header
      _
    $region3: #{tpu_custom_call.1} parent=1 // loop_header
      %s20 = sphi 0, %s24
      %p21 = scmp.ge.s32.totalorder %s20, 4
      %s27 = sphi 0, %s39
      %s28 = sphi 0, %s35
      %s29 = sphi 0, %s27
      %s30 = sphi 0, %s28
      %s31 = sphi 0, %s29
      %s32 = sphi 0, %s30
      %s44 = sphi 0, %s46
      %s47 = sphi 0, %s44
      %s48 = sphi 0, %s47
      %s64 = sphi 0, %s48
      %s72 = sphi 0, %s74
      %s75 = sphi 0, %s72
      %s76 = sphi 0, %s75
      %s92 = sphi 0, %s76
      %s96 = sphi 0, %s96
      %s98 = sphi 0, %s96
      %s99 = sphi 0, %s98
      %s113 = sphi 0, %s99
      %s117 = sphi 0, %s117
      %s119 = sphi 0, %s117
      %s120 = sphi 0, %s119
      %s134 = sphi 0, %s120
      %s138 = sphi 0, %s138
      %s140 = sphi 0, %s138
      %s141 = sphi 0, %s140
      %s155 = sphi 0, %s141
      %s159 = sphi 0, %s159
      %s161 = sphi 0, %s159
      %s162 = sphi 0, %s161
      %s176 = sphi 0, %s162
      %s182 = sphi 0, %s184
      %s185 = sphi 0, %s182
      %s186 = sphi 0, %s185
      %s202 = sphi 0, %s186
      %s210 = sphi 0, %s212
      %s213 = sphi 0, %s210
      %s214 = sphi 0, %s213
      %s230 = sphi 0, %s214
    $region4: #{tpu_custom_call.1} parent=1 // loop_header_branch
      %23 = sbr.rel (%p21) target = $region8
    $region5: #{tpu_custom_call.1} parent=1 // loop_body
      %s25 = ssub.s32 %s20, 1
      %s26 = ssub.s32 %s20, 2
      %s33 = sadd.s32 1, %s28
      %p34 = scmp.ge.s32.totalorder %s33, 1
      %s35 = scalar_select %p34, 0, %s33
      %s36 = sadd.s32 1, %s27
      %s37 = scalar_select %p34, %s36, %s27
      %p38 = scmp.ge.s32.totalorder %s37, 2
      %s39 = scalar_select %p38, 0, %s37
      %s40 = ssub.s32 %s27, %s39
      %s41 = ssub.s32 %s28, %s35
      %s42 = sor.u32 %s40, %s41
      %p43 = scmp.eq.s32.totalorder %s42, 0
      %s45 = sadd.s32 %s44, 1
      %s46 = scalar_select %p43, %s44, %s45
      %p49 = pneg %p43
      %p50 = scmp.eq.s32.totalorder %s20, 1
      %p51 = por %p49, %p50
      %p52 = scmp.ne.s32.totalorder %s44, %s47
      %p53 = scmp.eq.s32.totalorder %s20, 0
      %p54 = por %p52, %p53
      %p55 = scmp.ne.s32.totalorder %s44, %s47
      %p56 = scmp.eq.s32.totalorder %s25, 1
      %p57 = por %p55, %p56
      %p58 = scmp.ne.s32.totalorder %s47, %s48
      %p59 = scmp.eq.s32.totalorder %s25, 0
      %p60 = por %p58, %p59
      %p61 = scmp.ne.s32.totalorder %s47, %s48
      %p62 = scmp.eq.s32.totalorder %s26, 1
      %p63 = por %p61, %p62
      %p65 = scmp.ne.s32.totalorder %s48, %s64
      %p66 = scmp.eq.s32.totalorder %s26, 0
      %p67 = por %p65, %p66
      %s68 = ssub.s32 %s27, %s39
      %s69 = ssub.s32 %s28, %s35
      %s70 = sor.u32 %s68, %s69
      %p71 = scmp.eq.s32.totalorder %s70, 0
      %s73 = sadd.s32 %s72, 1
      %s74 = scalar_select %p71, %s72, %s73
      %p77 = pneg %p71
      %p78 = scmp.eq.s32.totalorder %s20, 1
      %p79 = por %p77, %p78
      %p80 = scmp.ne.s32.totalorder %s72, %s75
      %p81 = scmp.eq.s32.totalorder %s20, 0
      %p82 = por %p80, %p81
      %p83 = scmp.ne.s32.totalorder %s72, %s75
      %p84 = scmp.eq.s32.totalorder %s25, 1
      %p85 = por %p83, %p84
      %p86 = scmp.ne.s32.totalorder %s75, %s76
      %p87 = scmp.eq.s32.totalorder %s25, 0
      %p88 = por %p86, %p87
      %p89 = scmp.ne.s32.totalorder %s75, %s76
      %p90 = scmp.eq.s32.totalorder %s26, 1
      %p91 = por %p89, %p90
      %p93 = scmp.ne.s32.totalorder %s76, %s92
      %p94 = scmp.eq.s32.totalorder %s26, 0
      %p95 = por %p93, %p94
      %s97 = sadd.s32 %s96, 1
      %p100 = scmp.eq.s32.totalorder %s20, 1
      %p101 = scmp.ne.s32.totalorder %s96, %s98
      %p102 = scmp.eq.s32.totalorder %s20, 0
      %p103 = por %p101, %p102
      %p104 = scmp.ne.s32.totalorder %s96, %s98
      %p105 = scmp.eq.s32.totalorder %s25, 1
      %p106 = por %p104, %p105
      %p107 = scmp.ne.s32.totalorder %s98, %s99
      %p108 = scmp.eq.s32.totalorder %s25, 0
      %p109 = por %p107, %p108
      %p110 = scmp.ne.s32.totalorder %s98, %s99
      %p111 = scmp.eq.s32.totalorder %s26, 1
      %p112 = por %p110, %p111
      %p114 = scmp.ne.s32.totalorder %s99, %s113
      %p115 = scmp.eq.s32.totalorder %s26, 0
      %p116 = por %p114, %p115
      %s118 = sadd.s32 %s117, 1
      %p121 = scmp.eq.s32.totalorder %s20, 1
      %p122 = scmp.ne.s32.totalorder %s117, %s119
      %p123 = scmp.eq.s32.totalorder %s20, 0
      %p124 = por %p122, %p123
      %p125 = scmp.ne.s32.totalorder %s117, %s119
      %p126 = scmp.eq.s32.totalorder %s25, 1
      %p127 = por %p125, %p126
      %p128 = scmp.ne.s32.totalorder %s119, %s120
      %p129 = scmp.eq.s32.totalorder %s25, 0
      %p130 = por %p128, %p129
      %p131 = scmp.ne.s32.totalorder %s119, %s120
      %p132 = scmp.eq.s32.totalorder %s26, 1
      %p133 = por %p131, %p132
      %p135 = scmp.ne.s32.totalorder %s120, %s134
      %p136 = scmp.eq.s32.totalorder %s26, 0
      %p137 = por %p135, %p136
      %s139 = sadd.s32 %s138, 1
      %p142 = scmp.eq.s32.totalorder %s20, 1
      %p143 = scmp.ne.s32.totalorder %s138, %s140
      %p144 = scmp.eq.s32.totalorder %s20, 0
      %p145 = por %p143, %p144
      %p146 = scmp.ne.s32.totalorder %s138, %s140
      %p147 = scmp.eq.s32.totalorder %s25, 1
      %p148 = por %p146, %p147
      %p149 = scmp.ne.s32.totalorder %s140, %s141
      %p150 = scmp.eq.s32.totalorder %s25, 0
      %p151 = por %p149, %p150
      %p152 = scmp.ne.s32.totalorder %s140, %s141
      %p153 = scmp.eq.s32.totalorder %s26, 1
      %p154 = por %p152, %p153
      %p156 = scmp.ne.s32.totalorder %s141, %s155
      %p157 = scmp.eq.s32.totalorder %s26, 0
      %p158 = por %p156, %p157
      %s160 = sadd.s32 %s159, 1
      %p163 = scmp.eq.s32.totalorder %s20, 1
      %p164 = scmp.ne.s32.totalorder %s159, %s161
      %p165 = scmp.eq.s32.totalorder %s20, 0
      %p166 = por %p164, %p165
      %p167 = scmp.ne.s32.totalorder %s159, %s161
      %p168 = scmp.eq.s32.totalorder %s25, 1
      %p169 = por %p167, %p168
      %p170 = scmp.ne.s32.totalorder %s161, %s162
      %p171 = scmp.eq.s32.totalorder %s25, 0
      %p172 = por %p170, %p171
      %p173 = scmp.ne.s32.totalorder %s161, %s162
      %p174 = scmp.eq.s32.totalorder %s26, 1
      %p175 = por %p173, %p174
      %p177 = scmp.ne.s32.totalorder %s162, %s176
      %p178 = scmp.eq.s32.totalorder %s26, 0
      %p179 = por %p177, %p178
      %s180 = ssub.s32 %s28, %s35
      %p181 = scmp.eq.s32.totalorder %s180, 0
      %s183 = sadd.s32 %s182, 1
      %s184 = scalar_select %p181, %s182, %s183
      %p187 = pneg %p181
      %p188 = scmp.eq.s32.totalorder %s20, 1
      %p189 = por %p187, %p188
      %p190 = scmp.ne.s32.totalorder %s182, %s185
      %p191 = scmp.eq.s32.totalorder %s20, 0
      %p192 = por %p190, %p191
      %p193 = scmp.ne.s32.totalorder %s182, %s185
      %p194 = scmp.eq.s32.totalorder %s25, 1
      %p195 = por %p193, %p194
      %p196 = scmp.ne.s32.totalorder %s185, %s186
      %p197 = scmp.eq.s32.totalorder %s25, 0
      %p198 = por %p196, %p197
      %p199 = scmp.ne.s32.totalorder %s185, %s186
      %p200 = scmp.eq.s32.totalorder %s26, 1
      %p201 = por %p199, %p200
      %p203 = scmp.ne.s32.totalorder %s186, %s202
      %p204 = scmp.eq.s32.totalorder %s26, 0
      %p205 = por %p203, %p204
      %s206 = ssub.s32 %s27, %s39
      %s207 = ssub.s32 %s28, %s35
      %s208 = sor.u32 %s206, %s207
      %p209 = scmp.eq.s32.totalorder %s208, 0
      %s211 = sadd.s32 %s210, 1
      %s212 = scalar_select %p209, %s210, %s211
      %p215 = pneg %p209
      %p216 = scmp.eq.s32.totalorder %s20, 1
      %p217 = por %p215, %p216
      %p218 = scmp.ne.s32.totalorder %s210, %s213
      %p219 = scmp.eq.s32.totalorder %s20, 0
      %p220 = por %p218, %p219
      %p221 = scmp.ne.s32.totalorder %s210, %s213
      %p222 = scmp.eq.s32.totalorder %s25, 1
      %p223 = por %p221, %p222
      %p224 = scmp.ne.s32.totalorder %s213, %s214
      %p225 = scmp.eq.s32.totalorder %s25, 0
      %p226 = por %p224, %p225
      %p227 = scmp.ne.s32.totalorder %s213, %s214
      %p228 = scmp.eq.s32.totalorder %s26, 1
      %p229 = por %p227, %p228
      %p231 = scmp.ne.s32.totalorder %s214, %s230
      %p232 = scmp.eq.s32.totalorder %s26, 0
      %p233 = por %p231, %p232
      %p234 = scmp.le.s32.totalorder 1, %s20
      %p235 = scmp.lt.s32.totalorder %s20, 3
      %p236 = pnand %p234, %p235
      %p237 = pneg %p236
      // Predicated region
      $region9: #{tpu_custom_call.1} parent=5 // pred_check
        _
      $region10: #{tpu_custom_call.1} parent=5 // pred_check_branch
        %239 = sbr.rel (%p236) target = $region12
      $region11: #{tpu_custom_call.1} parent=5 // pred_region
        %s240 = ssub.s32 %s20, 1
        // Predicated region
        $region13: #{tpu_custom_call.1} parent=11 // pred_check
          %p241 = pneg %p109
        $region14: #{tpu_custom_call.1} parent=11 // pred_check_branch
          %243 = sbr.rel (%p241) target = $region16
        $region15: #{tpu_custom_call.1} parent=11 // pred_region
          %s245 = ssub.s32 512, 512
          %246 = vsyncadd [#allocation9], %s245
          %s247 = sshll.u32 [#allocation8], 4
          %s248 = int_to_ptr.vmem [resolvable:$true] %s247
          %253 = dma.hbm_to_vmem [thread:$0]  %s2, 512, %s248, [#allocation9], 128, 128, 8
        $region16: #{tpu_custom_call.1} parent=11 // pred_fallthru
          _
        // Predicated region
        $region17: #{tpu_custom_call.1} parent=11 // pred_check
          %p254 = pneg %p130
        $region18: #{tpu_custom_call.1} parent=11 // pred_check_branch
          %256 = sbr.rel (%p254) target = $region20
        $region19: #{tpu_custom_call.1} parent=11 // pred_region
          _
        $region20: #{tpu_custom_call.1} parent=11 // pred_fallthru
          _
        // Predicated region
        $region21: #{tpu_custom_call.1} parent=11 // pred_check
          %p257 = pneg %p151
        $region22: #{tpu_custom_call.1} parent=11 // pred_check_branch
          %259 = sbr.rel (%p257) target = $region24
        $region23: #{tpu_custom_call.1} parent=11 // pred_region
          %s261 = ssub.s32 3072, 3072
          %262 = vsyncadd [#allocation9], %s261
          %s263 = sshll.u32 [#allocation10], 4
          %s264 = int_to_ptr.vmem [resolvable:$true] %s263
          %269 = dma.hbm_to_vmem [thread:$0]  %s4, 3072, %s264, [#allocation9], 64, 64, 4
        $region24: #{tpu_custom_call.1} parent=11 // pred_fallthru
          _
        // Predicated region
        $region25: #{tpu_custom_call.1} parent=11 // pred_check
          %p270 = pneg %p172
        $region26: #{tpu_custom_call.1} parent=11 // pred_check_branch
          %272 = sbr.rel (%p270) target = $region28
        $region27: #{tpu_custom_call.1} parent=11 // pred_region
          _
        $region28: #{tpu_custom_call.1} parent=11 // pred_fallthru
          _
        // Predicated region
        $region29: #{tpu_custom_call.1} parent=11 // pred_check
          %p273 = pneg %p198
        $region30: #{tpu_custom_call.1} parent=11 // pred_check_branch
          %275 = sbr.rel (%p273) target = $region32
        $region31: #{tpu_custom_call.1} parent=11 // pred_region
          %p276 = scmp.lt.s32.totalorder %s30, 0
          %s277 = scalar_select %p276, %s30, 0
          %s278 = smul.addr %s277, 8
          %s279 = scalar_lea.vmem %s6, %s278
        $region32: #{tpu_custom_call.1} parent=11 // pred_fallthru
          _
      $region12: #{tpu_custom_call.1} parent=5 // pred_fallthru
        _
      %p280 = scmp.lt.s32.totalorder %s20, 2
      // Predicated region
      $region33: #{tpu_custom_call.1} parent=5 // pred_check
        %p281 = pneg %p280
      $region34: #{tpu_custom_call.1} parent=5 // pred_check_branch
        %283 = sbr.rel (%p281) target = $region36
      $region35: #{tpu_custom_call.1} parent=5 // pred_region
        // Predicated region
        $region37: #{tpu_custom_call.1} parent=35 // pred_check
          %p284 = pneg %p54
        $region38: #{tpu_custom_call.1} parent=35 // pred_check_branch
          %286 = sbr.rel (%p284) target = $region40
        $region39: #{tpu_custom_call.1} parent=35 // pred_region
          %s287 = sand.u32 %s44, 1
          %s288 = scalar_lea.sflag [#allocation6], %s287
          %s289 = sand.u32 %s44, 1
          %s290 = smul.addr %s289, 8
          %s291 = scalar_lea.vmem [#allocation5], %s290
          %s293 = ssub.s32 128, 128
          %294 = vsyncadd %s288, %s293
          %s295 = sadd.s32 %s28, %s27
          %s296 = smul.addr %s295, 128
          %s297 = scalar_lea.hbm %s0, %s296
          %s299 = sshll.u32 %s291, 4
          %s300 = int_to_ptr.vmem [resolvable:$true] %s299
          %302 = dma.hbm_to_vmem [thread:$0]  %s297, 128, %s300, %s288
        $region40: #{tpu_custom_call.1} parent=35 // pred_fallthru
          _
        // Predicated region
        $region41: #{tpu_custom_call.1} parent=35 // pred_check
          %p303 = pneg %p82
        $region42: #{tpu_custom_call.1} parent=35 // pred_check_branch
          %305 = sbr.rel (%p303) target = $region44
        $region43: #{tpu_custom_call.1} parent=35 // pred_region
          %p306 = scmp.lt.s32.totalorder %s27, 1
          %s307 = scalar_select %p306, %s27, 1
          %p308 = scmp.lt.s32.totalorder %s28, 0
          %s309 = scalar_select %p308, %s28, 0
          %s310 = sadd.s32 %s309, %s307
          %s311 = scalar_lea.vmem %s1, %s310
        $region44: #{tpu_custom_call.1} parent=35 // pred_fallthru
          _
      $region36: #{tpu_custom_call.1} parent=5 // pred_fallthru
        _
      %p312 = scmp.le.s32.totalorder 1, %s20
      %p313 = scmp.lt.s32.totalorder %s20, 3
      %p314 = pnand %p312, %p313
      %p315 = pneg %p314
      // Predicated region
      $region45: #{tpu_custom_call.1} parent=5 // pred_check
        _
      $region46: #{tpu_custom_call.1} parent=5 // pred_check_branch
        %317 = sbr.rel (%p314) target = $region48
      $region47: #{tpu_custom_call.1} parent=5 // pred_region
        %s318 = ssub.s32 %s20, 1
        %s319 = sand.u32 %s47, 1
        %s320 = scalar_lea.sflag [#allocation6], %s319
        %s321 = sand.u32 %s47, 1
        %s322 = smul.addr %s321, 8
        %s323 = scalar_lea.vmem [#allocation5], %s322
        // Predicated region
        $region49: #{tpu_custom_call.1} parent=47 // pred_check
          %p324 = pneg %p60
        $region50: #{tpu_custom_call.1} parent=47 // pred_check_branch
          %326 = sbr.rel (%p324) target = $region52
        $region51: #{tpu_custom_call.1} parent=47 // pred_region
          %327 = dma.done %s320, 128
        $region52: #{tpu_custom_call.1} parent=47 // pred_fallthru
          _
        // Predicated region
        $region53: #{tpu_custom_call.1} parent=47 // pred_check
          %p328 = pneg %p109
        $region54: #{tpu_custom_call.1} parent=47 // pred_check_branch
          %330 = sbr.rel (%p328) target = $region56
        $region55: #{tpu_custom_call.1} parent=47 // pred_region
          %331 = dma.done [#allocation9], 512
        $region56: #{tpu_custom_call.1} parent=47 // pred_fallthru
          _
        // Predicated region
        $region57: #{tpu_custom_call.1} parent=47 // pred_check
          %p332 = pneg %p151
        $region58: #{tpu_custom_call.1} parent=47 // pred_check_branch
          %334 = sbr.rel (%p332) target = $region60
        $region59: #{tpu_custom_call.1} parent=47 // pred_region
          %335 = dma.done [#allocation9], 3072
        $region60: #{tpu_custom_call.1} parent=47 // pred_fallthru
          _
        %s336 = sand.u32 %s47, 1
        %s337 = scalar_lea.sflag [#allocation6], %s336
        %s338 = sand.u32 %s47, 1
        %s339 = smul.addr %s338, 8
        %s340 = scalar_lea.vmem [#allocation5], %s339
        %p341 = pneg %p60
        %p342 = pneg %p57
        %p343 = scmp.lt.s32.totalorder %s29, 1
        %s344 = scalar_select %p343, %s29, 1
        %p345 = scmp.lt.s32.totalorder %s30, 0
        %s346 = scalar_select %p345, %s30, 0
        %s347 = sadd.s32 %s346, %s344
        %s348 = scalar_lea.vmem %s1, %s347
        %p349 = pneg %p88
        %p350 = pneg %p85
        %p351 = pneg %p109
        %p352 = pneg %p106
        %p353 = pneg %p130
        %p354 = pneg %p127
        %p355 = pneg %p151
        %p356 = pneg %p148
        %p357 = pneg %p172
        %p358 = pneg %p169
        %p359 = scmp.lt.s32.totalorder %s30, 0
        %s360 = scalar_select %p359, %s30, 0
        %s361 = smul.addr %s360, 8
        %s362 = scalar_lea.vmem %s6, %s361
        %p363 = pneg %p198
        %p364 = pneg %p195
        %p365 = pneg %p226
        %p366 = pneg %p223
        %s367 = sand.u32 %s213, 1
        %s368 = scalar_lea.sflag [#allocation7], %s367
        %s369 = sand.u32 %s213, 1
        %s370 = smul.addr %s369, 8
        %s371 = scalar_lea.vmem [#allocation11], %s370
        %p372 = scmp.lt.s32.totalorder %s29, 1
        %s373 = scalar_select %p372, %s29, 1
        %p374 = scmp.lt.s32.totalorder %s30, 0
        %s375 = scalar_select %p374, %s30, 0
        %s376 = sadd.s32 %s375, %s373
        %s377 = scalar_lea.vmem %s1, %s376
        %p378 = scmp.lt.s32.totalorder %s30, 0
        %s379 = scalar_select %p378, %s30, 0
        %s380 = smul.addr %s379, 8
        %s381 = scalar_lea.vmem %s6, %s380
        %v383 = vld [vmem:[%s323 + $0x1] sm:$0x7f]
        %vm384 = vcmask 194560
        %385 = vst.msk [vmem:[#allocation2] sm:$0x7f] %vm384, %v383
        %v386 = vld [vmem:[%s377] sm:$0x1]
        %vm387 = vcmask 188416
        %388 = vst.msk [vmem:[#allocation2 + $0x7] sm:$0x1] %vm387, %v386
        %v389 = vld [vmem:[#allocation8] sm:$0xff]
        %v390 = vld [vmem:[#allocation8 + $0x8] sm:$0xff]
        %v391 = vld [vmem:[#allocation8 + $0x10] sm:$0xff]
        %v392 = vld [vmem:[#allocation8 + $0x18] sm:$0x7]
        %v393 = vld [vmem:[%s3] sm:$0x1]
        %v394 = vld [vmem:[%s323] sm:$0xff]
        %vm395 = vcmask 23552
        %396 = vst.msk [vmem:[#allocation3] sm:$0xff] %vm395, %v394
        %v397 = vld [vmem:[%s323] sm:$0xff]
        %399 = vrot.lane.b32.xlu0 %v397, 113
        %v400 = vpop.permute.xlu0 %399
        %vm402 = vcmask 97352
        %403 = vst.msk [vmem:[#allocation3] sm:$0xff] %vm402, %v400
        %v404 = vld [vmem:[#allocation2] sm:$0xff]
        %406 = vrot.lane.b32.xlu0 %v404, 18
        %v407 = vpop.permute.xlu0 %406
        %vm409 = vcmask 171152
        %410 = vst.msk [vmem:[#allocation3] sm:$0xff] %vm409, %v407
        %v411 = vld [vmem:[%s323] sm:$0xff]
        %413 = vrot.lane.b32.xlu0 %v411, 123
        %v414 = vpop.permute.xlu0 %413
        %vm416 = vcmask 48152
        %417 = vst.msk [vmem:[#allocation3] sm:$0xff] %vm416, %v414
        %v418 = vld [vmem:[%s323] sm:$0xff]
        %420 = vrot.lane.b32.xlu0 %v418, 108
        %v421 = vpop.permute.xlu0 %420
        %vm423 = vcmask 121952
        %424 = vst.msk [vmem:[#allocation3] sm:$0xff] %vm423, %v421
        %v425 = vld [vmem:[#allocation2] sm:$0xff]
        %427 = vrot.lane.b32.xlu0 %v425, 13
        %v428 = vpop.permute.xlu0 %427
        %vm430 = vcmask 195752
        %431 = vst.msk [vmem:[#allocation3] sm:$0xff] %vm430, %v428
        %v432 = vld [vmem:[%s323] sm:$0xff]
        %434 = vrot.lane.b32.xlu0 %v432, 118
        %v435 = vpop.permute.xlu0 %434
        %vm437 = vcmask 72752
        %438 = vst.msk [vmem:[#allocation3] sm:$0xff] %vm437, %v435
        %v439 = vld [vmem:[%s323] sm:$0xff]
        %441 = vrot.lane.b32.xlu0 %v439, 103
        %v442 = vpop.permute.xlu0 %441
        %vm444 = vcmask 146552
        %445 = vst.msk [vmem:[#allocation3] sm:$0xff] %vm444, %v442
        %v446 = vld [vmem:[#allocation2] sm:$0xff]
        %448 = vrot.lane.b32.xlu0 %v446, 8
        %v449 = vpop.permute.xlu0 %448
        %vm451 = vcmask 220352
        %452 = vst.msk [vmem:[#allocation3] sm:$0xff] %vm451, %v449
        %v453 = vld [vmem:[#allocation3] sm:$0xff]
        %v455 = vlaneseq
        %v456 = vshrl.u32 %v455, 7
        %v457 = vsub.s32 0, %v456
        %v458 = vrot.slane %v393, %v457
        %vm460 = vcmask 220160
        %v462 = vsel %vm460, %v453, 0
        %vm464 = vcmask 1042432
        %v466 = vsel %vm464, %v392, 0
        %468 = vmatprep.subr.mxu0 0.0
        %469 = vmatpush1.msra.mxu0 %v389
        %470 = vmatprep.subr.mxu0 0.0
        %471 = vmatpush1.msra.mxu0 %v390
        %472 = vmatprep.subr.mxu0 0.0
        %473 = vmatpush1.msra.mxu0 %v391
        %474 = vmatprep.subr.mxu0 0.0
        %475 = vmatpush1.msra.mxu0 %v466
        %476 = vmatprep.subr.mxu0 0.0
        %477 = vmatpush1.msra.mxu0 0.0
        %478 = vmatprep.subr.mxu0 0.0
        %479 = vmatpush1.msra.mxu0 0.0
        %480 = vmatprep.subr.mxu0 0.0
        %481 = vmatpush1.msra.mxu0 0.0
        %482 = vmatprep.subr.mxu0 0.0
        %483 = vmatpush1.msra.mxu0 0.0
        %484 = vmatprep.subr.mxu0 0.0
        %485 = vmatpush1.msra.mxu0 0.0
        %486 = vmatprep.subr.mxu0 0.0
        %487 = vmatpush1.msra.mxu0 0.0
        %488 = vmatprep.subr.mxu0 0.0
        %489 = vmatpush1.msra.mxu0 0.0
        %490 = vmatprep.subr.mxu0 0.0
        %491 = vmatpush1.msra.mxu0 0.0
        %492 = vmatprep.subr.mxu0 0.0
        %493 = vmatpush1.msra.mxu0 0.0
        %494 = vmatprep.subr.mxu0 0.0
        %495 = vmatpush1.msra.mxu0 0.0
        %496 = vmatprep.subr.mxu0 0.0
        %497 = vmatpush1.msra.mxu0 0.0
        %498 = vmatprep.subr.mxu0 0.0
        %499 = vmatpush1.msra.mxu0 0.0
        %500 = vmatprep.subr.mxu0 0.0
        %501 = vmatpush1.msra.mxu0 0.0
        %502 = vmatprep.subr.mxu0 0.0
        %503 = vmatpush1.msra.mxu0 0.0
        %504 = vmatprep.subr.mxu0 0.0
        %505 = vmatpush1.msra.mxu0 0.0
        %506 = vmatprep.subr.mxu0 0.0
        %507 = vmatpush1.msra.mxu0 0.0
        %508 = vmatprep.subr.mxu0 0.0
        %509 = vmatpush1.msra.mxu0 0.0
        %510 = vmatprep.subr.mxu0 0.0
        %511 = vmatpush1.msra.mxu0 0.0
        %512 = vmatprep.subr.mxu0 0.0
        %513 = vmatpush1.msra.mxu0 0.0
        %514 = vmatprep.subr.mxu0 0.0
        %515 = vmatpush1.msra.mxu0 0.0
        %516 = vmatprep.subr.mxu0 0.0
        %517 = vmatpush1.msra.mxu0 0.0
        %518 = vmatprep.subr.mxu0 0.0
        %519 = vmatpush1.msra.mxu0 0.0
        %520 = vmatprep.subr.mxu0 0.0
        %521 = vmatpush1.msra.mxu0 0.0
        %522 = vmatprep.subr.mxu0 0.0
        %523 = vmatpush1.msra.mxu0 0.0
        %524 = vmatprep.subr.mxu0 0.0
        %525 = vmatpush1.msra.mxu0 0.0
        %526 = vmatprep.subr.mxu0 0.0
        %527 = vmatpush1.msra.mxu0 0.0
        %528 = vmatprep.subr.mxu0 0.0
        %529 = vmatpush1.msra.mxu0 0.0
        %530 = vmatprep.subr.mxu0 0.0
        %531 = vmatpush1.msra.mxu0 0.0
        %532 = vmatprep.mubr.f32.mxu0 0.0
        %533 = vmatmul.mubr.f32.gmra.mrb[0].mxu0 %v462
        %v534 = vpop.f32.mrb[0].mxu0
        %v535 = vadd.f32 %v458, %v534
        %v536 = vpop.f32.mrb[0].mxu0
        %537 = vdwg.mxu0
        %v538 = vmax.f32 %v535, 0.0
        %v539 = vpack.c.bf16 %v538, %v538
        %540 = vst [vmem:[#allocation4] sm:$0xf] %v539
        %v541 = vld [vmem:[%s323] sm:$0xff]
        %543 = vrot.lane.b32.xlu0 %v541, 126
        %v544 = vpop.permute.xlu0 %543
        %546 = vst.msk [vmem:[#allocation3] sm:$0xff] %vm395, %v544
        %v547 = vld [vmem:[%s323] sm:$0xff]
        %549 = vrot.lane.b32.xlu0 %v547, 111
        %v550 = vpop.permute.xlu0 %549
        %552 = vst.msk [vmem:[#allocation3] sm:$0xff] %vm402, %v550
        %v553 = vld [vmem:[#allocation2] sm:$0xff]
        %555 = vrot.lane.b32.xlu0 %v553, 16
        %v556 = vpop.permute.xlu0 %555
        %558 = vst.msk [vmem:[#allocation3] sm:$0xff] %vm409, %v556
        %v559 = vld [vmem:[%s323] sm:$0xff]
        %561 = vrot.lane.b32.xlu0 %v559, 121
        %v562 = vpop.permute.xlu0 %561
        %564 = vst.msk [vmem:[#allocation3] sm:$0xff] %vm416, %v562
        %v565 = vld [vmem:[%s323] sm:$0xff]
        %567 = vrot.lane.b32.xlu0 %v565, 106
        %v568 = vpop.permute.xlu0 %567
        %570 = vst.msk [vmem:[#allocation3] sm:$0xff] %vm423, %v568
        %v571 = vld [vmem:[#allocation2] sm:$0xff]
        %573 = vrot.lane.b32.xlu0 %v571, 11
        %v574 = vpop.permute.xlu0 %573
        %576 = vst.msk [vmem:[#allocation3] sm:$0xff] %vm430, %v574
        %v577 = vld [vmem:[%s323] sm:$0xff]
        %579 = vrot.lane.b32.xlu0 %v577, 116
        %v580 = vpop.permute.xlu0 %579
        %582 = vst.msk [vmem:[#allocation3] sm:$0xff] %vm437, %v580
        %v583 = vld [vmem:[%s323] sm:$0xff]
        %585 = vrot.lane.b32.xlu0 %v583, 101
        %v586 = vpop.permute.xlu0 %585
        %588 = vst.msk [vmem:[#allocation3] sm:$0xff] %vm444, %v586
        %v589 = vld [vmem:[#allocation2] sm:$0xff]
        %591 = vrot.lane.b32.xlu0 %v589, 6
        %v592 = vpop.permute.xlu0 %591
        %594 = vst.msk [vmem:[#allocation3] sm:$0xff] %vm451, %v592
        %v595 = vld [vmem:[#allocation3] sm:$0xff]
        %v597 = vsel %vm460, %v595, 0
        %599 = vmatprep.subr.mxu0 0.0
        %600 = vmatpush1.msra.mxu0 %v389
        %601 = vmatprep.subr.mxu0 0.0
        %602 = vmatpush1.msra.mxu0 %v390
        %603 = vmatprep.subr.mxu0 0.0
        %604 = vmatpush1.msra.mxu0 %v391
        %605 = vmatprep.subr.mxu0 0.0
        %606 = vmatpush1.msra.mxu0 %v466
        %607 = vmatprep.subr.mxu0 0.0
        %608 = vmatpush1.msra.mxu0 0.0
        %609 = vmatprep.subr.mxu0 0.0
        %610 = vmatpush1.msra.mxu0 0.0
        %611 = vmatprep.subr.mxu0 0.0
        %612 = vmatpush1.msra.mxu0 0.0
        %613 = vmatprep.subr.mxu0 0.0
        %614 = vmatpush1.msra.mxu0 0.0
        %615 = vmatprep.subr.mxu0 0.0
        %616 = vmatpush1.msra.mxu0 0.0
        %617 = vmatprep.subr.mxu0 0.0
        %618 = vmatpush1.msra.mxu0 0.0
        %619 = vmatprep.subr.mxu0 0.0
        %620 = vmatpush1.msra.mxu0 0.0
        %621 = vmatprep.subr.mxu0 0.0
        %622 = vmatpush1.msra.mxu0 0.0
        %623 = vmatprep.subr.mxu0 0.0
        %624 = vmatpush1.msra.mxu0 0.0
        %625 = vmatprep.subr.mxu0 0.0
        %626 = vmatpush1.msra.mxu0 0.0
        %627 = vmatprep.subr.mxu0 0.0
        %628 = vmatpush1.msra.mxu0 0.0
        %629 = vmatprep.subr.mxu0 0.0
        %630 = vmatpush1.msra.mxu0 0.0
        %631 = vmatprep.subr.mxu0 0.0
        %632 = vmatpush1.msra.mxu0 0.0
        %633 = vmatprep.subr.mxu0 0.0
        %634 = vmatpush1.msra.mxu0 0.0
        %635 = vmatprep.subr.mxu0 0.0
        %636 = vmatpush1.msra.mxu0 0.0
        %637 = vmatprep.subr.mxu0 0.0
        %638 = vmatpush1.msra.mxu0 0.0
        %639 = vmatprep.subr.mxu0 0.0
        %640 = vmatpush1.msra.mxu0 0.0
        %641 = vmatprep.subr.mxu0 0.0
        %642 = vmatpush1.msra.mxu0 0.0
        %643 = vmatprep.subr.mxu0 0.0
        %644 = vmatpush1.msra.mxu0 0.0
        %645 = vmatprep.subr.mxu0 0.0
        %646 = vmatpush1.msra.mxu0 0.0
        %647 = vmatprep.subr.mxu0 0.0
        %648 = vmatpush1.msra.mxu0 0.0
        %649 = vmatprep.subr.mxu0 0.0
        %650 = vmatpush1.msra.mxu0 0.0
        %651 = vmatprep.subr.mxu0 0.0
        %652 = vmatpush1.msra.mxu0 0.0
        %653 = vmatprep.subr.mxu0 0.0
        %654 = vmatpush1.msra.mxu0 0.0
        %655 = vmatprep.subr.mxu0 0.0
        %656 = vmatpush1.msra.mxu0 0.0
        %657 = vmatprep.subr.mxu0 0.0
        %658 = vmatpush1.msra.mxu0 0.0
        %659 = vmatprep.subr.mxu0 0.0
        %660 = vmatpush1.msra.mxu0 0.0
        %661 = vmatprep.subr.mxu0 0.0
        %662 = vmatpush1.msra.mxu0 0.0
        %663 = vmatprep.mubr.f32.mxu0 0.0
        %664 = vmatmul.mubr.f32.gmra.mrb[0].mxu0 %v597
        %v665 = vpop.f32.mrb[0].mxu0
        %v666 = vadd.f32 %v458, %v665
        %v667 = vpop.f32.mrb[0].mxu0
        %668 = vdwg.mxu0
        %v669 = vmax.f32 %v666, 0.0
        %v670 = vpack.c.bf16 %v669, %v669
        %671 = vst [vmem:[#allocation4 + $0x4] sm:$0xf] %v670
        %v672 = vld [vmem:[%s323] sm:$0xff]
        %674 = vrot.lane.b32.xlu0 %v672, 124
        %v675 = vpop.permute.xlu0 %674
        %677 = vst.msk [vmem:[#allocation3] sm:$0xff] %vm395, %v675
        %v678 = vld [vmem:[%s323] sm:$0xff]
        %680 = vrot.lane.b32.xlu0 %v678, 109
        %v681 = vpop.permute.xlu0 %680
        %683 = vst.msk [vmem:[#allocation3] sm:$0xff] %vm402, %v681
        %v684 = vld [vmem:[#allocation2] sm:$0xff]
        %686 = vrot.lane.b32.xlu0 %v684, 14
        %v687 = vpop.permute.xlu0 %686
        %689 = vst.msk [vmem:[#allocation3] sm:$0xff] %vm409, %v687
        %v690 = vld [vmem:[%s323] sm:$0xff]
        %692 = vrot.lane.b32.xlu0 %v690, 119
        %v693 = vpop.permute.xlu0 %692
        %695 = vst.msk [vmem:[#allocation3] sm:$0xff] %vm416, %v693
        %v696 = vld [vmem:[%s323] sm:$0xff]
        %698 = vrot.lane.b32.xlu0 %v696, 104
        %v699 = vpop.permute.xlu0 %698
        %701 = vst.msk [vmem:[#allocation3] sm:$0xff] %vm423, %v699
        %v702 = vld [vmem:[#allocation2] sm:$0xff]
        %704 = vrot.lane.b32.xlu0 %v702, 9
        %v705 = vpop.permute.xlu0 %704
        %707 = vst.msk [vmem:[#allocation3] sm:$0xff] %vm430, %v705
        %v708 = vld [vmem:[%s323] sm:$0xff]
        %710 = vrot.lane.b32.xlu0 %v708, 114
        %v711 = vpop.permute.xlu0 %710
        %713 = vst.msk [vmem:[#allocation3] sm:$0xff] %vm437, %v711
        %v714 = vld [vmem:[%s323] sm:$0xff]
        %716 = vrot.lane.b32.xlu0 %v714, 99
        %v717 = vpop.permute.xlu0 %716
        %719 = vst.msk [vmem:[#allocation3] sm:$0xff] %vm444, %v717
        %v720 = vld [vmem:[#allocation2] sm:$0xff]
        %722 = vrot.lane.b32.xlu0 %v720, 4
        %v723 = vpop.permute.xlu0 %722
        %725 = vst.msk [vmem:[#allocation3] sm:$0xff] %vm451, %v723
        %v726 = vld [vmem:[#allocation3] sm:$0xff]
        %v728 = vsel %vm460, %v726, 0
        %730 = vmatprep.subr.mxu0 0.0
        %731 = vmatpush1.msra.mxu0 %v389
        %732 = vmatprep.subr.mxu0 0.0
        %733 = vmatpush1.msra.mxu0 %v390
        %734 = vmatprep.subr.mxu0 0.0
        %735 = vmatpush1.msra.mxu0 %v391
        %736 = vmatprep.subr.mxu0 0.0
        %737 = vmatpush1.msra.mxu0 %v466
        %738 = vmatprep.subr.mxu0 0.0
        %739 = vmatpush1.msra.mxu0 0.0
        %740 = vmatprep.subr.mxu0 0.0
        %741 = vmatpush1.msra.mxu0 0.0
        %742 = vmatprep.subr.mxu0 0.0
        %743 = vmatpush1.msra.mxu0 0.0
        %744 = vmatprep.subr.mxu0 0.0
        %745 = vmatpush1.msra.mxu0 0.0
        %746 = vmatprep.subr.mxu0 0.0
        %747 = vmatpush1.msra.mxu0 0.0
        %748 = vmatprep.subr.mxu0 0.0
        %749 = vmatpush1.msra.mxu0 0.0
        %750 = vmatprep.subr.mxu0 0.0
        %751 = vmatpush1.msra.mxu0 0.0
        %752 = vmatprep.subr.mxu0 0.0
        %753 = vmatpush1.msra.mxu0 0.0
        %754 = vmatprep.subr.mxu0 0.0
        %755 = vmatpush1.msra.mxu0 0.0
        %756 = vmatprep.subr.mxu0 0.0
        %757 = vmatpush1.msra.mxu0 0.0
        %758 = vmatprep.subr.mxu0 0.0
        %759 = vmatpush1.msra.mxu0 0.0
        %760 = vmatprep.subr.mxu0 0.0
        %761 = vmatpush1.msra.mxu0 0.0
        %762 = vmatprep.subr.mxu0 0.0
        %763 = vmatpush1.msra.mxu0 0.0
        %764 = vmatprep.subr.mxu0 0.0
        %765 = vmatpush1.msra.mxu0 0.0
        %766 = vmatprep.subr.mxu0 0.0
        %767 = vmatpush1.msra.mxu0 0.0
        %768 = vmatprep.subr.mxu0 0.0
        %769 = vmatpush1.msra.mxu0 0.0
        %770 = vmatprep.subr.mxu0 0.0
        %771 = vmatpush1.msra.mxu0 0.0
        %772 = vmatprep.subr.mxu0 0.0
        %773 = vmatpush1.msra.mxu0 0.0
        %774 = vmatprep.subr.mxu0 0.0
        %775 = vmatpush1.msra.mxu0 0.0
        %776 = vmatprep.subr.mxu0 0.0
        %777 = vmatpush1.msra.mxu0 0.0
        %778 = vmatprep.subr.mxu0 0.0
        %779 = vmatpush1.msra.mxu0 0.0
        %780 = vmatprep.subr.mxu0 0.0
        %781 = vmatpush1.msra.mxu0 0.0
        %782 = vmatprep.subr.mxu0 0.0
        %783 = vmatpush1.msra.mxu0 0.0
        %784 = vmatprep.subr.mxu0 0.0
        %785 = vmatpush1.msra.mxu0 0.0
        %786 = vmatprep.subr.mxu0 0.0
        %787 = vmatpush1.msra.mxu0 0.0
        %788 = vmatprep.subr.mxu0 0.0
        %789 = vmatpush1.msra.mxu0 0.0
        %790 = vmatprep.subr.mxu0 0.0
        %791 = vmatpush1.msra.mxu0 0.0
        %792 = vmatprep.subr.mxu0 0.0
        %793 = vmatpush1.msra.mxu0 0.0
        %794 = vmatprep.mubr.f32.mxu0 0.0
        %795 = vmatmul.mubr.f32.gmra.mrb[0].mxu0 %v728
        %v796 = vpop.f32.mrb[0].mxu0
        %v797 = vadd.f32 %v458, %v796
        %v798 = vpop.f32.mrb[0].mxu0
        %799 = vdwg.mxu0
        %v800 = vmax.f32 %v797, 0.0
        %v801 = vpack.c.bf16 %v800, %v800
        %802 = vst [vmem:[#allocation4 + $0x8] sm:$0xf] %v801
        %v803 = vld [vmem:[#allocation4] sm:$0xff]
        %v804 = vld [vmem:[#allocation4 + $0x8] sm:$0xf]
        %v805 = vld [vmem:[#allocation10] sm:$0xf]
        %v806 = vld [vmem:[#allocation10 + $0x4] sm:$0xf]
        %v807 = vld [vmem:[#allocation10 + $0x8] sm:$0xf]
        %v808 = vld [vmem:[#allocation10 + $0xc] sm:$0xf]
        %v809 = vld [vmem:[#allocation10 + $0x10] sm:$0xf]
        %v810 = vld [vmem:[#allocation10 + $0x14] sm:$0xf]
        %v811 = vld [vmem:[#allocation10 + $0x18] sm:$0xf]
        %v812 = vld [vmem:[#allocation10 + $0x1c] sm:$0xf]
        %v813 = vld [vmem:[#allocation10 + $0x20] sm:$0xf]
        %v814 = vld [vmem:[#allocation10 + $0x24] sm:$0xf]
        %v815 = vld [vmem:[#allocation10 + $0x28] sm:$0xf]
        %v816 = vld [vmem:[#allocation10 + $0x2c] sm:$0xf]
        %v817 = vld [vmem:[#allocation10 + $0x30] sm:$0xf]
        %v818 = vld [vmem:[#allocation10 + $0x34] sm:$0xf]
        %v819 = vld [vmem:[#allocation10 + $0x38] sm:$0xf]
        %v820 = vld [vmem:[#allocation10 + $0x3c] sm:$0xf]
        %v821 = vld [vmem:[#allocation10 + $0x40] sm:$0xf]
        %v822 = vld [vmem:[#allocation10 + $0x44] sm:$0xf]
        %v823 = vld [vmem:[#allocation10 + $0x48] sm:$0xf]
        %v824 = vld [vmem:[#allocation10 + $0x4c] sm:$0xf]
        %v825 = vld [vmem:[#allocation10 + $0x50] sm:$0xf]
        %v826 = vld [vmem:[#allocation10 + $0x54] sm:$0xf]
        %v827 = vld [vmem:[#allocation10 + $0x58] sm:$0xf]
        %v828 = vld [vmem:[#allocation10 + $0x5c] sm:$0xf]
        %v829 = vld [vmem:[#allocation10 + $0x60] sm:$0xf]
        %v830 = vld [vmem:[#allocation10 + $0x64] sm:$0xf]
        %v831 = vld [vmem:[#allocation10 + $0x68] sm:$0xf]
        %v832 = vld [vmem:[#allocation10 + $0x6c] sm:$0xf]
        %v833 = vld [vmem:[#allocation10 + $0x70] sm:$0xf]
        %v834 = vld [vmem:[#allocation10 + $0x74] sm:$0xf]
        %v835 = vld [vmem:[#allocation10 + $0x78] sm:$0xf]
        %v836 = vld [vmem:[#allocation10 + $0x7c] sm:$0xf]
        %v837 = vld [vmem:[#allocation10 + $0x80] sm:$0xf]
        %v838 = vld [vmem:[#allocation10 + $0x84] sm:$0xf]
        %v839 = vld [vmem:[#allocation10 + $0x88] sm:$0xf]
        %v840 = vld [vmem:[#allocation10 + $0x8c] sm:$0xf]
        %v841 = vld [vmem:[#allocation10 + $0x90] sm:$0xf]
        %v842 = vld [vmem:[#allocation10 + $0x94] sm:$0xf]
        %v843 = vld [vmem:[#allocation10 + $0x98] sm:$0xf]
        %v844 = vld [vmem:[#allocation10 + $0x9c] sm:$0xf]
        %v845 = vld [vmem:[#allocation10 + $0xa0] sm:$0xf]
        %v846 = vld [vmem:[#allocation10 + $0xa4] sm:$0xf]
        %v847 = vld [vmem:[#allocation10 + $0xa8] sm:$0xf]
        %v848 = vld [vmem:[#allocation10 + $0xac] sm:$0xf]
        %v849 = vld [vmem:[#allocation10 + $0xb0] sm:$0xf]
        %v850 = vld [vmem:[#allocation10 + $0xb4] sm:$0xf]
        %v851 = vld [vmem:[#allocation10 + $0xb8] sm:$0xf]
        %v852 = vld [vmem:[#allocation10 + $0xbc] sm:$0xf]
        %v853 = vld [vmem:[%s5] sm:$0x1]
        %v855 = vlaneseq
        %v856 = vshrl.u32 %v855, 7
        %v857 = vsub.s32 0, %v856
        %v858 = vrot.slane %v853, %v857
        %v862 = vunpack.c.l.b16 %v803
        %v863 = vunpack.c.h.b16 %v803
        %v864 = vunpack.c.l.b16 %v804
        %v865 = vpack.c.b16 %v862, %v862
        %v866 = vpack.c.b16 %v863, %v863
        %v867 = vpack.c.b16 %v864, %v864
        %v919 = vunpack.c.l.b16 %v805
        %v920 = vunpack.c.l.b16 %v806
        %v921 = vunpack.c.l.b16 %v807
        %v922 = vunpack.c.l.b16 %v808
        %v923 = vunpack.c.l.b16 %v809
        %v924 = vunpack.c.l.b16 %v810
        %v925 = vunpack.c.l.b16 %v811
        %v926 = vunpack.c.l.b16 %v812
        %v927 = vunpack.c.l.b16 %v813
        %v928 = vunpack.c.l.b16 %v814
        %v929 = vunpack.c.l.b16 %v815
        %v930 = vunpack.c.l.b16 %v816
        %v931 = vunpack.c.l.b16 %v817
        %v932 = vunpack.c.l.b16 %v818
        %v933 = vunpack.c.l.b16 %v819
        %v934 = vunpack.c.l.b16 %v820
        %v935 = vunpack.c.l.b16 %v821
        %v936 = vunpack.c.l.b16 %v822
        %v937 = vunpack.c.l.b16 %v823
        %v938 = vunpack.c.l.b16 %v824
        %v939 = vunpack.c.l.b16 %v825
        %v940 = vunpack.c.l.b16 %v826
        %v941 = vunpack.c.l.b16 %v827
        %v942 = vunpack.c.l.b16 %v828
        %v943 = vunpack.c.l.b16 %v829
        %v944 = vunpack.c.l.b16 %v830
        %v945 = vunpack.c.l.b16 %v831
        %v946 = vunpack.c.l.b16 %v832
        %v947 = vunpack.c.l.b16 %v833
        %v948 = vunpack.c.l.b16 %v834
        %v949 = vunpack.c.l.b16 %v835
        %v950 = vunpack.c.l.b16 %v836
        %v951 = vunpack.c.l.b16 %v837
        %v952 = vunpack.c.l.b16 %v838
        %v953 = vunpack.c.l.b16 %v839
        %v954 = vunpack.c.l.b16 %v840
        %v955 = vunpack.c.l.b16 %v841
        %v956 = vunpack.c.l.b16 %v842
        %v957 = vunpack.c.l.b16 %v843
        %v958 = vunpack.c.l.b16 %v844
        %v959 = vunpack.c.l.b16 %v845
        %v960 = vunpack.c.l.b16 %v846
        %v961 = vunpack.c.l.b16 %v847
        %v962 = vunpack.c.l.b16 %v848
        %v963 = vunpack.c.l.b16 %v849
        %v964 = vunpack.c.l.b16 %v850
        %v965 = vunpack.c.l.b16 %v851
        %v966 = vunpack.c.l.b16 %v852
        %v967 = vpack.c.b16 %v920, %v919
        %v968 = vpack.c.b16 %v922, %v921
        %v969 = vpack.c.b16 %v924, %v923
        %v970 = vpack.c.b16 %v926, %v925
        %v971 = vpack.c.b16 %v928, %v927
        %v972 = vpack.c.b16 %v930, %v929
        %v973 = vpack.c.b16 %v932, %v931
        %v974 = vpack.c.b16 %v934, %v933
        %v975 = vpack.c.b16 %v936, %v935
        %v976 = vpack.c.b16 %v938, %v937
        %v977 = vpack.c.b16 %v940, %v939
        %v978 = vpack.c.b16 %v942, %v941
        %v979 = vpack.c.b16 %v944, %v943
        %v980 = vpack.c.b16 %v946, %v945
        %v981 = vpack.c.b16 %v948, %v947
        %v982 = vpack.c.b16 %v950, %v949
        %v983 = vpack.c.b16 %v952, %v951
        %v984 = vpack.c.b16 %v954, %v953
        %v985 = vpack.c.b16 %v956, %v955
        %v986 = vpack.c.b16 %v958, %v957
        %v987 = vpack.c.b16 %v960, %v959
        %v988 = vpack.c.b16 %v962, %v961
        %v989 = vpack.c.b16 %v964, %v963
        %v990 = vpack.c.b16 %v966, %v965
        %1015 = vmatprep.subr.bf16.mxu0 0
        %1016 = vmatpush1.bf16.msra.mxu0 %v967
        %1017 = vmatprep.subr.bf16.mxu0 0
        %1018 = vmatpush1.bf16.msra.mxu0 %v968
        %1019 = vmatprep.subr.bf16.mxu0 0
        %1020 = vmatpush1.bf16.msra.mxu0 %v969
        %1021 = vmatprep.subr.bf16.mxu0 0
        %1022 = vmatpush1.bf16.msra.mxu0 %v970
        %1023 = vmatprep.subr.bf16.mxu0 0
        %1024 = vmatpush1.bf16.msra.mxu0 %v971
        %1025 = vmatprep.subr.bf16.mxu0 0
        %1026 = vmatpush1.bf16.msra.mxu0 %v972
        %1027 = vmatprep.subr.bf16.mxu0 0
        %1028 = vmatpush1.bf16.msra.mxu0 %v973
        %1029 = vmatprep.subr.bf16.mxu0 0
        %1030 = vmatpush1.bf16.msra.mxu0 %v974
        %1031 = vmatprep.subr.bf16.mxu0 0
        %1032 = vmatpush1.bf16.msra.mxu0 %v975
        %1033 = vmatprep.subr.bf16.mxu0 0
        %1034 = vmatpush1.bf16.msra.mxu0 %v976
        %1035 = vmatprep.subr.bf16.mxu0 0
        %1036 = vmatpush1.bf16.msra.mxu0 %v977
        %1037 = vmatprep.subr.bf16.mxu0 0
        %1038 = vmatpush1.bf16.msra.mxu0 %v978
        %1039 = vmatprep.subr.bf16.mxu0 0
        %1040 = vmatpush1.bf16.msra.mxu0 %v979
        %1041 = vmatprep.subr.bf16.mxu0 0
        %1042 = vmatpush1.bf16.msra.mxu0 %v980
        %1043 = vmatprep.subr.bf16.mxu0 0
        %1044 = vmatpush1.bf16.msra.mxu0 %v981
        %1045 = vmatprep.subr.bf16.mxu0 0
        %1046 = vmatpush1.bf16.msra.mxu0 %v982
        %1047 = vmatprep.mubr.bf16.mxu0 %v866
        %1048 = vmatmul.mubr.bf16.gmra.mrb[0].mxu0 %v865
        %v1049 = vpop.f32.mrb[0].mxu0
        %v1050 = vadd.f32 %v858, %v1049
        %v1051 = vpop.f32.mrb[0].mxu0
        %v1052 = vpop.f32.mrb[0].mxu0
        %v1053 = vpop.f32.mrb[0].mxu0
        %1054 = vdwg.mxu0
        %1055 = vmatprep.subr.bf16.mxu0 0
        %1056 = vmatpush1.bf16.msra.mxu0 %v983
        %1057 = vmatprep.subr.bf16.mxu0 0
        %1058 = vmatpush1.bf16.msra.mxu0 %v984
        %1059 = vmatprep.subr.bf16.mxu0 0
        %1060 = vmatpush1.bf16.msra.mxu0 %v985
        %1061 = vmatprep.subr.bf16.mxu0 0
        %1062 = vmatpush1.bf16.msra.mxu0 %v986
        %1063 = vmatprep.subr.bf16.mxu0 0
        %1064 = vmatpush1.bf16.msra.mxu0 %v987
        %1065 = vmatprep.subr.bf16.mxu0 0
        %1066 = vmatpush1.bf16.msra.mxu0 %v988
        %1067 = vmatprep.subr.bf16.mxu0 0
        %1068 = vmatpush1.bf16.msra.mxu0 %v989
        %1069 = vmatprep.subr.bf16.mxu0 0
        %1070 = vmatpush1.bf16.msra.mxu0 %v990
        %1071 = vmatprep.subr.bf16.mxu0 0
        %1072 = vmatpush1.bf16.msra.mxu0 0
        %1073 = vmatprep.subr.bf16.mxu0 0
        %1074 = vmatpush1.bf16.msra.mxu0 0
        %1075 = vmatprep.subr.bf16.mxu0 0
        %1076 = vmatpush1.bf16.msra.mxu0 0
        %1077 = vmatprep.subr.bf16.mxu0 0
        %1078 = vmatpush1.bf16.msra.mxu0 0
        %1079 = vmatprep.subr.bf16.mxu0 0
        %1080 = vmatpush1.bf16.msra.mxu0 0
        %1081 = vmatprep.subr.bf16.mxu0 0
        %1082 = vmatpush1.bf16.msra.mxu0 0
        %1083 = vmatprep.subr.bf16.mxu0 0
        %1084 = vmatpush1.bf16.msra.mxu0 0
        %1085 = vmatprep.subr.bf16.mxu0 0
        %1086 = vmatpush1.bf16.msra.mxu0 0
        %1087 = vmatprep.mubr.bf16.mxu0 0
        %1088 = vmatmul.mubr.bf16.gmra.mrb[0].mxu0 %v867
        %v1089 = vpop.f32.mrb[0].mxu0
        %v1090 = vadd.f32 %v1050, %v1089
        %v1091 = vpop.f32.mrb[0].mxu0
        %v1092 = vpop.f32.mrb[0].mxu0
        %v1093 = vpop.f32.mrb[0].mxu0
        %1094 = vdwg.mxu0
        %v1095 = vmul.f32 %v1090, 11.313708
        %v1096 = vld [vmem:[%s381] sm:$0xff]
        %v1097 = vadd.f32 %v1095, %v1096
        %1098 = vst [vmem:[%s371] sm:$0xff] %v1097
        %s1099 = sand.u32 %s213, 1
        %s1100 = scalar_lea.sflag [#allocation7], %s1099
        %s1101 = sand.u32 %s213, 1
        %s1102 = smul.addr %s1101, 8
        %s1103 = scalar_lea.vmem [#allocation11], %s1102
        // Predicated region
        $region61: #{tpu_custom_call.1} parent=47 // pred_check
          %p1104 = pneg %p223
        $region62: #{tpu_custom_call.1} parent=47 // pred_check_branch
          %1106 = sbr.rel (%p1104) target = $region64
        $region63: #{tpu_custom_call.1} parent=47 // pred_region
          %s1108 = ssub.s32 128, 128
          %1109 = vsyncadd %s1100, %s1108
          %s1110 = sadd.s32 %s30, %s29
          %s1111 = smul.addr %s1110, 128
          %s1112 = scalar_lea.hbm %s7, %s1111
          %s1114 = sshll.u32 %s1103, 4
          %s1115 = int_to_ptr.vmem [resolvable:$true] %s1114
          %1117 = dma.vmem_to_hbm [thread:$0]  %s1115, 128, %s1112, %s1100
        $region64: #{tpu_custom_call.1} parent=47 // pred_fallthru
          _
      $region48: #{tpu_custom_call.1} parent=5 // pred_fallthru
        _
      %p1118 = scmp.le.s32.totalorder 2, %s20
      // Predicated region
      $region65: #{tpu_custom_call.1} parent=5 // pred_check
        %p1119 = pneg %p1118
      $region66: #{tpu_custom_call.1} parent=5 // pred_check_branch
        %1121 = sbr.rel (%p1119) target = $region68
      $region67: #{tpu_custom_call.1} parent=5 // pred_region
        %s1122 = ssub.s32 %s20, 2
        // Predicated region
        $region69: #{tpu_custom_call.1} parent=67 // pred_check
          %p1123 = pneg %p229
        $region70: #{tpu_custom_call.1} parent=67 // pred_check_branch
          %1125 = sbr.rel (%p1123) target = $region72
        $region71: #{tpu_custom_call.1} parent=67 // pred_region
          %s1126 = sand.u32 %s214, 1
          %s1127 = scalar_lea.sflag [#allocation7], %s1126
          %s1128 = sand.u32 %s214, 1
          %s1129 = smul.addr %s1128, 8
          %s1130 = scalar_lea.vmem [#allocation11], %s1129
          %1131 = dma.done %s1127, 128
        $region72: #{tpu_custom_call.1} parent=67 // pred_fallthru
          _
      $region68: #{tpu_custom_call.1} parent=5 // pred_fallthru
        _
    $region6: #{tpu_custom_call.1} parent=1 // loop_footer
      %s24 = sadd.s32 1, %s20
    $region7: #{tpu_custom_call.1} parent=1 // loop_footer_branch
      %19 = sbr.rel target = $region3
    $region8: #{tpu_custom_call.1} parent=1 // loop_exit
      _
    %1132 = vsyncpa [#allocation6], 1
    %s1133 = scalar_lea.sflag [#allocation6], 1
    %1134 = vsyncpa %s1133, 1
    %1135 = vsyncpa [#allocation9], 1
    %1136 = vsyncpa [#allocation7], 1
    %s1137 = scalar_lea.sflag [#allocation7], 1
    %1138 = vsyncpa %s1137, 1

</llo_original>
